<compile_context>
chip_gen: v7x
topology: tpu7x:2x2x1
jax: 0.10.0
libtpu: 0.0.40
codegen_flags: <defaults>
</compile_context>

<pallas_src>
import functools
import math

import jax
import jax.numpy as jnp
from jax.experimental import pallas as pl
from jax.experimental.pallas import tpu as pltpu

EPS = 1e-5  # PyTorch LayerNorm default


def _ln(x, g, b):
    """LayerNorm in f32; g/b broadcast over rows."""
    mu = jnp.mean(x, axis=-1, keepdims=True)
    var = jnp.mean((x - mu) ** 2, axis=-1, keepdims=True)
    return (x - mu) * jax.lax.rsqrt(var + EPS) * g + b


# --------------------------- fused encoder kernel ---------------------------
def _encoder_kernel(x_ref, ctx_ref,
                    lnpre_g, lnpre_b,
                    ln1_g, ln1_b, wqkv, bqkv, wo, bo,
                    ln2_g, ln2_b, wfc, bfc, wpr, bpr,
                    lnpost_g, lnpost_b, proj_ref,
                    o_ref,
                    x_sc,
                    *, num_heads, n_pro, layer_p):
    l = pl.program_id(1)
    n_layers = pl.num_programs(1)
    S, W = x_sc.shape
    H = num_heads
    D = W // H
    scale = 1.0 / math.sqrt(D)

    # ---- layer 0: fused ln_pre initializes the carried activations (f32) ----
    @pl.when(l == 0)
    def _():
        x0 = x_ref[0].astype(jnp.float32)                       # (S, W)
        x_sc[...] = _ln(x0, lnpre_g[...], lnpre_b[...])

    # ---- deep prompts: replace last n_pro tokens for layers 1..layer_p-1 ----
    @pl.when(jnp.logical_and(l >= 1, l < layer_p))
    def _():
        x_sc[S - n_pro:, :] = ctx_ref[0, 0].astype(jnp.float32)

    x = x_sc[...]                                               # (S, W) f32

    # ---- ln_1 + multi-head self-attention + residual -------------------------
    h = _ln(x, ln1_g[0], ln1_b[0])
    qkv = jnp.dot(h.astype(jnp.bfloat16), wqkv[0],
                  preferred_element_type=jnp.float32) + bqkv[0]  # (S, 3W) f32

    def to_heads(z):                                            # (S, W) -> (H, S, D)
        return jnp.transpose(z.reshape(S, H, D), (1, 0, 2))

    q = to_heads(qkv[:, :W]).astype(jnp.bfloat16)
    k = to_heads(qkv[:, W:2 * W]).astype(jnp.bfloat16)
    v = to_heads(qkv[:, 2 * W:]).astype(jnp.bfloat16)

    s = jnp.einsum('hqd,hkd->hqk', q, k,
                   preferred_element_type=jnp.float32) * scale   # (H, S, S) f32
    s = s - jnp.max(s, axis=-1, keepdims=True)
    p = jnp.exp(s)
    p = p * pl.reciprocal(jnp.sum(p, axis=-1, keepdims=True), approx=True)

    attn = jnp.einsum('hqk,hkd->hqd', p.astype(jnp.bfloat16), v,
                      preferred_element_type=jnp.float32)        # (H, S, D) f32

    # Contract heads directly against w_out reshaped to (H, D, W): no lane concat.
    wo_r = wo[0].reshape(H, D, W)                                # bf16
    attn_o = jax.lax.dot_general(
        attn.astype(jnp.bfloat16), wo_r,
        dimension_numbers=(((2,), (1,)), ((0,), (0,))),          # batch H, contract D
        preferred_element_type=jnp.float32)                      # (H, S, W)
    attn_o = jnp.sum(attn_o, axis=0) + bo[0]
    x = x + attn_o

    # ---- ln_2 + MLP (c_fc -> QuickGELU -> c_proj) + residual -----------------
    h = _ln(x, ln2_g[0], ln2_b[0])
    h = jnp.dot(h.astype(jnp.bfloat16), wfc[0],
                preferred_element_type=jnp.float32) + bfc[0]
    h = h * jax.nn.sigmoid(1.702 * h)                            # QuickGELU (CLIP)
    h = jnp.dot(h.astype(jnp.bfloat16), wpr[0],
                preferred_element_type=jnp.float32) + bpr[0]
    x = x + h
    x_sc[...] = x                                                # carry to next layer

    # ---- last layer: fused ln_post + projection of the cls token -------------
    @pl.when(l == n_layers - 1)
    def _():
        cls = _ln(x[0:1, :], lnpost_g[...], lnpost_b[...])       # (1, W)
        o_ref[0] = jnp.dot(cls.astype(jnp.bfloat16), proj_ref[...],
                           preferred_element_type=jnp.float32).astype(o_ref.dtype)


def _vmem_limit_bytes(S, W, Wh, Dout):
    """Size the scoped-VMEM limit from actual buffers (with 1.5x headroom)."""
    bf16, f32 = 2, 4
    weights = 2 * (3 * W * W + W * W + 2 * W * Wh) * bf16        # double-buffered layer weights
    small = 4 * (20 * W + Wh) * f32 + 2 * W * Dout * bf16        # LN params, biases, proj
    acts = 3 * S * W * f32                                       # x block (x2) + carried scratch
    temps = S * (3 * W + Wh + 4 * W) * f32                       # qkv / mlp-hidden intermediates
    est = int((weights + small + acts + temps) * 1.5)
    return min(max(est, 32 * 1024 * 1024), 64 * 1024 * 1024)


# ------------------------------- full forward -------------------------------
def vision_encoder_forward(x, ctx_v, params, *, n_pro, layer_p, num_heads):
    """x: (B, S0, W) cls+patch embeddings; ctx_v: (B, >=layer_p, n_pro, W)."""
    B, S0, W = x.shape
    L = params["wqkv"].shape[0]
    Wh = params["wfc"].shape[2]
    Dout = params["proj"].shape[1]
    S = S0 + n_pro

    # x = cat([x, ctx_v[:, 0]], dim=1)  -- plain-JAX glue
    x = jnp.concatenate([x, ctx_v[:, 0]], axis=1)                # (B, S, W)

    # Per-layer prompt tokens, padded to L entries along the layer axis so the
    # kernel's ctx BlockSpec can index by the layer grid coordinate directly.
    ctx_layers = ctx_v[:, :min(layer_p, L)]
    if ctx_layers.shape[1] < L:
        pad = jnp.zeros((B, L - ctx_layers.shape[1], n_pro, W), ctx_v.dtype)
        ctx_layers = jnp.concatenate([ctx_layers, pad], axis=1)  # (B, L, n_pro, W)

    kernel = functools.partial(_encoder_kernel, num_heads=num_heads,
                               n_pro=n_pro, layer_p=layer_p)

    def wspec(shape):
        # per-layer stacked weight/bias: block index follows the layer grid axis
        return pl.BlockSpec((1,) + shape, lambda b, l, _n=len(shape): (l,) + (0,) * _n)

    def cspec(shape):
        # constant (shared) parameter
        return pl.BlockSpec(shape, lambda b, l, _n=len(shape): (0,) * _n)

    out = pl.pallas_call(
        kernel,
        out_shape=jax.ShapeDtypeStruct((B, 1, Dout), x.dtype),
        grid_spec=pltpu.PrefetchScalarGridSpec(
            num_scalar_prefetch=0,
            grid=(B, L),
            in_specs=[
                pl.BlockSpec((1, S, W), lambda b, l: (b, 0, 0)),            # x
                pl.BlockSpec((1, 1, n_pro, W), lambda b, l: (b, l, 0, 0)),  # ctx_v per layer
                cspec((1, W)), cspec((1, W)),                               # ln_pre
                wspec((1, W)), wspec((1, W)),                               # ln_1
                wspec((W, 3 * W)), wspec((1, 3 * W)),                       # qkv proj
                wspec((W, W)), wspec((1, W)),                               # attn out proj
                wspec((1, W)), wspec((1, W)),                               # ln_2
                wspec((W, Wh)), wspec((1, Wh)),                             # c_fc
                wspec((Wh, W)), wspec((1, W)),                              # c_proj
                cspec((1, W)), cspec((1, W)),                               # ln_post
                cspec((W, Dout)),                                           # proj
            ],
            out_specs=pl.BlockSpec((1, 1, Dout), lambda b, l: (b, 0, 0)),
            scratch_shapes=[pltpu.VMEM((S, W), jnp.float32)],               # carried x
        ),
        compiler_params=pltpu.CompilerParams(
            dimension_semantics=("parallel", "arbitrary"),
            vmem_limit_bytes=_vmem_limit_bytes(S, W, Wh, Dout),
        ),
    )(x,
      ctx_layers,
      params["ln_pre_g"].reshape(1, W), params["ln_pre_b"].reshape(1, W),
      params["ln1_g"].reshape(L, 1, W), params["ln1_b"].reshape(L, 1, W),
      params["wqkv"], params["bqkv"].reshape(L, 1, 3 * W),
      params["wo"], params["bo"].reshape(L, 1, W),
      params["ln2_g"].reshape(L, 1, W), params["ln2_b"].reshape(L, 1, W),
      params["wfc"], params["bfc"].reshape(L, 1, Wh),
      params["wpr"], params["bpr"].reshape(L, 1, W),
      params["ln_post_g"].reshape(1, W), params["ln_post_b"].reshape(1, W),
      params["proj"])
    return out[:, 0, :]                                          # (B, Dout)


# ------------------------------- param init --------------------------------
def init_params(key, width, layers, out_dim, hidden_mult=4):
    Wh = hidden_mult * width
    kq, ko, kf, kp, kpr = jax.random.split(key, 5)

    def w(kk, shape):
        # MXU operands stored in bf16 (f32 accumulation happens in-kernel).
        return (0.02 * jax.random.normal(kk, shape, jnp.float32)).astype(jnp.bfloat16)

    return {
        "ln_pre_g": jnp.ones((width,), jnp.float32),
        "ln_pre_b": jnp.zeros((width,), jnp.float32),
        "ln_post_g": jnp.ones((width,), jnp.float32),
        "ln_post_b": jnp.zeros((width,), jnp.float32),
        "proj": w(kpr, (width, out_dim)),
        "ln1_g": jnp.ones((layers, width), jnp.float32),
        "ln1_b": jnp.zeros((layers, width), jnp.float32),
        "wqkv": w(kq, (layers, width, 3 * width)),
        "bqkv": jnp.zeros((layers, 3 * width), jnp.float32),
        "wo": w(ko, (layers, width, width)),
        "bo": jnp.zeros((layers, width), jnp.float32),
        "ln2_g": jnp.ones((layers, width), jnp.float32),
        "ln2_b": jnp.zeros((layers, width), jnp.float32),
        "wfc": w(kf, (layers, width, Wh)),
        "bfc": jnp.zeros((layers, Wh), jnp.float32),
        "wpr": w(kp, (layers, Wh, width)),
        "bpr": jnp.zeros((layers, width), jnp.float32),
    }


if __name__ == "__main__":
    B, S0, W = 2, 8, 32            # batch, seq (1 cls + 7 patches), width
    n_pro, layers, layer_p = 4, 3, 3
    num_heads, out_dim = 4, 16

    root = jax.random.PRNGKey(0)
    kp_, kx, kc = jax.random.split(root, 3)
    params = init_params(kp_, W, layers, out_dim)
    x = jax.random.normal(kx, (B, S0, W), jnp.float32)
    ctx_v = 0.02 * jax.random.normal(kc, (B, layer_p, n_pro, W), jnp.float32)

    fwd = jax.jit(functools.partial(vision_encoder_forward,
                                    n_pro=n_pro, layer_p=layer_p,
                                    num_heads=num_heads))
    out = jax.block_until_ready(fwd(x, ctx_v, params))
    assert out.shape == (B, out_dim), out.shape
    assert bool(jnp.all(jnp.isfinite(out)))
    print("KERNEL_OK")
</pallas_src>

<mosaic_0001>
module attributes {stable_mosaic.version = 11 : i64} {
  func.func @_encoder_kernel(%arg0: i32, %arg1: i32, %arg2: memref<1x12x32xf32, #tpu.memory_space<vmem>>, %arg3: memref<1x1x4x32xf32, #tpu.memory_space<vmem>>, %arg4: memref<1x32xf32, #tpu.memory_space<vmem>>, %arg5: memref<1x32xf32, #tpu.memory_space<vmem>>, %arg6: memref<1x1x32xf32, #tpu.memory_space<vmem>>, %arg7: memref<1x1x32xf32, #tpu.memory_space<vmem>>, %arg8: memref<1x32x96xbf16, #tpu.memory_space<vmem>>, %arg9: memref<1x1x96xf32, #tpu.memory_space<vmem>>, %arg10: memref<1x32x32xbf16, #tpu.memory_space<vmem>>, %arg11: memref<1x1x32xf32, #tpu.memory_space<vmem>>, %arg12: memref<1x1x32xf32, #tpu.memory_space<vmem>>, %arg13: memref<1x1x32xf32, #tpu.memory_space<vmem>>, %arg14: memref<1x32x128xbf16, #tpu.memory_space<vmem>>, %arg15: memref<1x1x128xf32, #tpu.memory_space<vmem>>, %arg16: memref<1x128x32xbf16, #tpu.memory_space<vmem>>, %arg17: memref<1x1x32xf32, #tpu.memory_space<vmem>>, %arg18: memref<1x32xf32, #tpu.memory_space<vmem>>, %arg19: memref<1x32xf32, #tpu.memory_space<vmem>>, %arg20: memref<32x16xbf16, #tpu.memory_space<vmem>>, %arg21: memref<1x1x16xf32, #tpu.memory_space<vmem>>, %arg22: memref<12x32xf32, #tpu.memory_space<vmem>>) attributes {dimension_semantics = [#tpu.dimension_semantics<parallel>, #tpu.dimension_semantics<arbitrary>], iteration_bounds = array<i64: 2, 3>, scalar_prefetch = 0 : i64, scratch_operands = 1 : i64, tpu.core_type = #tpu.core_type<tc>, window_params = [{transform_indices = @transform_0, window_bounds = array<i64: 1, 12, 32>}, {transform_indices = @transform_1, window_bounds = array<i64: 1, 1, 4, 32>}, {pipeline_mode = #tpu.pipeline_mode<synchronous>, transform_indices = @transform_2, window_bounds = array<i64: 1, 32>}, {pipeline_mode = #tpu.pipeline_mode<synchronous>, transform_indices = @transform_3, window_bounds = array<i64: 1, 32>}, {transform_indices = @transform_4, window_bounds = array<i64: 1, 1, 32>}, {transform_indices = @transform_5, window_bounds = array<i64: 1, 1, 32>}, {transform_indices = @transform_6, window_bounds = array<i64: 1, 32, 96>}, {transform_indices = @transform_7, window_bounds = array<i64: 1, 1, 96>}, {transform_indices = @transform_8, window_bounds = array<i64: 1, 32, 32>}, {transform_indices = @transform_9, window_bounds = array<i64: 1, 1, 32>}, {transform_indices = @transform_10, window_bounds = array<i64: 1, 1, 32>}, {transform_indices = @transform_11, window_bounds = array<i64: 1, 1, 32>}, {transform_indices = @transform_12, window_bounds = array<i64: 1, 32, 128>}, {transform_indices = @transform_13, window_bounds = array<i64: 1, 1, 128>}, {transform_indices = @transform_14, window_bounds = array<i64: 1, 128, 32>}, {transform_indices = @transform_15, window_bounds = array<i64: 1, 1, 32>}, {pipeline_mode = #tpu.pipeline_mode<synchronous>, transform_indices = @transform_16, window_bounds = array<i64: 1, 32>}, {pipeline_mode = #tpu.pipeline_mode<synchronous>, transform_indices = @transform_17, window_bounds = array<i64: 1, 32>}, {pipeline_mode = #tpu.pipeline_mode<synchronous>, transform_indices = @transform_18, window_bounds = array<i64: 32, 16>}, {transform_indices = @transform_19, window_bounds = array<i64: 1, 1, 16>}]} {
    %c0_i32 = arith.constant 0 : i32
    %0 = arith.cmpi eq, %arg1, %c0_i32 : i32
    %1 = arith.extui %0 : i1 to i32
    %c0_i32_0 = arith.constant 0 : i32
    %2 = arith.cmpi ne, %1, %c0_i32_0 : i32
    scf.if %2 {
      %c0_63 = arith.constant 0 : index
      %c0_64 = arith.constant 0 : index
      %c0_65 = arith.constant 0 : index
      %136 = vector.load %arg2[%c0_63, %c0_64, %c0_65] : memref<1x12x32xf32, #tpu.memory_space<vmem>>, vector<1x12x32xf32>
      %137 = vector.shape_cast %136 : vector<1x12x32xf32> to vector<12x32xf32>
      %c0_66 = arith.constant 0 : index
      %c0_67 = arith.constant 0 : index
      %138 = vector.load %arg4[%c0_66, %c0_67] : memref<1x32xf32, #tpu.memory_space<vmem>>, vector<1x32xf32>
      %c0_68 = arith.constant 0 : index
      %c0_69 = arith.constant 0 : index
      %139 = vector.load %arg5[%c0_68, %c0_69] : memref<1x32xf32, #tpu.memory_space<vmem>>, vector<1x32xf32>
      %cst_70 = arith.constant dense<0.000000e+00> : vector<12xf32>
      %140 = vector.multi_reduction <add>, %137, %cst_70 [1] : vector<12x32xf32> to vector<12xf32>
      %141 = vector.shape_cast %140 : vector<12xf32> to vector<12x1xf32>
      %cst_71 = arith.constant 3.200000e+01 : f32
      %142 = vector.broadcast %cst_71 : f32 to vector<12x1xf32>
      %143 = arith.divf %141, %142 : vector<12x1xf32>
      %144 = vector.broadcast %143 : vector<12x1xf32> to vector<12x32xf32>
      %145 = arith.subf %137, %144 : vector<12x32xf32>
      %146 = arith.mulf %145, %145 : vector<12x32xf32>
      %cst_72 = arith.constant dense<0.000000e+00> : vector<12xf32>
      %147 = vector.multi_reduction <add>, %146, %cst_72 [1] : vector<12x32xf32> to vector<12xf32>
      %148 = vector.shape_cast %147 : vector<12xf32> to vector<12x1xf32>
      %cst_73 = arith.constant 3.200000e+01 : f32
      %149 = vector.broadcast %cst_73 : f32 to vector<12x1xf32>
      %150 = arith.divf %148, %149 : vector<12x1xf32>
      %151 = vector.broadcast %143 : vector<12x1xf32> to vector<12x32xf32>
      %152 = arith.subf %137, %151 : vector<12x32xf32>
      %cst_74 = arith.constant 9.99999974E-6 : f32
      %153 = vector.broadcast %cst_74 : f32 to vector<12x1xf32>
      %154 = arith.addf %150, %153 : vector<12x1xf32>
      %155 = math.rsqrt %154 : vector<12x1xf32>
      %156 = vector.broadcast %155 : vector<12x1xf32> to vector<12x32xf32>
      %157 = arith.mulf %152, %156 : vector<12x32xf32>
      %158 = vector.broadcast %138 : vector<1x32xf32> to vector<12x32xf32>
      %159 = arith.mulf %157, %158 : vector<12x32xf32>
      %160 = vector.broadcast %139 : vector<1x32xf32> to vector<12x32xf32>
      %161 = arith.addf %159, %160 : vector<12x32xf32>
      %c0_75 = arith.constant 0 : index
      %c0_76 = arith.constant 0 : index
      %162 = vector.load %arg22[%c0_75, %c0_76] : memref<12x32xf32, #tpu.memory_space<vmem>>, vector<12x32xf32>
      tpu.vector_store %arg22[%c0_75, %c0_76], %161 {strides = array<i32>} : memref<12x32xf32, #tpu.memory_space<vmem>>, vector<12x32xf32>,
    } else {
    }
    %c1_i32 = arith.constant 1 : i32
    %3 = arith.cmpi sge, %arg1, %c1_i32 : i32
    %c3_i32 = arith.constant 3 : i32
    %4 = arith.cmpi slt, %arg1, %c3_i32 : i32
    %5 = arith.andi %3, %4 : i1
    %6 = arith.extui %5 : i1 to i32
    %c0_i32_1 = arith.constant 0 : i32
    %7 = arith.cmpi ne, %6, %c0_i32_1 : i32
    scf.if %7 {
      %c0_63 = arith.constant 0 : index
      %c0_64 = arith.constant 0 : index
      %c0_65 = arith.constant 0 : index
      %c0_66 = arith.constant 0 : index
      %136 = vector.load %arg3[%c0_63, %c0_64, %c0_65, %c0_66] : memref<1x1x4x32xf32, #tpu.memory_space<vmem>>, vector<1x1x4x32xf32>
      %137 = vector.shape_cast %136 : vector<1x1x4x32xf32> to vector<4x32xf32>
      %c8 = arith.constant 8 : index
      %c0_67 = arith.constant 0 : index
      %138 = vector.load %arg22[%c8, %c0_67] : memref<12x32xf32, #tpu.memory_space<vmem>>, vector<4x32xf32>
      tpu.vector_store %arg22[%c8, %c0_67], %137 {strides = array<i32>} : memref<12x32xf32, #tpu.memory_space<vmem>>, vector<4x32xf32>,
    } else {
    }
    %c0 = arith.constant 0 : index
    %c0_2 = arith.constant 0 : index
    %8 = vector.load %arg22[%c0, %c0_2] : memref<12x32xf32, #tpu.memory_space<vmem>>, vector<12x32xf32>
    %c0_3 = arith.constant 0 : index
    %c0_4 = arith.constant 0 : index
    %c0_5 = arith.constant 0 : index
    %9 = vector.load %arg6[%c0_3, %c0_4, %c0_5] : memref<1x1x32xf32, #tpu.memory_space<vmem>>, vector<1x1x32xf32>
    %10 = vector.shape_cast %9 : vector<1x1x32xf32> to vector<1x32xf32>
    %c0_6 = arith.constant 0 : index
    %c0_7 = arith.constant 0 : index
    %c0_8 = arith.constant 0 : index
    %11 = vector.load %arg7[%c0_6, %c0_7, %c0_8] : memref<1x1x32xf32, #tpu.memory_space<vmem>>, vector<1x1x32xf32>
    %12 = vector.shape_cast %11 : vector<1x1x32xf32> to vector<1x32xf32>
    %cst = arith.constant dense<0.000000e+00> : vector<12xf32>
    %13 = vector.multi_reduction <add>, %8, %cst [1] : vector<12x32xf32> to vector<12xf32>
    %14 = vector.shape_cast %13 : vector<12xf32> to vector<12x1xf32>
    %cst_9 = arith.constant 3.200000e+01 : f32
    %15 = vector.broadcast %cst_9 : f32 to vector<12x1xf32>
    %16 = arith.divf %14, %15 : vector<12x1xf32>
    %17 = vector.broadcast %16 : vector<12x1xf32> to vector<12x32xf32>
    %18 = arith.subf %8, %17 : vector<12x32xf32>
    %19 = arith.mulf %18, %18 : vector<12x32xf32>
    %cst_10 = arith.constant dense<0.000000e+00> : vector<12xf32>
    %20 = vector.multi_reduction <add>, %19, %cst_10 [1] : vector<12x32xf32> to vector<12xf32>
    %21 = vector.shape_cast %20 : vector<12xf32> to vector<12x1xf32>
    %cst_11 = arith.constant 3.200000e+01 : f32
    %22 = vector.broadcast %cst_11 : f32 to vector<12x1xf32>
    %23 = arith.divf %21, %22 : vector<12x1xf32>
    %24 = vector.broadcast %16 : vector<12x1xf32> to vector<12x32xf32>
    %25 = arith.subf %8, %24 : vector<12x32xf32>
    %cst_12 = arith.constant 9.99999974E-6 : f32
    %26 = vector.broadcast %cst_12 : f32 to vector<12x1xf32>
    %27 = arith.addf %23, %26 : vector<12x1xf32>
    %28 = math.rsqrt %27 : vector<12x1xf32>
    %29 = vector.broadcast %28 : vector<12x1xf32> to vector<12x32xf32>
    %30 = arith.mulf %25, %29 : vector<12x32xf32>
    %31 = vector.broadcast %10 : vector<1x32xf32> to vector<12x32xf32>
    %32 = arith.mulf %30, %31 : vector<12x32xf32>
    %33 = vector.broadcast %12 : vector<1x32xf32> to vector<12x32xf32>
    %34 = arith.addf %32, %33 : vector<12x32xf32>
    %35 = arith.truncf %34 : vector<12x32xf32> to vector<12x32xbf16>
    %c0_13 = arith.constant 0 : index
    %c0_14 = arith.constant 0 : index
    %c0_15 = arith.constant 0 : index
    %36 = vector.load %arg8[%c0_13, %c0_14, %c0_15] : memref<1x32x96xbf16, #tpu.memory_space<vmem>>, vector<1x32x96xbf16>
    %37 = vector.shape_cast %36 : vector<1x32x96xbf16> to vector<32x96xbf16>
    %cst_16 = arith.constant dense<0.000000e+00> : vector<12x96xf32>
    %38 = tpu.matmul %35, %37, %cst_16 {dimension_numbers = #tpu.dot_dimension_numbers<[1], [0], [0], [1], [0, 0, 1, 1], [], []>} : vector<12x32xbf16>, vector<32x96xbf16>, vector<12x96xf32> -> vector<12x96xf32>
    %c0_17 = arith.constant 0 : index
    %c0_18 = arith.constant 0 : index
    %c0_19 = arith.constant 0 : index
    %39 = vector.load %arg9[%c0_17, %c0_18, %c0_19] : memref<1x1x96xf32, #tpu.memory_space<vmem>>, vector<1x1x96xf32>
    %40 = vector.shape_cast %39 : vector<1x1x96xf32> to vector<1x96xf32>
    %41 = vector.broadcast %40 : vector<1x96xf32> to vector<12x96xf32>
    %42 = arith.addf %38, %41 : vector<12x96xf32>
    %43 = vector.extract_strided_slice %42 {offsets = [0, 0], sizes = [12, 32], strides = [1, 1]} : vector<12x96xf32> to vector<12x32xf32>
    %44 = vector.shape_cast %43 : vector<12x32xf32> to vector<12x4x8xf32>
    %45 = tpu.transpose %44, [1, 0, 2] : vector<12x4x8xf32> -> vector<4x12x8xf32>
    %46 = arith.truncf %45 : vector<4x12x8xf32> to vector<4x12x8xbf16>
    %47 = vector.extract_strided_slice %42 {offsets = [0, 32], sizes = [12, 32], strides = [1, 1]} : vector<12x96xf32> to vector<12x32xf32>
    %48 = vector.shape_cast %47 : vector<12x32xf32> to vector<12x4x8xf32>
    %49 = tpu.transpose %48, [1, 0, 2] : vector<12x4x8xf32> -> vector<4x12x8xf32>
    %50 = arith.truncf %49 : vector<4x12x8xf32> to vector<4x12x8xbf16>
    %51 = vector.extract_strided_slice %42 {offsets = [0, 64], sizes = [12, 32], strides = [1, 1]} : vector<12x96xf32> to vector<12x32xf32>
    %52 = vector.shape_cast %51 : vector<12x32xf32> to vector<12x4x8xf32>
    %53 = tpu.transpose %52, [1, 0, 2] : vector<12x4x8xf32> -> vector<4x12x8xf32>
    %54 = arith.truncf %53 : vector<4x12x8xf32> to vector<4x12x8xbf16>
    "tpu.trace_start"() <{level = 10 : i32, message = "hqd,hkd->hqk"}> : () -> ()
    %cst_20 = arith.constant dense<0.000000e+00> : vector<4x12x12xf32>
    %55 = tpu.matmul %46, %50, %cst_20 {dimension_numbers = #tpu.dot_dimension_numbers<[2], [2], [1], [1], [0, 0, 0, 1, 1, 1], [0], [0]>} : vector<4x12x8xbf16>, vector<4x12x8xbf16>, vector<4x12x12xf32> -> vector<4x12x12xf32>
    "tpu.trace_stop"() : () -> ()
    %cst_21 = arith.constant 0.353553385 : f32
    %56 = vector.broadcast %cst_21 : f32 to vector<4x12x12xf32>
    %57 = arith.mulf %55, %56 : vector<4x12x12xf32>
    %cst_22 = arith.constant dense<0xFF800000> : vector<4x12xf32>
    %58 = vector.multi_reduction <maximumf>, %57, %cst_22 [2] : vector<4x12x12xf32> to vector<4x12xf32>
    %59 = vector.shape_cast %58 : vector<4x12xf32> to vector<4x12x1xf32>
    %60 = vector.broadcast %59 : vector<4x12x1xf32> to vector<4x12x12xf32>
    %61 = arith.subf %57, %60 : vector<4x12x12xf32>
    %62 = math.exp %61 : vector<4x12x12xf32>
    %cst_23 = arith.constant dense<0.000000e+00> : vector<4x12xf32>
    %63 = vector.multi_reduction <add>, %62, %cst_23 [2] : vector<4x12x12xf32> to vector<4x12xf32>
    %64 = vector.shape_cast %63 : vector<4x12xf32> to vector<4x12x1xf32>
    %65 = tpu.reciprocal %64 {approx = true} : vector<4x12x1xf32> -> vector<4x12x1xf32>
    %66 = vector.broadcast %65 : vector<4x12x1xf32> to vector<4x12x12xf32>
    %67 = arith.mulf %62, %66 : vector<4x12x12xf32>
    %68 = arith.truncf %67 : vector<4x12x12xf32> to vector<4x12x12xbf16>
    "tpu.trace_start"() <{level = 10 : i32, message = "hqk,hkd->hqd"}> : () -> ()
    %cst_24 = arith.constant dense<0.000000e+00> : vector<4x12x8xf32>
    %69 = tpu.matmul %68, %54, %cst_24 {dimension_numbers = #tpu.dot_dimension_numbers<[2], [1], [1], [2], [0, 0, 0, 1, 1, 2], [0], [0]>} : vector<4x12x12xbf16>, vector<4x12x8xbf16>, vector<4x12x8xf32> -> vector<4x12x8xf32>
    "tpu.trace_stop"() : () -> ()
    %c0_25 = arith.constant 0 : index
    %c0_26 = arith.constant 0 : index
    %c0_27 = arith.constant 0 : index
    %70 = vector.load %arg10[%c0_25, %c0_26, %c0_27] : memref<1x32x32xbf16, #tpu.memory_space<vmem>>, vector<1x32x32xbf16>
    %71 = vector.shape_cast %70 : vector<1x32x32xbf16> to vector<32x32xbf16>
    %72 = vector.shape_cast %71 : vector<32x32xbf16> to vector<4x8x32xbf16>
    %73 = arith.truncf %69 : vector<4x12x8xf32> to vector<4x12x8xbf16>
    %cst_28 = arith.constant dense<0.000000e+00> : vector<4x12x32xf32>
    %74 = tpu.matmul %73, %72, %cst_28 {dimension_numbers = #tpu.dot_dimension_numbers<[2], [1], [1], [2], [0, 0, 0, 1, 1, 2], [0], [0]>} : vector<4x12x8xbf16>, vector<4x8x32xbf16>, vector<4x12x32xf32> -> vector<4x12x32xf32>
    %cst_29 = arith.constant dense<0.000000e+00> : vector<12x32xf32>
    %75 = vector.multi_reduction <add>, %74, %cst_29 [0] : vector<4x12x32xf32> to vector<12x32xf32>
    %c0_30 = arith.constant 0 : index
    %c0_31 = arith.constant 0 : index
    %c0_32 = arith.constant 0 : index
    %76 = vector.load %arg11[%c0_30, %c0_31, %c0_32] : memref<1x1x32xf32, #tpu.memory_space<vmem>>, vector<1x1x32xf32>
    %77 = vector.shape_cast %76 : vector<1x1x32xf32> to vector<1x32xf32>
    %78 = vector.broadcast %77 : vector<1x32xf32> to vector<12x32xf32>
    %79 = arith.addf %75, %78 : vector<12x32xf32>
    %80 = arith.addf %8, %79 : vector<12x32xf32>
    %c0_33 = arith.constant 0 : index
    %c0_34 = arith.constant 0 : index
    %c0_35 = arith.constant 0 : index
    %81 = vector.load %arg12[%c0_33, %c0_34, %c0_35] : memref<1x1x32xf32, #tpu.memory_space<vmem>>, vector<1x1x32xf32>
    %82 = vector.shape_cast %81 : vector<1x1x32xf32> to vector<1x32xf32>
    %c0_36 = arith.constant 0 : index
    %c0_37 = arith.constant 0 : index
    %c0_38 = arith.constant 0 : index
    %83 = vector.load %arg13[%c0_36, %c0_37, %c0_38] : memref<1x1x32xf32, #tpu.memory_space<vmem>>, vector<1x1x32xf32>
    %84 = vector.shape_cast %83 : vector<1x1x32xf32> to vector<1x32xf32>
    %cst_39 = arith.constant dense<0.000000e+00> : vector<12xf32>
    %85 = vector.multi_reduction <add>, %80, %cst_39 [1] : vector<12x32xf32> to vector<12xf32>
    %86 = vector.shape_cast %85 : vector<12xf32> to vector<12x1xf32>
    %cst_40 = arith.constant 3.200000e+01 : f32
    %87 = vector.broadcast %cst_40 : f32 to vector<12x1xf32>
    %88 = arith.divf %86, %87 : vector<12x1xf32>
    %89 = vector.broadcast %88 : vector<12x1xf32> to vector<12x32xf32>
    %90 = arith.subf %80, %89 : vector<12x32xf32>
    %91 = arith.mulf %90, %90 : vector<12x32xf32>
    %cst_41 = arith.constant dense<0.000000e+00> : vector<12xf32>
    %92 = vector.multi_reduction <add>, %91, %cst_41 [1] : vector<12x32xf32> to vector<12xf32>
    %93 = vector.shape_cast %92 : vector<12xf32> to vector<12x1xf32>
    %cst_42 = arith.constant 3.200000e+01 : f32
    %94 = vector.broadcast %cst_42 : f32 to vector<12x1xf32>
    %95 = arith.divf %93, %94 : vector<12x1xf32>
    %96 = vector.broadcast %88 : vector<12x1xf32> to vector<12x32xf32>
    %97 = arith.subf %80, %96 : vector<12x32xf32>
    %cst_43 = arith.constant 9.99999974E-6 : f32
    %98 = vector.broadcast %cst_43 : f32 to vector<12x1xf32>
    %99 = arith.addf %95, %98 : vector<12x1xf32>
    %100 = math.rsqrt %99 : vector<12x1xf32>
    %101 = vector.broadcast %100 : vector<12x1xf32> to vector<12x32xf32>
    %102 = arith.mulf %97, %101 : vector<12x32xf32>
    %103 = vector.broadcast %82 : vector<1x32xf32> to vector<12x32xf32>
    %104 = arith.mulf %102, %103 : vector<12x32xf32>
    %105 = vector.broadcast %84 : vector<1x32xf32> to vector<12x32xf32>
    %106 = arith.addf %104, %105 : vector<12x32xf32>
    %107 = arith.truncf %106 : vector<12x32xf32> to vector<12x32xbf16>
    %c0_44 = arith.constant 0 : index
    %c0_45 = arith.constant 0 : index
    %c0_46 = arith.constant 0 : index
    %108 = vector.load %arg14[%c0_44, %c0_45, %c0_46] : memref<1x32x128xbf16, #tpu.memory_space<vmem>>, vector<1x32x128xbf16>
    %109 = vector.shape_cast %108 : vector<1x32x128xbf16> to vector<32x128xbf16>
    %cst_47 = arith.constant dense<0.000000e+00> : vector<12x128xf32>
    %110 = tpu.matmul %107, %109, %cst_47 {dimension_numbers = #tpu.dot_dimension_numbers<[1], [0], [0], [1], [0, 0, 1, 1], [], []>} : vector<12x32xbf16>, vector<32x128xbf16>, vector<12x128xf32> -> vector<12x128xf32>
    %c0_48 = arith.constant 0 : index
    %c0_49 = arith.constant 0 : index
    %c0_50 = arith.constant 0 : index
    %111 = vector.load %arg15[%c0_48, %c0_49, %c0_50] : memref<1x1x128xf32, #tpu.memory_space<vmem>>, vector<1x1x128xf32>
    %112 = vector.shape_cast %111 : vector<1x1x128xf32> to vector<1x128xf32>
    %113 = vector.broadcast %112 : vector<1x128xf32> to vector<12x128xf32>
    %114 = arith.addf %110, %113 : vector<12x128xf32>
    %cst_51 = arith.constant 1.702000e+00 : f32
    %115 = vector.broadcast %cst_51 : f32 to vector<12x128xf32>
    %116 = arith.mulf %115, %114 : vector<12x128xf32>
    %117 = arith.negf %116 : vector<12x128xf32>
    %118 = math.exp %117 : vector<12x128xf32>
    %cst_52 = arith.constant 1.000000e+00 : f32
    %119 = vector.broadcast %cst_52 : f32 to vector<12x128xf32>
    %120 = arith.addf %119, %118 : vector<12x128xf32>
    %121 = arith.divf %119, %120 : vector<12x128xf32>
    %122 = arith.mulf %114, %121 : vector<12x128xf32>
    %123 = arith.truncf %122 : vector<12x128xf32> to vector<12x128xbf16>
    %c0_53 = arith.constant 0 : index
    %c0_54 = arith.constant 0 : index
    %c0_55 = arith.constant 0 : index
    %124 = vector.load %arg16[%c0_53, %c0_54, %c0_55] : memref<1x128x32xbf16, #tpu.memory_space<vmem>>, vector<1x128x32xbf16>
    %125 = vector.shape_cast %124 : vector<1x128x32xbf16> to vector<128x32xbf16>
    %cst_56 = arith.constant dense<0.000000e+00> : vector<12x32xf32>
    %126 = tpu.matmul %123, %125, %cst_56 {dimension_numbers = #tpu.dot_dimension_numbers<[1], [0], [0], [1], [0, 0, 1, 1], [], []>} : vector<12x128xbf16>, vector<128x32xbf16>, vector<12x32xf32> -> vector<12x32xf32>
    %c0_57 = arith.constant 0 : index
    %c0_58 = arith.constant 0 : index
    %c0_59 = arith.constant 0 : index
    %127 = vector.load %arg17[%c0_57, %c0_58, %c0_59] : memref<1x1x32xf32, #tpu.memory_space<vmem>>, vector<1x1x32xf32>
    %128 = vector.shape_cast %127 : vector<1x1x32xf32> to vector<1x32xf32>
    %129 = vector.broadcast %128 : vector<1x32xf32> to vector<12x32xf32>
    %130 = arith.addf %126, %129 : vector<12x32xf32>
    %131 = arith.addf %80, %130 : vector<12x32xf32>
    %c0_60 = arith.constant 0 : index
    %c0_61 = arith.constant 0 : index
    %132 = vector.load %arg22[%c0_60, %c0_61] : memref<12x32xf32, #tpu.memory_space<vmem>>, vector<12x32xf32>
    tpu.vector_store %arg22[%c0_60, %c0_61], %131 {strides = array<i32>} : memref<12x32xf32, #tpu.memory_space<vmem>>, vector<12x32xf32>,
    %c2_i32 = arith.constant 2 : i32
    %133 = arith.cmpi eq, %arg1, %c2_i32 : i32
    %134 = arith.extui %133 : i1 to i32
    %c0_i32_62 = arith.constant 0 : i32
    %135 = arith.cmpi ne, %134, %c0_i32_62 : i32
    scf.if %135 {
      %136 = vector.extract_strided_slice %131 {offsets = [0, 0], sizes = [1, 32], strides = [1, 1]} : vector<12x32xf32> to vector<1x32xf32>
      %c0_63 = arith.constant 0 : index
      %c0_64 = arith.constant 0 : index
      %137 = vector.load %arg18[%c0_63, %c0_64] : memref<1x32xf32, #tpu.memory_space<vmem>>, vector<1x32xf32>
      %c0_65 = arith.constant 0 : index
      %c0_66 = arith.constant 0 : index
      %138 = vector.load %arg19[%c0_65, %c0_66] : memref<1x32xf32, #tpu.memory_space<vmem>>, vector<1x32xf32>
      %cst_67 = arith.constant dense<0.000000e+00> : vector<1xf32>
      %139 = vector.multi_reduction <add>, %136, %cst_67 [1] : vector<1x32xf32> to vector<1xf32>
      %140 = vector.shape_cast %139 : vector<1xf32> to vector<1x1xf32>
      %cst_68 = arith.constant 3.200000e+01 : f32
      %141 = vector.broadcast %cst_68 : f32 to vector<1x1xf32>
      %142 = arith.divf %140, %141 : vector<1x1xf32>
      %143 = vector.broadcast %142 : vector<1x1xf32> to vector<1x32xf32>
      %144 = arith.subf %136, %143 : vector<1x32xf32>
      %145 = arith.mulf %144, %144 : vector<1x32xf32>
      %cst_69 = arith.constant dense<0.000000e+00> : vector<1xf32>
      %146 = vector.multi_reduction <add>, %145, %cst_69 [1] : vector<1x32xf32> to vector<1xf32>
      %147 = vector.shape_cast %146 : vector<1xf32> to vector<1x1xf32>
      %cst_70 = arith.constant 3.200000e+01 : f32
      %148 = vector.broadcast %cst_70 : f32 to vector<1x1xf32>
      %149 = arith.divf %147, %148 : vector<1x1xf32>
      %150 = vector.broadcast %142 : vector<1x1xf32> to vector<1x32xf32>
      %151 = arith.subf %136, %150 : vector<1x32xf32>
      %cst_71 = arith.constant 9.99999974E-6 : f32
      %152 = vector.broadcast %cst_71 : f32 to vector<1x1xf32>
      %153 = arith.addf %149, %152 : vector<1x1xf32>
      %154 = math.rsqrt %153 : vector<1x1xf32>
      %155 = vector.broadcast %154 : vector<1x1xf32> to vector<1x32xf32>
      %156 = arith.mulf %151, %155 : vector<1x32xf32>
      %157 = arith.mulf %156, %137 : vector<1x32xf32>
      %158 = arith.addf %157, %138 : vector<1x32xf32>
      %159 = arith.truncf %158 : vector<1x32xf32> to vector<1x32xbf16>
      %c0_72 = arith.constant 0 : index
      %c0_73 = arith.constant 0 : index
      %160 = vector.load %arg20[%c0_72, %c0_73] : memref<32x16xbf16, #tpu.memory_space<vmem>>, vector<32x16xbf16>
      %cst_74 = arith.constant dense<0.000000e+00> : vector<1x16xf32>
      %161 = tpu.matmul %159, %160, %cst_74 {dimension_numbers = #tpu.dot_dimension_numbers<[1], [0], [0], [1], [0, 0, 1, 1], [], []>} : vector<1x32xbf16>, vector<32x16xbf16>, vector<1x16xf32> -> vector<1x16xf32>
      %c0_75 = arith.constant 0 : index
      %c0_76 = arith.constant 0 : index
      %c0_77 = arith.constant 0 : index
      %162 = vector.load %arg21[%c0_75, %c0_76, %c0_77] : memref<1x1x16xf32, #tpu.memory_space<vmem>>, vector<1x1x16xf32>
      %163 = vector.shape_cast %162 : vector<1x1x16xf32> to vector<1x16xf32>
      %164 = vector.shape_cast %161 : vector<1x16xf32> to vector<1x1x16xf32>
      tpu.vector_store %arg21[%c0_75, %c0_76, %c0_77], %164 {strides = array<i32>} : memref<1x1x16xf32, #tpu.memory_space<vmem>>, vector<1x1x16xf32>,
    } else {
    }
    return
  }
  func.func @transform_0(%arg0: i32, %arg1: i32) -> (i32, i32, i32) {
    %c0_i32 = arith.constant 0 : i32
    %c0_i32_0 = arith.constant 0 : i32
    %c0_i32_1 = arith.constant 0 : i32
    return %arg0, %c0_i32, %c0_i32_0 : i32, i32, i32
  }
  func.func @transform_1(%arg0: i32, %arg1: i32) -> (i32, i32, i32, i32) {
    %c0_i32 = arith.constant 0 : i32
    %c0_i32_0 = arith.constant 0 : i32
    %c0_i32_1 = arith.constant 0 : i32
    return %arg0, %arg1, %c0_i32, %c0_i32_0 : i32, i32, i32, i32
  }
  func.func @transform_2(%arg0: i32, %arg1: i32) -> (i32, i32) {
    %c0_i32 = arith.constant 0 : i32
    %c0_i32_0 = arith.constant 0 : i32
    %c0_i32_1 = arith.constant 0 : i32
    return %c0_i32, %c0_i32_0 : i32, i32
  }
  func.func @transform_3(%arg0: i32, %arg1: i32) -> (i32, i32) {
    %c0_i32 = arith.constant 0 : i32
    %c0_i32_0 = arith.constant 0 : i32
    %c0_i32_1 = arith.constant 0 : i32
    return %c0_i32, %c0_i32_0 : i32, i32
  }
  func.func @transform_4(%arg0: i32, %arg1: i32) -> (i32, i32, i32) {
    %c0_i32 = arith.constant 0 : i32
    %c0_i32_0 = arith.constant 0 : i32
    %c0_i32_1 = arith.constant 0 : i32
    return %arg1, %c0_i32, %c0_i32_0 : i32, i32, i32
  }
  func.func @transform_5(%arg0: i32, %arg1: i32) -> (i32, i32, i32) {
    %c0_i32 = arith.constant 0 : i32
    %c0_i32_0 = arith.constant 0 : i32
    %c0_i32_1 = arith.constant 0 : i32
    return %arg1, %c0_i32, %c0_i32_0 : i32, i32, i32
  }
  func.func @transform_6(%arg0: i32, %arg1: i32) -> (i32, i32, i32) {
    %c0_i32 = arith.constant 0 : i32
    %c0_i32_0 = arith.constant 0 : i32
    %c0_i32_1 = arith.constant 0 : i32
    return %arg1, %c0_i32, %c0_i32_0 : i32, i32, i32
  }
  func.func @transform_7(%arg0: i32, %arg1: i32) -> (i32, i32, i32) {
    %c0_i32 = arith.constant 0 : i32
    %c0_i32_0 = arith.constant 0 : i32
    %c0_i32_1 = arith.constant 0 : i32
    return %arg1, %c0_i32, %c0_i32_0 : i32, i32, i32
  }
  func.func @transform_8(%arg0: i32, %arg1: i32) -> (i32, i32, i32) {
    %c0_i32 = arith.constant 0 : i32
    %c0_i32_0 = arith.constant 0 : i32
    %c0_i32_1 = arith.constant 0 : i32
    return %arg1, %c0_i32, %c0_i32_0 : i32, i32, i32
  }
  func.func @transform_9(%arg0: i32, %arg1: i32) -> (i32, i32, i32) {
    %c0_i32 = arith.constant 0 : i32
    %c0_i32_0 = arith.constant 0 : i32
    %c0_i32_1 = arith.constant 0 : i32
    return %arg1, %c0_i32, %c0_i32_0 : i32, i32, i32
  }
  func.func @transform_10(%arg0: i32, %arg1: i32) -> (i32, i32, i32) {
    %c0_i32 = arith.constant 0 : i32
    %c0_i32_0 = arith.constant 0 : i32
    %c0_i32_1 = arith.constant 0 : i32
    return %arg1, %c0_i32, %c0_i32_0 : i32, i32, i32
  }
  func.func @transform_11(%arg0: i32, %arg1: i32) -> (i32, i32, i32) {
    %c0_i32 = arith.constant 0 : i32
    %c0_i32_0 = arith.constant 0 : i32
    %c0_i32_1 = arith.constant 0 : i32
    return %arg1, %c0_i32, %c0_i32_0 : i32, i32, i32
  }
  func.func @transform_12(%arg0: i32, %arg1: i32) -> (i32, i32, i32) {
    %c0_i32 = arith.constant 0 : i32
    %c0_i32_0 = arith.constant 0 : i32
    %c0_i32_1 = arith.constant 0 : i32
    return %arg1, %c0_i32, %c0_i32_0 : i32, i32, i32
  }
  func.func @transform_13(%arg0: i32, %arg1: i32) -> (i32, i32, i32) {
    %c0_i32 = arith.constant 0 : i32
    %c0_i32_0 = arith.constant 0 : i32
    %c0_i32_1 = arith.constant 0 : i32
    return %arg1, %c0_i32, %c0_i32_0 : i32, i32, i32
  }
  func.func @transform_14(%arg0: i32, %arg1: i32) -> (i32, i32, i32) {
    %c0_i32 = arith.constant 0 : i32
    %c0_i32_0 = arith.constant 0 : i32
    %c0_i32_1 = arith.constant 0 : i32
    return %arg1, %c0_i32, %c0_i32_0 : i32, i32, i32
  }
  func.func @transform_15(%arg0: i32, %arg1: i32) -> (i32, i32, i32) {
    %c0_i32 = arith.constant 0 : i32
    %c0_i32_0 = arith.constant 0 : i32
    %c0_i32_1 = arith.constant 0 : i32
    return %arg1, %c0_i32, %c0_i32_0 : i32, i32, i32
  }
  func.func @transform_16(%arg0: i32, %arg1: i32) -> (i32, i32) {
    %c0_i32 = arith.constant 0 : i32
    %c0_i32_0 = arith.constant 0 : i32
    %c0_i32_1 = arith.constant 0 : i32
    return %c0_i32, %c0_i32_0 : i32, i32
  }
  func.func @transform_17(%arg0: i32, %arg1: i32) -> (i32, i32) {
    %c0_i32 = arith.constant 0 : i32
    %c0_i32_0 = arith.constant 0 : i32
    %c0_i32_1 = arith.constant 0 : i32
    return %c0_i32, %c0_i32_0 : i32, i32
  }
  func.func @transform_18(%arg0: i32, %arg1: i32) -> (i32, i32) {
    %c0_i32 = arith.constant 0 : i32
    %c0_i32_0 = arith.constant 0 : i32
    %c0_i32_1 = arith.constant 0 : i32
    return %c0_i32, %c0_i32_0 : i32, i32
  }
  func.func @transform_19(%arg0: i32, %arg1: i32) -> (i32, i32, i32) {
    %c0_i32 = arith.constant 0 : i32
    %c0_i32_0 = arith.constant 0 : i32
    %c0_i32_1 = arith.constant 0 : i32
    return %arg0, %c0_i32, %c0_i32_0 : i32, i32, i32
  }
}

</mosaic_0001>

<llo_original>
// kernel: vision_encoder_forward.1
$region0: #{vision_encoder_forward.1}
  #allocation0 [shape = 'u32[]', space=smem, size = 0x4, offset = 0x4, fixed_abs, tag = 'smem constant byte address 0x4 - core index']
  #allocation1 [shape = 'u32[144,128]{1,0:T(1,128)}', space=vmem, size = 0x12000, scoped, tag = 'internal scratch']
  #allocation2 [shape = 'f32[12,32]{1,0:T(8,128)}', space=vmem, size = 0x2000, scoped, tag = 'scratch operand']
  %s0 = inlined_call_operand.vmem [shape: f32[2,12,32], index: 0, kind: input, shape index: {}]
  %s1 = inlined_call_operand.vmem [shape: f32[2,3,4,32], index: 1, kind: input, shape index: {}]
  %s2 = inlined_call_operand.vmem [shape: f32[1,32], index: 2, kind: input, shape index: {}]
  %s3 = inlined_call_operand.vmem [shape: f32[1,32], index: 3, kind: input, shape index: {}]
  %s4 = inlined_call_operand.vmem [shape: f32[3,1,32], index: 4, kind: input, shape index: {}]
  %s5 = inlined_call_operand.vmem [shape: f32[3,1,32], index: 5, kind: input, shape index: {}]
  %s6 = inlined_call_operand.vmem [shape: bf16[3,32,96], index: 6, kind: input, shape index: {}]
  %s7 = inlined_call_operand.vmem [shape: f32[3,1,96], index: 7, kind: input, shape index: {}]
  %s8 = inlined_call_operand.vmem [shape: bf16[3,32,32], index: 8, kind: input, shape index: {}]
  %s9 = inlined_call_operand.vmem [shape: f32[3,1,32], index: 9, kind: input, shape index: {}]
  %s10 = inlined_call_operand.vmem [shape: f32[3,1,32], index: 10, kind: input, shape index: {}]
  %s11 = inlined_call_operand.vmem [shape: f32[3,1,32], index: 11, kind: input, shape index: {}]
  %s12 = inlined_call_operand.vmem [shape: bf16[3,32,128], index: 12, kind: input, shape index: {}]
  %s13 = inlined_call_operand.vmem [shape: f32[3,1,128], index: 13, kind: input, shape index: {}]
  %s14 = inlined_call_operand.vmem [shape: bf16[3,128,32], index: 14, kind: input, shape index: {}]
  %s15 = inlined_call_operand.vmem [shape: f32[3,1,32], index: 15, kind: input, shape index: {}]
  %s16 = inlined_call_operand.vmem [shape: f32[1,32], index: 16, kind: input, shape index: {}]
  %s17 = inlined_call_operand.vmem [shape: f32[1,32], index: 17, kind: input, shape index: {}]
  %s18 = inlined_call_operand.vmem [shape: bf16[32,16], index: 18, kind: input, shape index: {}]
  %s19 = inlined_call_operand.hbm [shape: f32[2,1,16], index: 19, kind: output, shape index: {}]
  %s20 = sld [smem:[#allocation0]]
  $region121: #{vision_encoder_forward.1} parent=0
    _
  %s22 = ssub.s32 1, %s20
  %s23 = scalar_select 0, %s22, %s20
  $region1: #{vision_encoder_forward.1} parent=0
    #allocation3 [shape = 'u8[1024]{0}', space=vmem, size = 0x400, scoped, tag = 'output window, operand 0']
    #allocation4 [shape = 's32[2]{0}', space=sflag, size = 0x8, scoped, tag = 'scoped memory for vision_encoder_forward.1']
    %24 = vsyncpa [#allocation4], 0
    %s25 = scalar_lea.sflag [#allocation4], 1
    %26 = vsyncpa %s25, 0
    loop: start=0, step=1, limit=8
    $region2: #{vision_encoder_forward.1} parent=1 // loop_pre_header
      _
    $region3: #{vision_encoder_forward.1} parent=1 // loop_header
      %s28 = sphi 0, %s32
      %p29 = scmp.ge.s32.totalorder %s28, 8
      %s35 = sphi 0, %s47
      %s36 = sphi 0, %s43
      %s37 = sphi 0, %s35
      %s38 = sphi 0, %s36
      %s39 = sphi 0, %s37
      %s40 = sphi 0, %s38
      %s50 = sphi 0, %s52
      %s53 = sphi 0, %s50
      %s54 = sphi 0, %s53
      %s70 = sphi 0, %s54
      %s78 = sphi 0, %s80
      %s81 = sphi 0, %s78
      %s82 = sphi 0, %s81
      %s98 = sphi 0, %s82
      %s102 = sphi 0, %s102
      %s104 = sphi 0, %s102
      %s105 = sphi 0, %s104
      %s119 = sphi 0, %s105
      %s123 = sphi 0, %s123
      %s125 = sphi 0, %s123
      %s126 = sphi 0, %s125
      %s140 = sphi 0, %s126
      %s146 = sphi 0, %s148
      %s149 = sphi 0, %s146
      %s150 = sphi 0, %s149
      %s166 = sphi 0, %s150
      %s172 = sphi 0, %s174
      %s175 = sphi 0, %s172
      %s176 = sphi 0, %s175
      %s192 = sphi 0, %s176
      %s198 = sphi 0, %s200
      %s201 = sphi 0, %s198
      %s202 = sphi 0, %s201
      %s218 = sphi 0, %s202
      %s224 = sphi 0, %s226
      %s227 = sphi 0, %s224
      %s228 = sphi 0, %s227
      %s244 = sphi 0, %s228
      %s250 = sphi 0, %s252
      %s253 = sphi 0, %s250
      %s254 = sphi 0, %s253
      %s270 = sphi 0, %s254
      %s276 = sphi 0, %s278
      %s279 = sphi 0, %s276
      %s280 = sphi 0, %s279
      %s296 = sphi 0, %s280
      %s302 = sphi 0, %s304
      %s305 = sphi 0, %s302
      %s306 = sphi 0, %s305
      %s322 = sphi 0, %s306
      %s328 = sphi 0, %s330
      %s331 = sphi 0, %s328
      %s332 = sphi 0, %s331
      %s348 = sphi 0, %s332
      %s354 = sphi 0, %s356
      %s357 = sphi 0, %s354
      %s358 = sphi 0, %s357
      %s374 = sphi 0, %s358
      %s380 = sphi 0, %s382
      %s383 = sphi 0, %s380
      %s384 = sphi 0, %s383
      %s400 = sphi 0, %s384
      %s406 = sphi 0, %s408
      %s409 = sphi 0, %s406
      %s410 = sphi 0, %s409
      %s426 = sphi 0, %s410
      %s432 = sphi 0, %s434
      %s435 = sphi 0, %s432
      %s436 = sphi 0, %s435
      %s452 = sphi 0, %s436
      %s456 = sphi 0, %s456
      %s458 = sphi 0, %s456
      %s459 = sphi 0, %s458
      %s473 = sphi 0, %s459
      %s477 = sphi 0, %s477
      %s479 = sphi 0, %s477
      %s480 = sphi 0, %s479
      %s494 = sphi 0, %s480
      %s498 = sphi 0, %s498
      %s500 = sphi 0, %s498
      %s501 = sphi 0, %s500
      %s515 = sphi 0, %s501
      %s521 = sphi 0, %s523
      %s524 = sphi 0, %s521
      %s525 = sphi 0, %s524
      %s541 = sphi 0, %s525
    $region4: #{vision_encoder_forward.1} parent=1 // loop_header_branch
      %31 = sbr.rel (%p29) target = $region8
    $region5: #{vision_encoder_forward.1} parent=1 // loop_body
      %s33 = ssub.s32 %s28, 1
      %s34 = ssub.s32 %s28, 2
      %s41 = sadd.s32 1, %s36
      %p42 = scmp.ge.s32.totalorder %s41, 3
      %s43 = scalar_select %p42, 0, %s41
      %s44 = sadd.s32 1, %s35
      %s45 = scalar_select %p42, %s44, %s35
      %p46 = scmp.ge.s32.totalorder %s45, 2
      %s47 = scalar_select %p46, 0, %s45
      %s48 = ssub.s32 %s35, %s47
      %p49 = scmp.eq.s32.totalorder %s48, 0
      %s51 = sadd.s32 %s50, 1
      %s52 = scalar_select %p49, %s50, %s51
      %p55 = pneg %p49
      %p56 = scmp.eq.s32.totalorder %s28, 5
      %p57 = por %p55, %p56
      %p58 = scmp.ne.s32.totalorder %s50, %s53
      %p59 = scmp.eq.s32.totalorder %s28, 0
      %p60 = por %p58, %p59
      %p61 = scmp.ne.s32.totalorder %s50, %s53
      %p62 = scmp.eq.s32.totalorder %s33, 5
      %p63 = por %p61, %p62
      %p64 = scmp.ne.s32.totalorder %s53, %s54
      %p65 = scmp.eq.s32.totalorder %s33, 0
      %p66 = por %p64, %p65
      %p67 = scmp.ne.s32.totalorder %s53, %s54
      %p68 = scmp.eq.s32.totalorder %s34, 5
      %p69 = por %p67, %p68
      %p71 = scmp.ne.s32.totalorder %s54, %s70
      %p72 = scmp.eq.s32.totalorder %s34, 0
      %p73 = por %p71, %p72
      %s74 = ssub.s32 %s35, %s47
      %s75 = ssub.s32 %s36, %s43
      %s76 = sor.u32 %s74, %s75
      %p77 = scmp.eq.s32.totalorder %s76, 0
      %s79 = sadd.s32 %s78, 1
      %s80 = scalar_select %p77, %s78, %s79
      %p83 = pneg %p77
      %p84 = scmp.eq.s32.totalorder %s28, 5
      %p85 = por %p83, %p84
      %p86 = scmp.ne.s32.totalorder %s78, %s81
      %p87 = scmp.eq.s32.totalorder %s28, 0
      %p88 = por %p86, %p87
      %p89 = scmp.ne.s32.totalorder %s78, %s81
      %p90 = scmp.eq.s32.totalorder %s33, 5
      %p91 = por %p89, %p90
      %p92 = scmp.ne.s32.totalorder %s81, %s82
      %p93 = scmp.eq.s32.totalorder %s33, 0
      %p94 = por %p92, %p93
      %p95 = scmp.ne.s32.totalorder %s81, %s82
      %p96 = scmp.eq.s32.totalorder %s34, 5
      %p97 = por %p95, %p96
      %p99 = scmp.ne.s32.totalorder %s82, %s98
      %p100 = scmp.eq.s32.totalorder %s34, 0
      %p101 = por %p99, %p100
      %s103 = sadd.s32 %s102, 1
      %p106 = scmp.eq.s32.totalorder %s28, 5
      %p107 = scmp.ne.s32.totalorder %s102, %s104
      %p108 = scmp.eq.s32.totalorder %s28, 0
      %p109 = por %p107, %p108
      %p110 = scmp.ne.s32.totalorder %s102, %s104
      %p111 = scmp.eq.s32.totalorder %s33, 5
      %p112 = por %p110, %p111
      %p113 = scmp.ne.s32.totalorder %s104, %s105
      %p114 = scmp.eq.s32.totalorder %s33, 0
      %p115 = por %p113, %p114
      %p116 = scmp.ne.s32.totalorder %s104, %s105
      %p117 = scmp.eq.s32.totalorder %s34, 5
      %p118 = por %p116, %p117
      %p120 = scmp.ne.s32.totalorder %s105, %s119
      %p121 = scmp.eq.s32.totalorder %s34, 0
      %p122 = por %p120, %p121
      %s124 = sadd.s32 %s123, 1
      %p127 = scmp.eq.s32.totalorder %s28, 5
      %p128 = scmp.ne.s32.totalorder %s123, %s125
      %p129 = scmp.eq.s32.totalorder %s28, 0
      %p130 = por %p128, %p129
      %p131 = scmp.ne.s32.totalorder %s123, %s125
      %p132 = scmp.eq.s32.totalorder %s33, 5
      %p133 = por %p131, %p132
      %p134 = scmp.ne.s32.totalorder %s125, %s126
      %p135 = scmp.eq.s32.totalorder %s33, 0
      %p136 = por %p134, %p135
      %p137 = scmp.ne.s32.totalorder %s125, %s126
      %p138 = scmp.eq.s32.totalorder %s34, 5
      %p139 = por %p137, %p138
      %p141 = scmp.ne.s32.totalorder %s126, %s140
      %p142 = scmp.eq.s32.totalorder %s34, 0
      %p143 = por %p141, %p142
      %s144 = ssub.s32 %s36, %s43
      %p145 = scmp.eq.s32.totalorder %s144, 0
      %s147 = sadd.s32 %s146, 1
      %s148 = scalar_select %p145, %s146, %s147
      %p151 = pneg %p145
      %p152 = scmp.eq.s32.totalorder %s28, 5
      %p153 = por %p151, %p152
      %p154 = scmp.ne.s32.totalorder %s146, %s149
      %p155 = scmp.eq.s32.totalorder %s28, 0
      %p156 = por %p154, %p155
      %p157 = scmp.ne.s32.totalorder %s146, %s149
      %p158 = scmp.eq.s32.totalorder %s33, 5
      %p159 = por %p157, %p158
      %p160 = scmp.ne.s32.totalorder %s149, %s150
      %p161 = scmp.eq.s32.totalorder %s33, 0
      %p162 = por %p160, %p161
      %p163 = scmp.ne.s32.totalorder %s149, %s150
      %p164 = scmp.eq.s32.totalorder %s34, 5
      %p165 = por %p163, %p164
      %p167 = scmp.ne.s32.totalorder %s150, %s166
      %p168 = scmp.eq.s32.totalorder %s34, 0
      %p169 = por %p167, %p168
      %s170 = ssub.s32 %s36, %s43
      %p171 = scmp.eq.s32.totalorder %s170, 0
      %s173 = sadd.s32 %s172, 1
      %s174 = scalar_select %p171, %s172, %s173
      %p177 = pneg %p171
      %p178 = scmp.eq.s32.totalorder %s28, 5
      %p179 = por %p177, %p178
      %p180 = scmp.ne.s32.totalorder %s172, %s175
      %p181 = scmp.eq.s32.totalorder %s28, 0
      %p182 = por %p180, %p181
      %p183 = scmp.ne.s32.totalorder %s172, %s175
      %p184 = scmp.eq.s32.totalorder %s33, 5
      %p185 = por %p183, %p184
      %p186 = scmp.ne.s32.totalorder %s175, %s176
      %p187 = scmp.eq.s32.totalorder %s33, 0
      %p188 = por %p186, %p187
      %p189 = scmp.ne.s32.totalorder %s175, %s176
      %p190 = scmp.eq.s32.totalorder %s34, 5
      %p191 = por %p189, %p190
      %p193 = scmp.ne.s32.totalorder %s176, %s192
      %p194 = scmp.eq.s32.totalorder %s34, 0
      %p195 = por %p193, %p194
      %s196 = ssub.s32 %s36, %s43
      %p197 = scmp.eq.s32.totalorder %s196, 0
      %s199 = sadd.s32 %s198, 1
      %s200 = scalar_select %p197, %s198, %s199
      %p203 = pneg %p197
      %p204 = scmp.eq.s32.totalorder %s28, 5
      %p205 = por %p203, %p204
      %p206 = scmp.ne.s32.totalorder %s198, %s201
      %p207 = scmp.eq.s32.totalorder %s28, 0
      %p208 = por %p206, %p207
      %p209 = scmp.ne.s32.totalorder %s198, %s201
      %p210 = scmp.eq.s32.totalorder %s33, 5
      %p211 = por %p209, %p210
      %p212 = scmp.ne.s32.totalorder %s201, %s202
      %p213 = scmp.eq.s32.totalorder %s33, 0
      %p214 = por %p212, %p213
      %p215 = scmp.ne.s32.totalorder %s201, %s202
      %p216 = scmp.eq.s32.totalorder %s34, 5
      %p217 = por %p215, %p216
      %p219 = scmp.ne.s32.totalorder %s202, %s218
      %p220 = scmp.eq.s32.totalorder %s34, 0
      %p221 = por %p219, %p220
      %s222 = ssub.s32 %s36, %s43
      %p223 = scmp.eq.s32.totalorder %s222, 0
      %s225 = sadd.s32 %s224, 1
      %s226 = scalar_select %p223, %s224, %s225
      %p229 = pneg %p223
      %p230 = scmp.eq.s32.totalorder %s28, 5
      %p231 = por %p229, %p230
      %p232 = scmp.ne.s32.totalorder %s224, %s227
      %p233 = scmp.eq.s32.totalorder %s28, 0
      %p234 = por %p232, %p233
      %p235 = scmp.ne.s32.totalorder %s224, %s227
      %p236 = scmp.eq.s32.totalorder %s33, 5
      %p237 = por %p235, %p236
      %p238 = scmp.ne.s32.totalorder %s227, %s228
      %p239 = scmp.eq.s32.totalorder %s33, 0
      %p240 = por %p238, %p239
      %p241 = scmp.ne.s32.totalorder %s227, %s228
      %p242 = scmp.eq.s32.totalorder %s34, 5
      %p243 = por %p241, %p242
      %p245 = scmp.ne.s32.totalorder %s228, %s244
      %p246 = scmp.eq.s32.totalorder %s34, 0
      %p247 = por %p245, %p246
      %s248 = ssub.s32 %s36, %s43
      %p249 = scmp.eq.s32.totalorder %s248, 0
      %s251 = sadd.s32 %s250, 1
      %s252 = scalar_select %p249, %s250, %s251
      %p255 = pneg %p249
      %p256 = scmp.eq.s32.totalorder %s28, 5
      %p257 = por %p255, %p256
      %p258 = scmp.ne.s32.totalorder %s250, %s253
      %p259 = scmp.eq.s32.totalorder %s28, 0
      %p260 = por %p258, %p259
      %p261 = scmp.ne.s32.totalorder %s250, %s253
      %p262 = scmp.eq.s32.totalorder %s33, 5
      %p263 = por %p261, %p262
      %p264 = scmp.ne.s32.totalorder %s253, %s254
      %p265 = scmp.eq.s32.totalorder %s33, 0
      %p266 = por %p264, %p265
      %p267 = scmp.ne.s32.totalorder %s253, %s254
      %p268 = scmp.eq.s32.totalorder %s34, 5
      %p269 = por %p267, %p268
      %p271 = scmp.ne.s32.totalorder %s254, %s270
      %p272 = scmp.eq.s32.totalorder %s34, 0
      %p273 = por %p271, %p272
      %s274 = ssub.s32 %s36, %s43
      %p275 = scmp.eq.s32.totalorder %s274, 0
      %s277 = sadd.s32 %s276, 1
      %s278 = scalar_select %p275, %s276, %s277
      %p281 = pneg %p275
      %p282 = scmp.eq.s32.totalorder %s28, 5
      %p283 = por %p281, %p282
      %p284 = scmp.ne.s32.totalorder %s276, %s279
      %p285 = scmp.eq.s32.totalorder %s28, 0
      %p286 = por %p284, %p285
      %p287 = scmp.ne.s32.totalorder %s276, %s279
      %p288 = scmp.eq.s32.totalorder %s33, 5
      %p289 = por %p287, %p288
      %p290 = scmp.ne.s32.totalorder %s279, %s280
      %p291 = scmp.eq.s32.totalorder %s33, 0
      %p292 = por %p290, %p291
      %p293 = scmp.ne.s32.totalorder %s279, %s280
      %p294 = scmp.eq.s32.totalorder %s34, 5
      %p295 = por %p293, %p294
      %p297 = scmp.ne.s32.totalorder %s280, %s296
      %p298 = scmp.eq.s32.totalorder %s34, 0
      %p299 = por %p297, %p298
      %s300 = ssub.s32 %s36, %s43
      %p301 = scmp.eq.s32.totalorder %s300, 0
      %s303 = sadd.s32 %s302, 1
      %s304 = scalar_select %p301, %s302, %s303
      %p307 = pneg %p301
      %p308 = scmp.eq.s32.totalorder %s28, 5
      %p309 = por %p307, %p308
      %p310 = scmp.ne.s32.totalorder %s302, %s305
      %p311 = scmp.eq.s32.totalorder %s28, 0
      %p312 = por %p310, %p311
      %p313 = scmp.ne.s32.totalorder %s302, %s305
      %p314 = scmp.eq.s32.totalorder %s33, 5
      %p315 = por %p313, %p314
      %p316 = scmp.ne.s32.totalorder %s305, %s306
      %p317 = scmp.eq.s32.totalorder %s33, 0
      %p318 = por %p316, %p317
      %p319 = scmp.ne.s32.totalorder %s305, %s306
      %p320 = scmp.eq.s32.totalorder %s34, 5
      %p321 = por %p319, %p320
      %p323 = scmp.ne.s32.totalorder %s306, %s322
      %p324 = scmp.eq.s32.totalorder %s34, 0
      %p325 = por %p323, %p324
      %s326 = ssub.s32 %s36, %s43
      %p327 = scmp.eq.s32.totalorder %s326, 0
      %s329 = sadd.s32 %s328, 1
      %s330 = scalar_select %p327, %s328, %s329
      %p333 = pneg %p327
      %p334 = scmp.eq.s32.totalorder %s28, 5
      %p335 = por %p333, %p334
      %p336 = scmp.ne.s32.totalorder %s328, %s331
      %p337 = scmp.eq.s32.totalorder %s28, 0
      %p338 = por %p336, %p337
      %p339 = scmp.ne.s32.totalorder %s328, %s331
      %p340 = scmp.eq.s32.totalorder %s33, 5
      %p341 = por %p339, %p340
      %p342 = scmp.ne.s32.totalorder %s331, %s332
      %p343 = scmp.eq.s32.totalorder %s33, 0
      %p344 = por %p342, %p343
      %p345 = scmp.ne.s32.totalorder %s331, %s332
      %p346 = scmp.eq.s32.totalorder %s34, 5
      %p347 = por %p345, %p346
      %p349 = scmp.ne.s32.totalorder %s332, %s348
      %p350 = scmp.eq.s32.totalorder %s34, 0
      %p351 = por %p349, %p350
      %s352 = ssub.s32 %s36, %s43
      %p353 = scmp.eq.s32.totalorder %s352, 0
      %s355 = sadd.s32 %s354, 1
      %s356 = scalar_select %p353, %s354, %s355
      %p359 = pneg %p353
      %p360 = scmp.eq.s32.totalorder %s28, 5
      %p361 = por %p359, %p360
      %p362 = scmp.ne.s32.totalorder %s354, %s357
      %p363 = scmp.eq.s32.totalorder %s28, 0
      %p364 = por %p362, %p363
      %p365 = scmp.ne.s32.totalorder %s354, %s357
      %p366 = scmp.eq.s32.totalorder %s33, 5
      %p367 = por %p365, %p366
      %p368 = scmp.ne.s32.totalorder %s357, %s358
      %p369 = scmp.eq.s32.totalorder %s33, 0
      %p370 = por %p368, %p369
      %p371 = scmp.ne.s32.totalorder %s357, %s358
      %p372 = scmp.eq.s32.totalorder %s34, 5
      %p373 = por %p371, %p372
      %p375 = scmp.ne.s32.totalorder %s358, %s374
      %p376 = scmp.eq.s32.totalorder %s34, 0
      %p377 = por %p375, %p376
      %s378 = ssub.s32 %s36, %s43
      %p379 = scmp.eq.s32.totalorder %s378, 0
      %s381 = sadd.s32 %s380, 1
      %s382 = scalar_select %p379, %s380, %s381
      %p385 = pneg %p379
      %p386 = scmp.eq.s32.totalorder %s28, 5
      %p387 = por %p385, %p386
      %p388 = scmp.ne.s32.totalorder %s380, %s383
      %p389 = scmp.eq.s32.totalorder %s28, 0
      %p390 = por %p388, %p389
      %p391 = scmp.ne.s32.totalorder %s380, %s383
      %p392 = scmp.eq.s32.totalorder %s33, 5
      %p393 = por %p391, %p392
      %p394 = scmp.ne.s32.totalorder %s383, %s384
      %p395 = scmp.eq.s32.totalorder %s33, 0
      %p396 = por %p394, %p395
      %p397 = scmp.ne.s32.totalorder %s383, %s384
      %p398 = scmp.eq.s32.totalorder %s34, 5
      %p399 = por %p397, %p398
      %p401 = scmp.ne.s32.totalorder %s384, %s400
      %p402 = scmp.eq.s32.totalorder %s34, 0
      %p403 = por %p401, %p402
      %s404 = ssub.s32 %s36, %s43
      %p405 = scmp.eq.s32.totalorder %s404, 0
      %s407 = sadd.s32 %s406, 1
      %s408 = scalar_select %p405, %s406, %s407
      %p411 = pneg %p405
      %p412 = scmp.eq.s32.totalorder %s28, 5
      %p413 = por %p411, %p412
      %p414 = scmp.ne.s32.totalorder %s406, %s409
      %p415 = scmp.eq.s32.totalorder %s28, 0
      %p416 = por %p414, %p415
      %p417 = scmp.ne.s32.totalorder %s406, %s409
      %p418 = scmp.eq.s32.totalorder %s33, 5
      %p419 = por %p417, %p418
      %p420 = scmp.ne.s32.totalorder %s409, %s410
      %p421 = scmp.eq.s32.totalorder %s33, 0
      %p422 = por %p420, %p421
      %p423 = scmp.ne.s32.totalorder %s409, %s410
      %p424 = scmp.eq.s32.totalorder %s34, 5
      %p425 = por %p423, %p424
      %p427 = scmp.ne.s32.totalorder %s410, %s426
      %p428 = scmp.eq.s32.totalorder %s34, 0
      %p429 = por %p427, %p428
      %s430 = ssub.s32 %s36, %s43
      %p431 = scmp.eq.s32.totalorder %s430, 0
      %s433 = sadd.s32 %s432, 1
      %s434 = scalar_select %p431, %s432, %s433
      %p437 = pneg %p431
      %p438 = scmp.eq.s32.totalorder %s28, 5
      %p439 = por %p437, %p438
      %p440 = scmp.ne.s32.totalorder %s432, %s435
      %p441 = scmp.eq.s32.totalorder %s28, 0
      %p442 = por %p440, %p441
      %p443 = scmp.ne.s32.totalorder %s432, %s435
      %p444 = scmp.eq.s32.totalorder %s33, 5
      %p445 = por %p443, %p444
      %p446 = scmp.ne.s32.totalorder %s435, %s436
      %p447 = scmp.eq.s32.totalorder %s33, 0
      %p448 = por %p446, %p447
      %p449 = scmp.ne.s32.totalorder %s435, %s436
      %p450 = scmp.eq.s32.totalorder %s34, 5
      %p451 = por %p449, %p450
      %p453 = scmp.ne.s32.totalorder %s436, %s452
      %p454 = scmp.eq.s32.totalorder %s34, 0
      %p455 = por %p453, %p454
      %s457 = sadd.s32 %s456, 1
      %p460 = scmp.eq.s32.totalorder %s28, 5
      %p461 = scmp.ne.s32.totalorder %s456, %s458
      %p462 = scmp.eq.s32.totalorder %s28, 0
      %p463 = por %p461, %p462
      %p464 = scmp.ne.s32.totalorder %s456, %s458
      %p465 = scmp.eq.s32.totalorder %s33, 5
      %p466 = por %p464, %p465
      %p467 = scmp.ne.s32.totalorder %s458, %s459
      %p468 = scmp.eq.s32.totalorder %s33, 0
      %p469 = por %p467, %p468
      %p470 = scmp.ne.s32.totalorder %s458, %s459
      %p471 = scmp.eq.s32.totalorder %s34, 5
      %p472 = por %p470, %p471
      %p474 = scmp.ne.s32.totalorder %s459, %s473
      %p475 = scmp.eq.s32.totalorder %s34, 0
      %p476 = por %p474, %p475
      %s478 = sadd.s32 %s477, 1
      %p481 = scmp.eq.s32.totalorder %s28, 5
      %p482 = scmp.ne.s32.totalorder %s477, %s479
      %p483 = scmp.eq.s32.totalorder %s28, 0
      %p484 = por %p482, %p483
      %p485 = scmp.ne.s32.totalorder %s477, %s479
      %p486 = scmp.eq.s32.totalorder %s33, 5
      %p487 = por %p485, %p486
      %p488 = scmp.ne.s32.totalorder %s479, %s480
      %p489 = scmp.eq.s32.totalorder %s33, 0
      %p490 = por %p488, %p489
      %p491 = scmp.ne.s32.totalorder %s479, %s480
      %p492 = scmp.eq.s32.totalorder %s34, 5
      %p493 = por %p491, %p492
      %p495 = scmp.ne.s32.totalorder %s480, %s494
      %p496 = scmp.eq.s32.totalorder %s34, 0
      %p497 = por %p495, %p496
      %s499 = sadd.s32 %s498, 1
      %p502 = scmp.eq.s32.totalorder %s28, 5
      %p503 = scmp.ne.s32.totalorder %s498, %s500
      %p504 = scmp.eq.s32.totalorder %s28, 0
      %p505 = por %p503, %p504
      %p506 = scmp.ne.s32.totalorder %s498, %s500
      %p507 = scmp.eq.s32.totalorder %s33, 5
      %p508 = por %p506, %p507
      %p509 = scmp.ne.s32.totalorder %s500, %s501
      %p510 = scmp.eq.s32.totalorder %s33, 0
      %p511 = por %p509, %p510
      %p512 = scmp.ne.s32.totalorder %s500, %s501
      %p513 = scmp.eq.s32.totalorder %s34, 5
      %p514 = por %p512, %p513
      %p516 = scmp.ne.s32.totalorder %s501, %s515
      %p517 = scmp.eq.s32.totalorder %s34, 0
      %p518 = por %p516, %p517
      %s519 = ssub.s32 %s35, %s47
      %p520 = scmp.eq.s32.totalorder %s519, 0
      %s522 = sadd.s32 %s521, 1
      %s523 = scalar_select %p520, %s521, %s522
      %p526 = pneg %p520
      %p527 = scmp.eq.s32.totalorder %s28, 5
      %p528 = por %p526, %p527
      %p529 = scmp.ne.s32.totalorder %s521, %s524
      %p530 = scmp.eq.s32.totalorder %s28, 0
      %p531 = por %p529, %p530
      %p532 = scmp.ne.s32.totalorder %s521, %s524
      %p533 = scmp.eq.s32.totalorder %s33, 5
      %p534 = por %p532, %p533
      %p535 = scmp.ne.s32.totalorder %s524, %s525
      %p536 = scmp.eq.s32.totalorder %s33, 0
      %p537 = por %p535, %p536
      %p538 = scmp.ne.s32.totalorder %s524, %s525
      %p539 = scmp.eq.s32.totalorder %s34, 5
      %p540 = por %p538, %p539
      %p542 = scmp.ne.s32.totalorder %s525, %s541
      %p543 = scmp.eq.s32.totalorder %s34, 0
      %p544 = por %p542, %p543
      %p545 = scmp.le.s32.totalorder 1, %s28
      %p546 = scmp.lt.s32.totalorder %s28, 7
      %p547 = pnand %p545, %p546
      %p548 = pneg %p547
      // Predicated region
      $region9: #{vision_encoder_forward.1} parent=5 // pred_check
        _
      $region10: #{vision_encoder_forward.1} parent=5 // pred_check_branch
        %550 = sbr.rel (%p547) target = $region12
      $region11: #{vision_encoder_forward.1} parent=5 // pred_region
        %s551 = ssub.s32 %s28, 1
        // Predicated region
        $region13: #{vision_encoder_forward.1} parent=11 // pred_check
          %p552 = pneg %p115
        $region14: #{vision_encoder_forward.1} parent=11 // pred_check_branch
          %554 = sbr.rel (%p552) target = $region16
        $region15: #{vision_encoder_forward.1} parent=11 // pred_region
          _
        $region16: #{vision_encoder_forward.1} parent=11 // pred_fallthru
          _
        // Predicated region
        $region17: #{vision_encoder_forward.1} parent=11 // pred_check
          %p555 = pneg %p136
        $region18: #{vision_encoder_forward.1} parent=11 // pred_check_branch
          %557 = sbr.rel (%p555) target = $region20
        $region19: #{vision_encoder_forward.1} parent=11 // pred_region
          _
        $region20: #{vision_encoder_forward.1} parent=11 // pred_fallthru
          _
        // Predicated region
        $region21: #{vision_encoder_forward.1} parent=11 // pred_check
          %p558 = pneg %p469
        $region22: #{vision_encoder_forward.1} parent=11 // pred_check_branch
          %560 = sbr.rel (%p558) target = $region24
        $region23: #{vision_encoder_forward.1} parent=11 // pred_region
          _
        $region24: #{vision_encoder_forward.1} parent=11 // pred_fallthru
          _
        // Predicated region
        $region25: #{vision_encoder_forward.1} parent=11 // pred_check
          %p561 = pneg %p490
        $region26: #{vision_encoder_forward.1} parent=11 // pred_check_branch
          %563 = sbr.rel (%p561) target = $region28
        $region27: #{vision_encoder_forward.1} parent=11 // pred_region
          _
        $region28: #{vision_encoder_forward.1} parent=11 // pred_fallthru
          _
        // Predicated region
        $region29: #{vision_encoder_forward.1} parent=11 // pred_check
          %p564 = pneg %p511
        $region30: #{vision_encoder_forward.1} parent=11 // pred_check_branch
          %566 = sbr.rel (%p564) target = $region32
        $region31: #{vision_encoder_forward.1} parent=11 // pred_region
          _
        $region32: #{vision_encoder_forward.1} parent=11 // pred_fallthru
          _
      $region12: #{vision_encoder_forward.1} parent=5 // pred_fallthru
        _
      %p567 = scmp.lt.s32.totalorder %s28, 6
      // Predicated region
      $region33: #{vision_encoder_forward.1} parent=5 // pred_check
        %p568 = pneg %p567
      $region34: #{vision_encoder_forward.1} parent=5 // pred_check_branch
        %570 = sbr.rel (%p568) target = $region36
      $region35: #{vision_encoder_forward.1} parent=5 // pred_region
        // Predicated region
        $region37: #{vision_encoder_forward.1} parent=35 // pred_check
          %p571 = pneg %p60
        $region38: #{vision_encoder_forward.1} parent=35 // pred_check_branch
          %573 = sbr.rel (%p571) target = $region40
        $region39: #{vision_encoder_forward.1} parent=35 // pred_region
          %p574 = scmp.lt.s32.totalorder %s35, 1
          %s575 = scalar_select %p574, %s35, 1
          %s576 = smul.addr %s575, 2
          %s577 = smul.addr %s576, 8
          %s578 = scalar_lea.vmem %s0, %s577
        $region40: #{vision_encoder_forward.1} parent=35 // pred_fallthru
          _
        // Predicated region
        $region41: #{vision_encoder_forward.1} parent=35 // pred_check
          %p579 = pneg %p88
        $region42: #{vision_encoder_forward.1} parent=35 // pred_check_branch
          %581 = sbr.rel (%p579) target = $region44
        $region43: #{vision_encoder_forward.1} parent=35 // pred_region
          %p582 = scmp.lt.s32.totalorder %s35, 1
          %s583 = scalar_select %p582, %s35, 1
          %p584 = scmp.lt.s32.totalorder %s36, 2
          %s585 = scalar_select %p584, %s36, 2
          %s586 = smul.addr %s583, 3
          %s587 = sadd.s32 %s585, %s586
          %s588 = smul.addr %s587, 4
          %s589 = scalar_lea.vmem %s1, %s588
        $region44: #{vision_encoder_forward.1} parent=35 // pred_fallthru
          _
        // Predicated region
        $region45: #{vision_encoder_forward.1} parent=35 // pred_check
          %p590 = pneg %p156
        $region46: #{vision_encoder_forward.1} parent=35 // pred_check_branch
          %592 = sbr.rel (%p590) target = $region48
        $region47: #{vision_encoder_forward.1} parent=35 // pred_region
          %p593 = scmp.lt.s32.totalorder %s36, 2
          %s594 = scalar_select %p593, %s36, 2
          %s595 = scalar_lea.vmem %s4, %s594
        $region48: #{vision_encoder_forward.1} parent=35 // pred_fallthru
          _
        // Predicated region
        $region49: #{vision_encoder_forward.1} parent=35 // pred_check
          %p596 = pneg %p182
        $region50: #{vision_encoder_forward.1} parent=35 // pred_check_branch
          %598 = sbr.rel (%p596) target = $region52
        $region51: #{vision_encoder_forward.1} parent=35 // pred_region
          %p599 = scmp.lt.s32.totalorder %s36, 2
          %s600 = scalar_select %p599, %s36, 2
          %s601 = scalar_lea.vmem %s5, %s600
        $region52: #{vision_encoder_forward.1} parent=35 // pred_fallthru
          _
        // Predicated region
        $region53: #{vision_encoder_forward.1} parent=35 // pred_check
          %p602 = pneg %p208
        $region54: #{vision_encoder_forward.1} parent=35 // pred_check_branch
          %604 = sbr.rel (%p602) target = $region56
        $region55: #{vision_encoder_forward.1} parent=35 // pred_region
          %p605 = scmp.lt.s32.totalorder %s36, 2
          %s606 = scalar_select %p605, %s36, 2
          %s607 = smul.addr %s606, 4
          %s608 = smul.addr %s607, 4
          %s609 = scalar_lea.vmem %s6, %s608
        $region56: #{vision_encoder_forward.1} parent=35 // pred_fallthru
          _
        // Predicated region
        $region57: #{vision_encoder_forward.1} parent=35 // pred_check
          %p610 = pneg %p234
        $region58: #{vision_encoder_forward.1} parent=35 // pred_check_branch
          %612 = sbr.rel (%p610) target = $region60
        $region59: #{vision_encoder_forward.1} parent=35 // pred_region
          %p613 = scmp.lt.s32.totalorder %s36, 2
          %s614 = scalar_select %p613, %s36, 2
          %s615 = scalar_lea.vmem %s7, %s614
        $region60: #{vision_encoder_forward.1} parent=35 // pred_fallthru
          _
        // Predicated region
        $region61: #{vision_encoder_forward.1} parent=35 // pred_check
          %p616 = pneg %p260
        $region62: #{vision_encoder_forward.1} parent=35 // pred_check_branch
          %618 = sbr.rel (%p616) target = $region64
        $region63: #{vision_encoder_forward.1} parent=35 // pred_region
          %p619 = scmp.lt.s32.totalorder %s36, 2
          %s620 = scalar_select %p619, %s36, 2
          %s621 = smul.addr %s620, 4
          %s622 = smul.addr %s621, 4
          %s623 = scalar_lea.vmem %s8, %s622
        $region64: #{vision_encoder_forward.1} parent=35 // pred_fallthru
          _
        // Predicated region
        $region65: #{vision_encoder_forward.1} parent=35 // pred_check
          %p624 = pneg %p286
        $region66: #{vision_encoder_forward.1} parent=35 // pred_check_branch
          %626 = sbr.rel (%p624) target = $region68
        $region67: #{vision_encoder_forward.1} parent=35 // pred_region
          %p627 = scmp.lt.s32.totalorder %s36, 2
          %s628 = scalar_select %p627, %s36, 2
          %s629 = scalar_lea.vmem %s9, %s628
        $region68: #{vision_encoder_forward.1} parent=35 // pred_fallthru
          _
        // Predicated region
        $region69: #{vision_encoder_forward.1} parent=35 // pred_check
          %p630 = pneg %p312
        $region70: #{vision_encoder_forward.1} parent=35 // pred_check_branch
          %632 = sbr.rel (%p630) target = $region72
        $region71: #{vision_encoder_forward.1} parent=35 // pred_region
          %p633 = scmp.lt.s32.totalorder %s36, 2
          %s634 = scalar_select %p633, %s36, 2
          %s635 = scalar_lea.vmem %s10, %s634
        $region72: #{vision_encoder_forward.1} parent=35 // pred_fallthru
          _
        // Predicated region
        $region73: #{vision_encoder_forward.1} parent=35 // pred_check
          %p636 = pneg %p338
        $region74: #{vision_encoder_forward.1} parent=35 // pred_check_branch
          %638 = sbr.rel (%p636) target = $region76
        $region75: #{vision_encoder_forward.1} parent=35 // pred_region
          %p639 = scmp.lt.s32.totalorder %s36, 2
          %s640 = scalar_select %p639, %s36, 2
          %s641 = scalar_lea.vmem %s11, %s640
        $region76: #{vision_encoder_forward.1} parent=35 // pred_fallthru
          _
        // Predicated region
        $region77: #{vision_encoder_forward.1} parent=35 // pred_check
          %p642 = pneg %p364
        $region78: #{vision_encoder_forward.1} parent=35 // pred_check_branch
          %644 = sbr.rel (%p642) target = $region80
        $region79: #{vision_encoder_forward.1} parent=35 // pred_region
          %p645 = scmp.lt.s32.totalorder %s36, 2
          %s646 = scalar_select %p645, %s36, 2
          %s647 = smul.addr %s646, 4
          %s648 = smul.addr %s647, 4
          %s649 = scalar_lea.vmem %s12, %s648
        $region80: #{vision_encoder_forward.1} parent=35 // pred_fallthru
          _
        // Predicated region
        $region81: #{vision_encoder_forward.1} parent=35 // pred_check
          %p650 = pneg %p390
        $region82: #{vision_encoder_forward.1} parent=35 // pred_check_branch
          %652 = sbr.rel (%p650) target = $region84
        $region83: #{vision_encoder_forward.1} parent=35 // pred_region
          %p653 = scmp.lt.s32.totalorder %s36, 2
          %s654 = scalar_select %p653, %s36, 2
          %s655 = scalar_lea.vmem %s13, %s654
        $region84: #{vision_encoder_forward.1} parent=35 // pred_fallthru
          _
        // Predicated region
        $region85: #{vision_encoder_forward.1} parent=35 // pred_check
          %p656 = pneg %p416
        $region86: #{vision_encoder_forward.1} parent=35 // pred_check_branch
          %658 = sbr.rel (%p656) target = $region88
        $region87: #{vision_encoder_forward.1} parent=35 // pred_region
          %p659 = scmp.lt.s32.totalorder %s36, 2
          %s660 = scalar_select %p659, %s36, 2
          %s661 = smul.addr %s660, 16
          %s662 = smul.addr %s661, 4
          %s663 = scalar_lea.vmem %s14, %s662
        $region88: #{vision_encoder_forward.1} parent=35 // pred_fallthru
          _
        // Predicated region
        $region89: #{vision_encoder_forward.1} parent=35 // pred_check
          %p664 = pneg %p442
        $region90: #{vision_encoder_forward.1} parent=35 // pred_check_branch
          %666 = sbr.rel (%p664) target = $region92
        $region91: #{vision_encoder_forward.1} parent=35 // pred_region
          %p667 = scmp.lt.s32.totalorder %s36, 2
          %s668 = scalar_select %p667, %s36, 2
          %s669 = scalar_lea.vmem %s15, %s668
        $region92: #{vision_encoder_forward.1} parent=35 // pred_fallthru
          _
      $region36: #{vision_encoder_forward.1} parent=5 // pred_fallthru
        _
      %p670 = scmp.le.s32.totalorder 1, %s28
      %p671 = scmp.lt.s32.totalorder %s28, 7
      %p672 = pnand %p670, %p671
      %p673 = pneg %p672
      // Predicated region
      $region93: #{vision_encoder_forward.1} parent=5 // pred_check
        _
      $region94: #{vision_encoder_forward.1} parent=5 // pred_check_branch
        %675 = sbr.rel (%p672) target = $region96
      $region95: #{vision_encoder_forward.1} parent=5 // pred_region
        %s676 = ssub.s32 %s28, 1
        %p677 = scmp.lt.s32.totalorder %s37, 1
        %s678 = scalar_select %p677, %s37, 1
        %s679 = smul.addr %s678, 2
        %s680 = smul.addr %s679, 8
        %s681 = scalar_lea.vmem %s0, %s680
        %p682 = pneg %p66
        %p683 = pneg %p63
        %p684 = scmp.lt.s32.totalorder %s37, 1
        %s685 = scalar_select %p684, %s37, 1
        %p686 = scmp.lt.s32.totalorder %s38, 2
        %s687 = scalar_select %p686, %s38, 2
        %s688 = smul.addr %s685, 3
        %s689 = sadd.s32 %s687, %s688
        %s690 = smul.addr %s689, 4
        %s691 = scalar_lea.vmem %s1, %s690
        %p692 = pneg %p94
        %p693 = pneg %p91
        %p694 = pneg %p115
        %p695 = pneg %p112
        %p696 = pneg %p136
        %p697 = pneg %p133
        %p698 = scmp.lt.s32.totalorder %s38, 2
        %s699 = scalar_select %p698, %s38, 2
        %s700 = scalar_lea.vmem %s4, %s699
        %p701 = pneg %p162
        %p702 = pneg %p159
        %p703 = scmp.lt.s32.totalorder %s38, 2
        %s704 = scalar_select %p703, %s38, 2
        %s705 = scalar_lea.vmem %s5, %s704
        %p706 = pneg %p188
        %p707 = pneg %p185
        %p708 = scmp.lt.s32.totalorder %s38, 2
        %s709 = scalar_select %p708, %s38, 2
        %s710 = smul.addr %s709, 4
        %s711 = smul.addr %s710, 4
        %s712 = scalar_lea.vmem %s6, %s711
        %p713 = pneg %p214
        %p714 = pneg %p211
        %p715 = scmp.lt.s32.totalorder %s38, 2
        %s716 = scalar_select %p715, %s38, 2
        %s717 = scalar_lea.vmem %s7, %s716
        %p718 = pneg %p240
        %p719 = pneg %p237
        %p720 = scmp.lt.s32.totalorder %s38, 2
        %s721 = scalar_select %p720, %s38, 2
        %s722 = smul.addr %s721, 4
        %s723 = smul.addr %s722, 4
        %s724 = scalar_lea.vmem %s8, %s723
        %p725 = pneg %p266
        %p726 = pneg %p263
        %p727 = scmp.lt.s32.totalorder %s38, 2
        %s728 = scalar_select %p727, %s38, 2
        %s729 = scalar_lea.vmem %s9, %s728
        %p730 = pneg %p292
        %p731 = pneg %p289
        %p732 = scmp.lt.s32.totalorder %s38, 2
        %s733 = scalar_select %p732, %s38, 2
        %s734 = scalar_lea.vmem %s10, %s733
        %p735 = pneg %p318
        %p736 = pneg %p315
        %p737 = scmp.lt.s32.totalorder %s38, 2
        %s738 = scalar_select %p737, %s38, 2
        %s739 = scalar_lea.vmem %s11, %s738
        %p740 = pneg %p344
        %p741 = pneg %p341
        %p742 = scmp.lt.s32.totalorder %s38, 2
        %s743 = scalar_select %p742, %s38, 2
        %s744 = smul.addr %s743, 4
        %s745 = smul.addr %s744, 4
        %s746 = scalar_lea.vmem %s12, %s745
        %p747 = pneg %p370
        %p748 = pneg %p367
        %p749 = scmp.lt.s32.totalorder %s38, 2
        %s750 = scalar_select %p749, %s38, 2
        %s751 = scalar_lea.vmem %s13, %s750
        %p752 = pneg %p396
        %p753 = pneg %p393
        %p754 = scmp.lt.s32.totalorder %s38, 2
        %s755 = scalar_select %p754, %s38, 2
        %s756 = smul.addr %s755, 16
        %s757 = smul.addr %s756, 4
        %s758 = scalar_lea.vmem %s14, %s757
        %p759 = pneg %p422
        %p760 = pneg %p419
        %p761 = scmp.lt.s32.totalorder %s38, 2
        %s762 = scalar_select %p761, %s38, 2
        %s763 = scalar_lea.vmem %s15, %s762
        %p764 = pneg %p448
        %p765 = pneg %p445
        %p766 = pneg %p469
        %p767 = pneg %p466
        %p768 = pneg %p490
        %p769 = pneg %p487
        %p770 = pneg %p511
        %p771 = pneg %p508
        %p772 = pneg %p537
        %p773 = pneg %p534
        %s774 = sand.u32 %s524, 1
        %s775 = scalar_lea.sflag [#allocation4], %s774
        %s776 = sand.u32 %s524, 1
        %s777 = scalar_lea.vmem [#allocation3], %s776
        %p778 = scmp.lt.s32.totalorder %s37, 1
        %s779 = scalar_select %p778, %s37, 1
        %s780 = smul.addr %s779, 2
        %s781 = smul.addr %s780, 8
        %s782 = scalar_lea.vmem %s0, %s781
        %p783 = scmp.lt.s32.totalorder %s37, 1
        %s784 = scalar_select %p783, %s37, 1
        %p785 = scmp.lt.s32.totalorder %s38, 2
        %s786 = scalar_select %p785, %s38, 2
        %s787 = smul.addr %s784, 3
        %s788 = sadd.s32 %s786, %s787
        %s789 = smul.addr %s788, 4
        %s790 = scalar_lea.vmem %s1, %s789
        %p791 = scmp.lt.s32.totalorder %s38, 2
        %s792 = scalar_select %p791, %s38, 2
        %s793 = scalar_lea.vmem %s4, %s792
        %p794 = scmp.lt.s32.totalorder %s38, 2
        %s795 = scalar_select %p794, %s38, 2
        %s796 = scalar_lea.vmem %s5, %s795
        %p797 = scmp.lt.s32.totalorder %s38, 2
        %s798 = scalar_select %p797, %s38, 2
        %s799 = smul.addr %s798, 4
        %s800 = smul.addr %s799, 4
        %s801 = scalar_lea.vmem %s6, %s800
        %p802 = scmp.lt.s32.totalorder %s38, 2
        %s803 = scalar_select %p802, %s38, 2
        %s804 = scalar_lea.vmem %s7, %s803
        %p805 = scmp.lt.s32.totalorder %s38, 2
        %s806 = scalar_select %p805, %s38, 2
        %s807 = smul.addr %s806, 4
        %s808 = smul.addr %s807, 4
        %s809 = scalar_lea.vmem %s8, %s808
        %p810 = scmp.lt.s32.totalorder %s38, 2
        %s811 = scalar_select %p810, %s38, 2
        %s812 = scalar_lea.vmem %s9, %s811
        %p813 = scmp.lt.s32.totalorder %s38, 2
        %s814 = scalar_select %p813, %s38, 2
        %s815 = scalar_lea.vmem %s10, %s814
        %p816 = scmp.lt.s32.totalorder %s38, 2
        %s817 = scalar_select %p816, %s38, 2
        %s818 = scalar_lea.vmem %s11, %s817
        %p819 = scmp.lt.s32.totalorder %s38, 2
        %s820 = scalar_select %p819, %s38, 2
        %s821 = smul.addr %s820, 4
        %s822 = smul.addr %s821, 4
        %s823 = scalar_lea.vmem %s12, %s822
        %p824 = scmp.lt.s32.totalorder %s38, 2
        %s825 = scalar_select %p824, %s38, 2
        %s826 = scalar_lea.vmem %s13, %s825
        %p827 = scmp.lt.s32.totalorder %s38, 2
        %s828 = scalar_select %p827, %s38, 2
        %s829 = smul.addr %s828, 16
        %s830 = smul.addr %s829, 4
        %s831 = scalar_lea.vmem %s14, %s830
        %p832 = scmp.lt.s32.totalorder %s38, 2
        %s833 = scalar_select %p832, %s38, 2
        %s834 = scalar_lea.vmem %s15, %s833
        %p836 = scmp.eq.s32.totalorder %s38, 0
        // Predicated region
        $region97: #{vision_encoder_forward.1} parent=95 // pred_check
          %p837 = pneg %p836
        $region98: #{vision_encoder_forward.1} parent=95 // pred_check_branch
          %839 = sbr.rel (%p837) target = $region100
        $region99: #{vision_encoder_forward.1} parent=95 // pred_region
          %v840 = vld [vmem:[%s782] sm:$0xff]
          %v841 = vld [vmem:[%s782 + $0x8] sm:$0xf]
          %v842 = vld [vmem:[%s2] sm:$0x1]
          %v843 = vld [vmem:[%s3] sm:$0x1]
          %vm844 = vcmask 261120
          %v845 = vsel %vm844, %v840, 0.0
          %846 = vadd.xlane.f32.xlu0 %v845
          %v847 = vpop.xlane.xlu0 %846
          %vm848 = vcmask 257024
          %v849 = vsel %vm848, %v841, 0.0
          %850 = vadd.xlane.f32.xlu0 %v849
          %v851 = vpop.xlane.xlu0 %850
          %v852 = vrcp.pop 32.0
          %v853 = vmul.f32 %v847, %v852
          %v854 = vmul.f32 %v851, %v852
          %v855 = vsub.f32 %v840, %v853
          %v856 = vsub.f32 %v841, %v854
          %v857 = vmul.f32 %v855, %v855
          %v858 = vmul.f32 %v856, %v856
          %v859 = vsel %vm844, %v857, 0.0
          %860 = vadd.xlane.f32.xlu0 %v859
          %v861 = vpop.xlane.xlu0 %860
          %v862 = vsel %vm848, %v858, 0.0
          %863 = vadd.xlane.f32.xlu0 %v862
          %v864 = vpop.xlane.xlu0 %863
          %v865 = vmul.f32 %v861, %v852
          %v866 = vmul.f32 %v864, %v852
          %v867 = vadd.f32 %v865, 1e-05
          %v868 = vadd.f32 %v866, 1e-05
          %v869 = vrsqrt.pop %v867
          %v870 = vrsqrt.pop %v868
          %v871 = vmul.f32 %v855, %v869
          %v872 = vmul.f32 %v856, %v870
          %v874 = vlaneseq
          %v875 = vshrl.u32 %v874, 7
          %v876 = vsub.s32 0, %v875
          %v877 = vrot.slane %v842, %v876
          %v879 = vmul.f32 %v871, %v877
          %v880 = vmul.f32 %v872, %v877
          %v882 = vlaneseq
          %v883 = vshrl.u32 %v882, 7
          %v884 = vsub.s32 0, %v883
          %v885 = vrot.slane %v843, %v884
          %v887 = vadd.f32 %v879, %v885
          %v888 = vadd.f32 %v880, %v885
          %889 = vst.msk [vmem:[#allocation2] sm:$0xff] %vm844, %v887
          %890 = vst.msk [vmem:[#allocation2 + $0x8] sm:$0xf] %vm848, %v888
        $region100: #{vision_encoder_forward.1} parent=95 // pred_fallthru
          _
        %p891 = scmp.ge.s32.totalorder %s38, 1
        %p892 = scmp.lt.s32.totalorder %s38, 3
        %p893 = pnand %p891, %p892
        %p894 = pneg %p893
        // Predicated region
        $region101: #{vision_encoder_forward.1} parent=95 // pred_check
          _
        $region102: #{vision_encoder_forward.1} parent=95 // pred_check_branch
          %896 = sbr.rel (%p893) target = $region104
        $region103: #{vision_encoder_forward.1} parent=95 // pred_region
          %v897 = vld [vmem:[%s790] sm:$0xf]
          %vm898 = vcmask 257024
          %899 = vst.msk [vmem:[#allocation2 + $0x8] sm:$0xf] %vm898, %v897
        $region104: #{vision_encoder_forward.1} parent=95 // pred_fallthru
          _
        %v900 = vld [vmem:[#allocation2] sm:$0xff]
        %v901 = vld [vmem:[#allocation2 + $0x8] sm:$0xf]
        %v902 = vld [vmem:[%s793] sm:$0x1]
        %v903 = vld [vmem:[%s796] sm:$0x1]
        %vm904 = vcmask 261120
        %v905 = vsel %vm904, %v900, 0.0
        %906 = vadd.xlane.f32.xlu0 %v905
        %v907 = vpop.xlane.xlu0 %906
        %vm908 = vcmask 257024
        %v909 = vsel %vm908, %v901, 0.0
        %910 = vadd.xlane.f32.xlu0 %v909
        %v911 = vpop.xlane.xlu0 %910
        %v912 = vrcp.pop 32.0
        %v913 = vmul.f32 %v907, %v912
        %v914 = vmul.f32 %v911, %v912
        %v915 = vsub.f32 %v900, %v913
        %v916 = vsub.f32 %v901, %v914
        %v917 = vmul.f32 %v915, %v915
        %v918 = vmul.f32 %v916, %v916
        %v919 = vsel %vm904, %v917, 0.0
        %920 = vadd.xlane.f32.xlu0 %v919
        %v921 = vpop.xlane.xlu0 %920
        %v922 = vsel %vm908, %v918, 0.0
        %923 = vadd.xlane.f32.xlu0 %v922
        %v924 = vpop.xlane.xlu0 %923
        %v925 = vmul.f32 %v921, %v912
        %v926 = vmul.f32 %v924, %v912
        %v927 = vadd.f32 %v925, 1e-05
        %v928 = vadd.f32 %v926, 1e-05
        %v929 = vrsqrt.pop %v927
        %v930 = vrsqrt.pop %v928
        %v931 = vmul.f32 %v915, %v929
        %v932 = vmul.f32 %v916, %v930
        %v934 = vlaneseq
        %v935 = vshrl.u32 %v934, 7
        %v936 = vsub.s32 0, %v935
        %v937 = vrot.slane %v902, %v936
        %v939 = vmul.f32 %v931, %v937
        %v940 = vmul.f32 %v932, %v937
        %v942 = vlaneseq
        %v943 = vshrl.u32 %v942, 7
        %v944 = vsub.s32 0, %v943
        %v945 = vrot.slane %v903, %v944
        %v947 = vadd.f32 %v939, %v945
        %v948 = vadd.f32 %v940, %v945
        %v949 = vpack.c.bf16 %v948, %v947
        %v950 = vld [vmem:[%s801] sm:$0xf]
        %v951 = vld [vmem:[%s801 + $0x4] sm:$0xf]
        %v952 = vld [vmem:[%s801 + $0x8] sm:$0xf]
        %v953 = vld [vmem:[%s801 + $0xc] sm:$0xf]
        %v954 = vld [vmem:[%s804] sm:$0x1]
        %v956 = vlaneseq
        %v957 = vshrl.u32 %v956, 7
        %v958 = vsub.s32 0, %v957
        %v959 = vrot.slane %v954, %v958
        %v965 = vunpack.c.l.b16 %v950
        %v966 = vunpack.c.l.b16 %v951
        %v967 = vunpack.c.l.b16 %v952
        %v968 = vunpack.c.l.b16 %v953
        %v969 = vpack.c.b16 %v966, %v965
        %v970 = vpack.c.b16 %v968, %v967
        %v974 = vsel %vm904, %v949, 0
        %976 = vmatprep.subr.bf16.mxu0 0
        %977 = vmatpush1.bf16.msra.mxu0 %v969
        %978 = vmatprep.subr.bf16.mxu0 0
        %979 = vmatpush1.bf16.msra.mxu0 %v970
        %980 = vmatprep.subr.bf16.mxu0 0
        %981 = vmatpush1.bf16.msra.mxu0 0
        %982 = vmatprep.subr.bf16.mxu0 0
        %983 = vmatpush1.bf16.msra.mxu0 0
        %984 = vmatprep.subr.bf16.mxu0 0
        %985 = vmatpush1.bf16.msra.mxu0 0
        %986 = vmatprep.subr.bf16.mxu0 0
        %987 = vmatpush1.bf16.msra.mxu0 0
        %988 = vmatprep.subr.bf16.mxu0 0
        %989 = vmatpush1.bf16.msra.mxu0 0
        %990 = vmatprep.subr.bf16.mxu0 0
        %991 = vmatpush1.bf16.msra.mxu0 0
        %992 = vmatprep.subr.bf16.mxu0 0
        %993 = vmatpush1.bf16.msra.mxu0 0
        %994 = vmatprep.subr.bf16.mxu0 0
        %995 = vmatpush1.bf16.msra.mxu0 0
        %996 = vmatprep.subr.bf16.mxu0 0
        %997 = vmatpush1.bf16.msra.mxu0 0
        %998 = vmatprep.subr.bf16.mxu0 0
        %999 = vmatpush1.bf16.msra.mxu0 0
        %1000 = vmatprep.subr.bf16.mxu0 0
        %1001 = vmatpush1.bf16.msra.mxu0 0
        %1002 = vmatprep.subr.bf16.mxu0 0
        %1003 = vmatpush1.bf16.msra.mxu0 0
        %1004 = vmatprep.subr.bf16.mxu0 0
        %1005 = vmatpush1.bf16.msra.mxu0 0
        %1006 = vmatprep.subr.bf16.mxu0 0
        %1007 = vmatpush1.bf16.msra.mxu0 0
        %1008 = vmatprep.mubr.bf16.mxu0 0
        %1009 = vmatmul.mubr.bf16.gmra.mrb[0].mxu0 %v974
        %v1010 = vpop.f32.mrb[0].mxu0
        %v1011 = vadd.f32 %v959, %v1010
        %v1012 = vpop.f32.mrb[0].mxu0
        %v1013 = vpop.f32.mrb[0].mxu0
        %v1014 = vadd.f32 %v959, %v1013
        %v1015 = vpop.f32.mrb[0].mxu0
        %1016 = vdwg.mxu0
        %1019 = vrot.lane.b32.xlu0 %v1011, 120
        %v1020 = vpop.permute.xlu0 %1019
        %1021 = vrot.lane.b32.xlu0 %v1014, 120
        %v1022 = vpop.permute.xlu0 %1021
        %1025 = vrot.lane.b32.xlu0 %v1011, 112
        %v1026 = vpop.permute.xlu0 %1025
        %1027 = vrot.lane.b32.xlu0 %v1014, 112
        %v1028 = vpop.permute.xlu0 %1027
        %1031 = vrot.lane.b32.xlu0 %v1011, 104
        %v1032 = vpop.permute.xlu0 %1031
        %1033 = vrot.lane.b32.xlu0 %v1014, 104
        %v1034 = vpop.permute.xlu0 %1033
        %v1037 = vcombine.low %v1011, %v1026
        %v1038 = vcombine.high %v1011, %v1026
        %v1040 = vunpack.c.l.s4 1983009808
        %v1041 = vunpack.c.0.s8 %v1040
        %v1042 = vlaneseq
        %v1043 = vshrl.u32 %v1042, 7
        %v1044 = vsub.s32 %v1041, %v1043
        %v1045 = vrot.slane %v1037, %v1044
        %v1047 = vunpack.c.l.s4 1983009808
        %v1048 = vunpack.c.0.s8 %v1047
        %v1049 = vlaneseq
        %v1050 = vshrl.u32 %v1049, 7
        %v1051 = vsub.s32 %v1048, %v1050
        %v1052 = vrot.slane %v1038, %v1051
        %v1053 = vcombine.low %v1020, %v1032
        %v1054 = vcombine.high %v1020, %v1032
        %v1056 = vunpack.c.l.s4 1983009808
        %v1057 = vunpack.c.0.s8 %v1056
        %v1058 = vlaneseq
        %v1059 = vshrl.u32 %v1058, 7
        %v1060 = vsub.s32 %v1057, %v1059
        %v1061 = vrot.slane %v1053, %v1060
        %v1063 = vunpack.c.l.s4 1983009808
        %v1064 = vunpack.c.0.s8 %v1063
        %v1065 = vlaneseq
        %v1066 = vshrl.u32 %v1065, 7
        %v1067 = vsub.s32 %v1064, %v1066
        %v1068 = vrot.slane %v1054, %v1067
        %v1069 = vcombine.low %v1045, %v1061
        %v1070 = vcombine.high %v1045, %v1061
        %v1072 = vunpack.c.l.s4 1934713408
        %v1073 = vunpack.c.0.s8 %v1072
        %v1074 = vlaneseq
        %v1075 = vshrl.u32 %v1074, 7
        %v1076 = vsub.s32 %v1073, %v1075
        %v1077 = vrot.slane %v1069, %v1076
        %v1079 = vunpack.c.l.s4 1934713408
        %v1080 = vunpack.c.0.s8 %v1079
        %v1081 = vlaneseq
        %v1082 = vshrl.u32 %v1081, 7
        %v1083 = vsub.s32 %v1080, %v1082
        %v1084 = vrot.slane %v1070, %v1083
        %v1085 = vcombine.low %v1052, %v1068
        %v1086 = vcombine.high %v1052, %v1068
        %v1088 = vunpack.c.l.s4 1934713408
        %v1089 = vunpack.c.0.s8 %v1088
        %v1090 = vlaneseq
        %v1091 = vshrl.u32 %v1090, 7
        %v1092 = vsub.s32 %v1089, %v1091
        %v1093 = vrot.slane %v1085, %v1092
        %v1095 = vunpack.c.l.s4 1934713408
        %v1096 = vunpack.c.0.s8 %v1095
        %v1097 = vlaneseq
        %v1098 = vshrl.u32 %v1097, 7
        %v1099 = vsub.s32 %v1096, %v1098
        %v1100 = vrot.slane %v1086, %v1099
        %v1101 = vcombine.high %v1077, 0.0
        %v1102 = vcombine.high %v1084, 0.0
        %v1103 = vcombine.high %v1093, 0.0
        %v1104 = vcombine.high %v1100, 0.0
        %v1105 = vcombine.low %v1014, %v1028
        %v1107 = vunpack.c.l.s4 1983009808
        %v1108 = vunpack.c.0.s8 %v1107
        %v1109 = vlaneseq
        %v1110 = vshrl.u32 %v1109, 7
        %v1111 = vsub.s32 %v1108, %v1110
        %v1112 = vrot.slane %v1105, %v1111
        %v1113 = vcombine.low %v1022, %v1034
        %v1115 = vunpack.c.l.s4 1983009808
        %v1116 = vunpack.c.0.s8 %v1115
        %v1117 = vlaneseq
        %v1118 = vshrl.u32 %v1117, 7
        %v1119 = vsub.s32 %v1116, %v1118
        %v1120 = vrot.slane %v1113, %v1119
        %v1121 = vcombine.low %v1112, %v1120
        %v1122 = vcombine.high %v1112, %v1120
        %v1124 = vunpack.c.l.s4 1934713408
        %v1125 = vunpack.c.0.s8 %v1124
        %v1126 = vlaneseq
        %v1127 = vshrl.u32 %v1126, 7
        %v1128 = vsub.s32 %v1125, %v1127
        %v1129 = vrot.slane %v1121, %v1128
        %v1131 = vunpack.c.l.s4 1934713408
        %v1132 = vunpack.c.0.s8 %v1131
        %v1133 = vlaneseq
        %v1134 = vshrl.u32 %v1133, 7
        %v1135 = vsub.s32 %v1132, %v1134
        %v1136 = vrot.slane %v1122, %v1135
        %v1137 = vcombine.high %v1129, 0.0
        %v1138 = vcombine.high %v1136, 0.0
        %v1139 = vcombine.low %v1077, %v1084
        %v1141 = vunpack.c.l.s4 1983009808
        %v1142 = vunpack.c.0.s8 %v1141
        %v1143 = vlaneseq
        %v1144 = vshrl.u32 %v1143, 7
        %v1145 = vsub.s32 %v1142, %v1144
        %v1146 = vrot.slane %v1139, %v1145
        %v1147 = vcombine.low %v1101, %v1102
        %v1149 = vunpack.c.l.s4 1983009808
        %v1150 = vunpack.c.0.s8 %v1149
        %v1151 = vlaneseq
        %v1152 = vshrl.u32 %v1151, 7
        %v1153 = vsub.s32 %v1150, %v1152
        %v1154 = vrot.slane %v1147, %v1153
        %v1155 = vcombine.low %v1093, %v1100
        %v1157 = vunpack.c.l.s4 1983009808
        %v1158 = vunpack.c.0.s8 %v1157
        %v1159 = vlaneseq
        %v1160 = vshrl.u32 %v1159, 7
        %v1161 = vsub.s32 %v1158, %v1160
        %v1162 = vrot.slane %v1155, %v1161
        %v1163 = vcombine.low %v1103, %v1104
        %v1165 = vunpack.c.l.s4 1983009808
        %v1166 = vunpack.c.0.s8 %v1165
        %v1167 = vlaneseq
        %v1168 = vshrl.u32 %v1167, 7
        %v1169 = vsub.s32 %v1166, %v1168
        %v1170 = vrot.slane %v1163, %v1169
        %v1171 = vcombine.low %v1146, %v1154
        %v1172 = vcombine.high %v1146, %v1154
        %v1174 = vunpack.c.l.s4 1934713408
        %v1175 = vunpack.c.0.s8 %v1174
        %v1176 = vlaneseq
        %v1177 = vshrl.u32 %v1176, 7
        %v1178 = vsub.s32 %v1175, %v1177
        %v1179 = vrot.slane %v1171, %v1178
        %v1181 = vunpack.c.l.s4 1934713408
        %v1182 = vunpack.c.0.s8 %v1181
        %v1183 = vlaneseq
        %v1184 = vshrl.u32 %v1183, 7
        %v1185 = vsub.s32 %v1182, %v1184
        %v1186 = vrot.slane %v1172, %v1185
        %v1187 = vcombine.low %v1162, %v1170
        %v1188 = vcombine.high %v1162, %v1170
        %v1190 = vunpack.c.l.s4 1934713408
        %v1191 = vunpack.c.0.s8 %v1190
        %v1192 = vlaneseq
        %v1193 = vshrl.u32 %v1192, 7
        %v1194 = vsub.s32 %v1191, %v1193
        %v1195 = vrot.slane %v1187, %v1194
        %v1197 = vunpack.c.l.s4 1934713408
        %v1198 = vunpack.c.0.s8 %v1197
        %v1199 = vlaneseq
        %v1200 = vshrl.u32 %v1199, 7
        %v1201 = vsub.s32 %v1198, %v1200
        %v1202 = vrot.slane %v1188, %v1201
        %v1203 = vcombine.low %v1179, %v1195
        %v1204 = vcombine.high %v1179, %v1195
        %v1205 = vcombine.low %v1186, %v1202
        %v1206 = vcombine.high %v1186, %v1202
        %v1207 = vcombine.low %v1129, %v1136
        %v1209 = vunpack.c.l.s4 1983009808
        %v1210 = vunpack.c.0.s8 %v1209
        %v1211 = vlaneseq
        %v1212 = vshrl.u32 %v1211, 7
        %v1213 = vsub.s32 %v1210, %v1212
        %v1214 = vrot.slane %v1207, %v1213
        %v1215 = vcombine.low %v1137, %v1138
        %v1217 = vunpack.c.l.s4 1983009808
        %v1218 = vunpack.c.0.s8 %v1217
        %v1219 = vlaneseq
        %v1220 = vshrl.u32 %v1219, 7
        %v1221 = vsub.s32 %v1218, %v1220
        %v1222 = vrot.slane %v1215, %v1221
        %v1223 = vcombine.low %v1214, %v1222
        %v1224 = vcombine.high %v1214, %v1222
        %v1226 = vunpack.c.l.s4 1934713408
        %v1227 = vunpack.c.0.s8 %v1226
        %v1228 = vlaneseq
        %v1229 = vshrl.u32 %v1228, 7
        %v1230 = vsub.s32 %v1227, %v1229
        %v1231 = vrot.slane %v1223, %v1230
        %v1233 = vunpack.c.l.s4 1934713408
        %v1234 = vunpack.c.0.s8 %v1233
        %v1235 = vlaneseq
        %v1236 = vshrl.u32 %v1235, 7
        %v1237 = vsub.s32 %v1234, %v1236
        %v1238 = vrot.slane %v1224, %v1237
        %v1239 = vcombine.high %v1231, 0.0
        %v1240 = vcombine.high %v1238, 0.0
        %v1241 = vpack.c.bf16 %v1231, %v1203
        %v1242 = vpack.c.bf16 %v1239, %v1204
        %v1243 = vpack.c.bf16 %v1238, %v1205
        %v1244 = vpack.c.bf16 %v1240, %v1206
        %1245 = vrot.lane.b32.xlu0 %v1011, 96
        %v1246 = vpop.permute.xlu0 %1245
        %1247 = vrot.lane.b32.xlu0 %v1014, 96
        %v1248 = vpop.permute.xlu0 %1247
        %1249 = vrot.lane.b32.xlu0 %v1020, 96
        %v1250 = vpop.permute.xlu0 %1249
        %1251 = vrot.lane.b32.xlu0 %v1022, 96
        %v1252 = vpop.permute.xlu0 %1251
        %1253 = vrot.lane.b32.xlu0 %v1026, 96
        %v1254 = vpop.permute.xlu0 %1253
        %1255 = vrot.lane.b32.xlu0 %v1028, 96
        %v1256 = vpop.permute.xlu0 %1255
        %1257 = vrot.lane.b32.xlu0 %v1032, 96
        %v1258 = vpop.permute.xlu0 %1257
        %1259 = vrot.lane.b32.xlu0 %v1034, 96
        %v1260 = vpop.permute.xlu0 %1259
        %v1269 = vcombine.low %v1246, %v1254
        %v1270 = vcombine.high %v1246, %v1254
        %v1272 = vunpack.c.l.s4 1983009808
        %v1273 = vunpack.c.0.s8 %v1272
        %v1274 = vlaneseq
        %v1275 = vshrl.u32 %v1274, 7
        %v1276 = vsub.s32 %v1273, %v1275
        %v1277 = vrot.slane %v1269, %v1276
        %v1279 = vunpack.c.l.s4 1983009808
        %v1280 = vunpack.c.0.s8 %v1279
        %v1281 = vlaneseq
        %v1282 = vshrl.u32 %v1281, 7
        %v1283 = vsub.s32 %v1280, %v1282
        %v1284 = vrot.slane %v1270, %v1283
        %v1285 = vcombine.low %v1250, %v1258
        %v1286 = vcombine.high %v1250, %v1258
        %v1288 = vunpack.c.l.s4 1983009808
        %v1289 = vunpack.c.0.s8 %v1288
        %v1290 = vlaneseq
        %v1291 = vshrl.u32 %v1290, 7
        %v1292 = vsub.s32 %v1289, %v1291
        %v1293 = vrot.slane %v1285, %v1292
        %v1295 = vunpack.c.l.s4 1983009808
        %v1296 = vunpack.c.0.s8 %v1295
        %v1297 = vlaneseq
        %v1298 = vshrl.u32 %v1297, 7
        %v1299 = vsub.s32 %v1296, %v1298
        %v1300 = vrot.slane %v1286, %v1299
        %v1301 = vcombine.low %v1277, %v1293
        %v1302 = vcombine.high %v1277, %v1293
        %v1304 = vunpack.c.l.s4 1934713408
        %v1305 = vunpack.c.0.s8 %v1304
        %v1306 = vlaneseq
        %v1307 = vshrl.u32 %v1306, 7
        %v1308 = vsub.s32 %v1305, %v1307
        %v1309 = vrot.slane %v1301, %v1308
        %v1311 = vunpack.c.l.s4 1934713408
        %v1312 = vunpack.c.0.s8 %v1311
        %v1313 = vlaneseq
        %v1314 = vshrl.u32 %v1313, 7
        %v1315 = vsub.s32 %v1312, %v1314
        %v1316 = vrot.slane %v1302, %v1315
        %v1317 = vcombine.low %v1284, %v1300
        %v1318 = vcombine.high %v1284, %v1300
        %v1320 = vunpack.c.l.s4 1934713408
        %v1321 = vunpack.c.0.s8 %v1320
        %v1322 = vlaneseq
        %v1323 = vshrl.u32 %v1322, 7
        %v1324 = vsub.s32 %v1321, %v1323
        %v1325 = vrot.slane %v1317, %v1324
        %v1327 = vunpack.c.l.s4 1934713408
        %v1328 = vunpack.c.0.s8 %v1327
        %v1329 = vlaneseq
        %v1330 = vshrl.u32 %v1329, 7
        %v1331 = vsub.s32 %v1328, %v1330
        %v1332 = vrot.slane %v1318, %v1331
        %v1333 = vcombine.high %v1309, 0.0
        %v1334 = vcombine.high %v1316, 0.0
        %v1335 = vcombine.high %v1325, 0.0
        %v1336 = vcombine.high %v1332, 0.0
        %v1337 = vcombine.low %v1248, %v1256
        %v1339 = vunpack.c.l.s4 1983009808
        %v1340 = vunpack.c.0.s8 %v1339
        %v1341 = vlaneseq
        %v1342 = vshrl.u32 %v1341, 7
        %v1343 = vsub.s32 %v1340, %v1342
        %v1344 = vrot.slane %v1337, %v1343
        %v1345 = vcombine.low %v1252, %v1260
        %v1347 = vunpack.c.l.s4 1983009808
        %v1348 = vunpack.c.0.s8 %v1347
        %v1349 = vlaneseq
        %v1350 = vshrl.u32 %v1349, 7
        %v1351 = vsub.s32 %v1348, %v1350
        %v1352 = vrot.slane %v1345, %v1351
        %v1353 = vcombine.low %v1344, %v1352
        %v1354 = vcombine.high %v1344, %v1352
        %v1356 = vunpack.c.l.s4 1934713408
        %v1357 = vunpack.c.0.s8 %v1356
        %v1358 = vlaneseq
        %v1359 = vshrl.u32 %v1358, 7
        %v1360 = vsub.s32 %v1357, %v1359
        %v1361 = vrot.slane %v1353, %v1360
        %v1363 = vunpack.c.l.s4 1934713408
        %v1364 = vunpack.c.0.s8 %v1363
        %v1365 = vlaneseq
        %v1366 = vshrl.u32 %v1365, 7
        %v1367 = vsub.s32 %v1364, %v1366
        %v1368 = vrot.slane %v1354, %v1367
        %v1369 = vcombine.high %v1361, 0.0
        %v1370 = vcombine.high %v1368, 0.0
        %v1371 = vcombine.low %v1309, %v1316
        %v1373 = vunpack.c.l.s4 1983009808
        %v1374 = vunpack.c.0.s8 %v1373
        %v1375 = vlaneseq
        %v1376 = vshrl.u32 %v1375, 7
        %v1377 = vsub.s32 %v1374, %v1376
        %v1378 = vrot.slane %v1371, %v1377
        %v1379 = vcombine.low %v1333, %v1334
        %v1381 = vunpack.c.l.s4 1983009808
        %v1382 = vunpack.c.0.s8 %v1381
        %v1383 = vlaneseq
        %v1384 = vshrl.u32 %v1383, 7
        %v1385 = vsub.s32 %v1382, %v1384
        %v1386 = vrot.slane %v1379, %v1385
        %v1387 = vcombine.low %v1325, %v1332
        %v1389 = vunpack.c.l.s4 1983009808
        %v1390 = vunpack.c.0.s8 %v1389
        %v1391 = vlaneseq
        %v1392 = vshrl.u32 %v1391, 7
        %v1393 = vsub.s32 %v1390, %v1392
        %v1394 = vrot.slane %v1387, %v1393
        %v1395 = vcombine.low %v1335, %v1336
        %v1397 = vunpack.c.l.s4 1983009808
        %v1398 = vunpack.c.0.s8 %v1397
        %v1399 = vlaneseq
        %v1400 = vshrl.u32 %v1399, 7
        %v1401 = vsub.s32 %v1398, %v1400
        %v1402 = vrot.slane %v1395, %v1401
        %v1403 = vcombine.low %v1378, %v1386
        %v1404 = vcombine.high %v1378, %v1386
        %v1406 = vunpack.c.l.s4 1934713408
        %v1407 = vunpack.c.0.s8 %v1406
        %v1408 = vlaneseq
        %v1409 = vshrl.u32 %v1408, 7
        %v1410 = vsub.s32 %v1407, %v1409
        %v1411 = vrot.slane %v1403, %v1410
        %v1413 = vunpack.c.l.s4 1934713408
        %v1414 = vunpack.c.0.s8 %v1413
        %v1415 = vlaneseq
        %v1416 = vshrl.u32 %v1415, 7
        %v1417 = vsub.s32 %v1414, %v1416
        %v1418 = vrot.slane %v1404, %v1417
        %v1419 = vcombine.low %v1394, %v1402
        %v1420 = vcombine.high %v1394, %v1402
        %v1422 = vunpack.c.l.s4 1934713408
        %v1423 = vunpack.c.0.s8 %v1422
        %v1424 = vlaneseq
        %v1425 = vshrl.u32 %v1424, 7
        %v1426 = vsub.s32 %v1423, %v1425
        %v1427 = vrot.slane %v1419, %v1426
        %v1429 = vunpack.c.l.s4 1934713408
        %v1430 = vunpack.c.0.s8 %v1429
        %v1431 = vlaneseq
        %v1432 = vshrl.u32 %v1431, 7
        %v1433 = vsub.s32 %v1430, %v1432
        %v1434 = vrot.slane %v1420, %v1433
        %v1435 = vcombine.low %v1411, %v1427
        %v1436 = vcombine.high %v1411, %v1427
        %v1437 = vcombine.low %v1418, %v1434
        %v1438 = vcombine.high %v1418, %v1434
        %v1439 = vcombine.low %v1361, %v1368
        %v1441 = vunpack.c.l.s4 1983009808
        %v1442 = vunpack.c.0.s8 %v1441
        %v1443 = vlaneseq
        %v1444 = vshrl.u32 %v1443, 7
        %v1445 = vsub.s32 %v1442, %v1444
        %v1446 = vrot.slane %v1439, %v1445
        %v1447 = vcombine.low %v1369, %v1370
        %v1449 = vunpack.c.l.s4 1983009808
        %v1450 = vunpack.c.0.s8 %v1449
        %v1451 = vlaneseq
        %v1452 = vshrl.u32 %v1451, 7
        %v1453 = vsub.s32 %v1450, %v1452
        %v1454 = vrot.slane %v1447, %v1453
        %v1455 = vcombine.low %v1446, %v1454
        %v1456 = vcombine.high %v1446, %v1454
        %v1458 = vunpack.c.l.s4 1934713408
        %v1459 = vunpack.c.0.s8 %v1458
        %v1460 = vlaneseq
        %v1461 = vshrl.u32 %v1460, 7
        %v1462 = vsub.s32 %v1459, %v1461
        %v1463 = vrot.slane %v1455, %v1462
        %v1465 = vunpack.c.l.s4 1934713408
        %v1466 = vunpack.c.0.s8 %v1465
        %v1467 = vlaneseq
        %v1468 = vshrl.u32 %v1467, 7
        %v1469 = vsub.s32 %v1466, %v1468
        %v1470 = vrot.slane %v1456, %v1469
        %v1471 = vcombine.high %v1463, 0.0
        %v1472 = vcombine.high %v1470, 0.0
        %v1473 = vpack.c.bf16 %v1463, %v1435
        %v1474 = vpack.c.bf16 %v1471, %v1436
        %v1475 = vpack.c.bf16 %v1470, %v1437
        %v1476 = vpack.c.bf16 %v1472, %v1438
        %1477 = vrot.lane.b32.xlu0 %v1011, 64
        %v1478 = vpop.permute.xlu0 %1477
        %1479 = vrot.lane.b32.xlu0 %v1014, 64
        %v1480 = vpop.permute.xlu0 %1479
        %1481 = vrot.lane.b32.xlu0 %v1020, 64
        %v1482 = vpop.permute.xlu0 %1481
        %1483 = vrot.lane.b32.xlu0 %v1022, 64
        %v1484 = vpop.permute.xlu0 %1483
        %1485 = vrot.lane.b32.xlu0 %v1026, 64
        %v1486 = vpop.permute.xlu0 %1485
        %1487 = vrot.lane.b32.xlu0 %v1028, 64
        %v1488 = vpop.permute.xlu0 %1487
        %1489 = vrot.lane.b32.xlu0 %v1032, 64
        %v1490 = vpop.permute.xlu0 %1489
        %1491 = vrot.lane.b32.xlu0 %v1034, 64
        %v1492 = vpop.permute.xlu0 %1491
        %v1501 = vcombine.low %v1478, %v1486
        %v1502 = vcombine.high %v1478, %v1486
        %v1504 = vunpack.c.l.s4 1983009808
        %v1505 = vunpack.c.0.s8 %v1504
        %v1506 = vlaneseq
        %v1507 = vshrl.u32 %v1506, 7
        %v1508 = vsub.s32 %v1505, %v1507
        %v1509 = vrot.slane %v1501, %v1508
        %v1511 = vunpack.c.l.s4 1983009808
        %v1512 = vunpack.c.0.s8 %v1511
        %v1513 = vlaneseq
        %v1514 = vshrl.u32 %v1513, 7
        %v1515 = vsub.s32 %v1512, %v1514
        %v1516 = vrot.slane %v1502, %v1515
        %v1517 = vcombine.low %v1482, %v1490
        %v1518 = vcombine.high %v1482, %v1490
        %v1520 = vunpack.c.l.s4 1983009808
        %v1521 = vunpack.c.0.s8 %v1520
        %v1522 = vlaneseq
        %v1523 = vshrl.u32 %v1522, 7
        %v1524 = vsub.s32 %v1521, %v1523
        %v1525 = vrot.slane %v1517, %v1524
        %v1527 = vunpack.c.l.s4 1983009808
        %v1528 = vunpack.c.0.s8 %v1527
        %v1529 = vlaneseq
        %v1530 = vshrl.u32 %v1529, 7
        %v1531 = vsub.s32 %v1528, %v1530
        %v1532 = vrot.slane %v1518, %v1531
        %v1533 = vcombine.low %v1509, %v1525
        %v1534 = vcombine.high %v1509, %v1525
        %v1536 = vunpack.c.l.s4 1934713408
        %v1537 = vunpack.c.0.s8 %v1536
        %v1538 = vlaneseq
        %v1539 = vshrl.u32 %v1538, 7
        %v1540 = vsub.s32 %v1537, %v1539
        %v1541 = vrot.slane %v1533, %v1540
        %v1543 = vunpack.c.l.s4 1934713408
        %v1544 = vunpack.c.0.s8 %v1543
        %v1545 = vlaneseq
        %v1546 = vshrl.u32 %v1545, 7
        %v1547 = vsub.s32 %v1544, %v1546
        %v1548 = vrot.slane %v1534, %v1547
        %v1549 = vcombine.low %v1516, %v1532
        %v1550 = vcombine.high %v1516, %v1532
        %v1552 = vunpack.c.l.s4 1934713408
        %v1553 = vunpack.c.0.s8 %v1552
        %v1554 = vlaneseq
        %v1555 = vshrl.u32 %v1554, 7
        %v1556 = vsub.s32 %v1553, %v1555
        %v1557 = vrot.slane %v1549, %v1556
        %v1559 = vunpack.c.l.s4 1934713408
        %v1560 = vunpack.c.0.s8 %v1559
        %v1561 = vlaneseq
        %v1562 = vshrl.u32 %v1561, 7
        %v1563 = vsub.s32 %v1560, %v1562
        %v1564 = vrot.slane %v1550, %v1563
        %v1565 = vcombine.high %v1541, 0.0
        %v1566 = vcombine.high %v1548, 0.0
        %v1567 = vcombine.high %v1557, 0.0
        %v1568 = vcombine.high %v1564, 0.0
        %v1569 = vcombine.low %v1480, %v1488
        %v1571 = vunpack.c.l.s4 1983009808
        %v1572 = vunpack.c.0.s8 %v1571
        %v1573 = vlaneseq
        %v1574 = vshrl.u32 %v1573, 7
        %v1575 = vsub.s32 %v1572, %v1574
        %v1576 = vrot.slane %v1569, %v1575
        %v1577 = vcombine.low %v1484, %v1492
        %v1579 = vunpack.c.l.s4 1983009808
        %v1580 = vunpack.c.0.s8 %v1579
        %v1581 = vlaneseq
        %v1582 = vshrl.u32 %v1581, 7
        %v1583 = vsub.s32 %v1580, %v1582
        %v1584 = vrot.slane %v1577, %v1583
        %v1585 = vcombine.low %v1576, %v1584
        %v1586 = vcombine.high %v1576, %v1584
        %v1588 = vunpack.c.l.s4 1934713408
        %v1589 = vunpack.c.0.s8 %v1588
        %v1590 = vlaneseq
        %v1591 = vshrl.u32 %v1590, 7
        %v1592 = vsub.s32 %v1589, %v1591
        %v1593 = vrot.slane %v1585, %v1592
        %v1595 = vunpack.c.l.s4 1934713408
        %v1596 = vunpack.c.0.s8 %v1595
        %v1597 = vlaneseq
        %v1598 = vshrl.u32 %v1597, 7
        %v1599 = vsub.s32 %v1596, %v1598
        %v1600 = vrot.slane %v1586, %v1599
        %v1601 = vcombine.high %v1593, 0.0
        %v1602 = vcombine.high %v1600, 0.0
        %v1603 = vcombine.low %v1541, %v1548
        %v1605 = vunpack.c.l.s4 1983009808
        %v1606 = vunpack.c.0.s8 %v1605
        %v1607 = vlaneseq
        %v1608 = vshrl.u32 %v1607, 7
        %v1609 = vsub.s32 %v1606, %v1608
        %v1610 = vrot.slane %v1603, %v1609
        %v1611 = vcombine.low %v1565, %v1566
        %v1613 = vunpack.c.l.s4 1983009808
        %v1614 = vunpack.c.0.s8 %v1613
        %v1615 = vlaneseq
        %v1616 = vshrl.u32 %v1615, 7
        %v1617 = vsub.s32 %v1614, %v1616
        %v1618 = vrot.slane %v1611, %v1617
        %v1619 = vcombine.low %v1557, %v1564
        %v1621 = vunpack.c.l.s4 1983009808
        %v1622 = vunpack.c.0.s8 %v1621
        %v1623 = vlaneseq
        %v1624 = vshrl.u32 %v1623, 7
        %v1625 = vsub.s32 %v1622, %v1624
        %v1626 = vrot.slane %v1619, %v1625
        %v1627 = vcombine.low %v1567, %v1568
        %v1629 = vunpack.c.l.s4 1983009808
        %v1630 = vunpack.c.0.s8 %v1629
        %v1631 = vlaneseq
        %v1632 = vshrl.u32 %v1631, 7
        %v1633 = vsub.s32 %v1630, %v1632
        %v1634 = vrot.slane %v1627, %v1633
        %v1635 = vcombine.low %v1610, %v1618
        %v1636 = vcombine.high %v1610, %v1618
        %v1638 = vunpack.c.l.s4 1934713408
        %v1639 = vunpack.c.0.s8 %v1638
        %v1640 = vlaneseq
        %v1641 = vshrl.u32 %v1640, 7
        %v1642 = vsub.s32 %v1639, %v1641
        %v1643 = vrot.slane %v1635, %v1642
        %v1645 = vunpack.c.l.s4 1934713408
        %v1646 = vunpack.c.0.s8 %v1645
        %v1647 = vlaneseq
        %v1648 = vshrl.u32 %v1647, 7
        %v1649 = vsub.s32 %v1646, %v1648
        %v1650 = vrot.slane %v1636, %v1649
        %v1651 = vcombine.low %v1626, %v1634
        %v1652 = vcombine.high %v1626, %v1634
        %v1654 = vunpack.c.l.s4 1934713408
        %v1655 = vunpack.c.0.s8 %v1654
        %v1656 = vlaneseq
        %v1657 = vshrl.u32 %v1656, 7
        %v1658 = vsub.s32 %v1655, %v1657
        %v1659 = vrot.slane %v1651, %v1658
        %v1661 = vunpack.c.l.s4 1934713408
        %v1662 = vunpack.c.0.s8 %v1661
        %v1663 = vlaneseq
        %v1664 = vshrl.u32 %v1663, 7
        %v1665 = vsub.s32 %v1662, %v1664
        %v1666 = vrot.slane %v1652, %v1665
        %v1667 = vcombine.low %v1643, %v1659
        %v1668 = vcombine.high %v1643, %v1659
        %v1669 = vcombine.low %v1650, %v1666
        %v1670 = vcombine.high %v1650, %v1666
        %v1671 = vcombine.low %v1593, %v1600
        %v1673 = vunpack.c.l.s4 1983009808
        %v1674 = vunpack.c.0.s8 %v1673
        %v1675 = vlaneseq
        %v1676 = vshrl.u32 %v1675, 7
        %v1677 = vsub.s32 %v1674, %v1676
        %v1678 = vrot.slane %v1671, %v1677
        %v1679 = vcombine.low %v1601, %v1602
        %v1681 = vunpack.c.l.s4 1983009808
        %v1682 = vunpack.c.0.s8 %v1681
        %v1683 = vlaneseq
        %v1684 = vshrl.u32 %v1683, 7
        %v1685 = vsub.s32 %v1682, %v1684
        %v1686 = vrot.slane %v1679, %v1685
        %v1687 = vcombine.low %v1678, %v1686
        %v1688 = vcombine.high %v1678, %v1686
        %v1690 = vunpack.c.l.s4 1934713408
        %v1691 = vunpack.c.0.s8 %v1690
        %v1692 = vlaneseq
        %v1693 = vshrl.u32 %v1692, 7
        %v1694 = vsub.s32 %v1691, %v1693
        %v1695 = vrot.slane %v1687, %v1694
        %v1697 = vunpack.c.l.s4 1934713408
        %v1698 = vunpack.c.0.s8 %v1697
        %v1699 = vlaneseq
        %v1700 = vshrl.u32 %v1699, 7
        %v1701 = vsub.s32 %v1698, %v1700
        %v1702 = vrot.slane %v1688, %v1701
        %v1703 = vcombine.high %v1695, 0.0
        %v1704 = vcombine.high %v1702, 0.0
        %v1705 = vpack.c.bf16 %v1695, %v1667
        %v1706 = vpack.c.bf16 %v1703, %v1668
        %v1707 = vpack.c.bf16 %v1702, %v1669
        %v1708 = vpack.c.bf16 %v1704, %v1670
        %vm1709 = vcmask 64512
        %v1711 = vsel %vm1709, %v1241, 0
        %v1714 = vsel %vm1709, %v1473, 0
        %1716 = vmatprep.subr.bf16.mxu0 0
        %1717 = vmatpush1.bf16.xpose.msra.mxu0 %v1714
        %1718 = vmatprep.subr.bf16.mxu0 0
        %1719 = vmatpush1.bf16.xpose.msra.mxu0 0
        %1720 = vmatprep.subr.bf16.mxu0 0
        %1721 = vmatpush1.bf16.xpose.msra.mxu0 0
        %1722 = vmatprep.subr.bf16.mxu0 0
        %1723 = vmatpush1.bf16.xpose.msra.mxu0 0
        %1724 = vmatprep.subr.bf16.mxu0 0
        %1725 = vmatpush1.bf16.xpose.msra.mxu0 0
        %1726 = vmatprep.subr.bf16.mxu0 0
        %1727 = vmatpush1.bf16.xpose.msra.mxu0 0
        %1728 = vmatprep.subr.bf16.mxu0 0
        %1729 = vmatpush1.bf16.xpose.msra.mxu0 0
        %1730 = vmatprep.subr.bf16.mxu0 0
        %1731 = vmatpush1.bf16.xpose.msra.mxu0 0
        %1732 = vmatprep.subr.bf16.mxu0 0
        %1733 = vmatpush1.bf16.xpose.msra.mxu0 0
        %1734 = vmatprep.subr.bf16.mxu0 0
        %1735 = vmatpush1.bf16.xpose.msra.mxu0 0
        %1736 = vmatprep.subr.bf16.mxu0 0
        %1737 = vmatpush1.bf16.xpose.msra.mxu0 0
        %1738 = vmatprep.subr.bf16.mxu0 0
        %1739 = vmatpush1.bf16.xpose.msra.mxu0 0
        %1740 = vmatprep.subr.bf16.mxu0 0
        %1741 = vmatpush1.bf16.xpose.msra.mxu0 0
        %1742 = vmatprep.subr.bf16.mxu0 0
        %1743 = vmatpush1.bf16.xpose.msra.mxu0 0
        %1744 = vmatprep.subr.bf16.mxu0 0
        %1745 = vmatpush1.bf16.xpose.msra.mxu0 0
        %1746 = vmatprep.subr.bf16.mxu0 0
        %1747 = vmatpush1.bf16.xpose.msra.mxu0 0
        %1748 = vmatprep.mubr.bf16.mxu0 0
        %1749 = vmatmul.mubr.bf16.gmra.mrb[0].mxu0 %v1711
        %v1750 = vpop.f32.mrb[0].mxu0
        %v1751 = vadd.f32 0.0, %v1750
        %v1752 = vpop.f32.mrb[0].mxu0
        %v1753 = vpop.f32.mrb[0].mxu0
        %v1754 = vadd.f32 0.0, %v1753
        %v1755 = vpop.f32.mrb[0].mxu0
        %1756 = vdwg.mxu0
        %v1758 = vsel %vm1709, %v1242, 0
        %v1761 = vsel %vm1709, %v1474, 0
        %1763 = vmatprep.subr.bf16.mxu0 0
        %1764 = vmatpush1.bf16.xpose.msra.mxu0 %v1761
        %1765 = vmatprep.subr.bf16.mxu0 0
        %1766 = vmatpush1.bf16.xpose.msra.mxu0 0
        %1767 = vmatprep.subr.bf16.mxu0 0
        %1768 = vmatpush1.bf16.xpose.msra.mxu0 0
        %1769 = vmatprep.subr.bf16.mxu0 0
        %1770 = vmatpush1.bf16.xpose.msra.mxu0 0
        %1771 = vmatprep.subr.bf16.mxu0 0
        %1772 = vmatpush1.bf16.xpose.msra.mxu0 0
        %1773 = vmatprep.subr.bf16.mxu0 0
        %1774 = vmatpush1.bf16.xpose.msra.mxu0 0
        %1775 = vmatprep.subr.bf16.mxu0 0
        %1776 = vmatpush1.bf16.xpose.msra.mxu0 0
        %1777 = vmatprep.subr.bf16.mxu0 0
        %1778 = vmatpush1.bf16.xpose.msra.mxu0 0
        %1779 = vmatprep.subr.bf16.mxu0 0
        %1780 = vmatpush1.bf16.xpose.msra.mxu0 0
        %1781 = vmatprep.subr.bf16.mxu0 0
        %1782 = vmatpush1.bf16.xpose.msra.mxu0 0
        %1783 = vmatprep.subr.bf16.mxu0 0
        %1784 = vmatpush1.bf16.xpose.msra.mxu0 0
        %1785 = vmatprep.subr.bf16.mxu0 0
        %1786 = vmatpush1.bf16.xpose.msra.mxu0 0
        %1787 = vmatprep.subr.bf16.mxu0 0
        %1788 = vmatpush1.bf16.xpose.msra.mxu0 0
        %1789 = vmatprep.subr.bf16.mxu0 0
        %1790 = vmatpush1.bf16.xpose.msra.mxu0 0
        %1791 = vmatprep.subr.bf16.mxu0 0
        %1792 = vmatpush1.bf16.xpose.msra.mxu0 0
        %1793 = vmatprep.subr.bf16.mxu0 0
        %1794 = vmatpush1.bf16.xpose.msra.mxu0 0
        %1795 = vmatprep.mubr.bf16.mxu0 0
        %1796 = vmatmul.mubr.bf16.gmra.mrb[0].mxu0 %v1758
        %v1797 = vpop.f32.mrb[0].mxu0
        %v1798 = vadd.f32 0.0, %v1797
        %v1799 = vpop.f32.mrb[0].mxu0
        %v1800 = vpop.f32.mrb[0].mxu0
        %v1801 = vadd.f32 0.0, %v1800
        %v1802 = vpop.f32.mrb[0].mxu0
        %1803 = vdwg.mxu0
        %v1805 = vsel %vm1709, %v1243, 0
        %v1808 = vsel %vm1709, %v1475, 0
        %1810 = vmatprep.subr.bf16.mxu0 0
        %1811 = vmatpush1.bf16.xpose.msra.mxu0 %v1808
        %1812 = vmatprep.subr.bf16.mxu0 0
        %1813 = vmatpush1.bf16.xpose.msra.mxu0 0
        %1814 = vmatprep.subr.bf16.mxu0 0
        %1815 = vmatpush1.bf16.xpose.msra.mxu0 0
        %1816 = vmatprep.subr.bf16.mxu0 0
        %1817 = vmatpush1.bf16.xpose.msra.mxu0 0
        %1818 = vmatprep.subr.bf16.mxu0 0
        %1819 = vmatpush1.bf16.xpose.msra.mxu0 0
        %1820 = vmatprep.subr.bf16.mxu0 0
        %1821 = vmatpush1.bf16.xpose.msra.mxu0 0
        %1822 = vmatprep.subr.bf16.mxu0 0
        %1823 = vmatpush1.bf16.xpose.msra.mxu0 0
        %1824 = vmatprep.subr.bf16.mxu0 0
        %1825 = vmatpush1.bf16.xpose.msra.mxu0 0
        %1826 = vmatprep.subr.bf16.mxu0 0
        %1827 = vmatpush1.bf16.xpose.msra.mxu0 0
        %1828 = vmatprep.subr.bf16.mxu0 0
        %1829 = vmatpush1.bf16.xpose.msra.mxu0 0
        %1830 = vmatprep.subr.bf16.mxu0 0
        %1831 = vmatpush1.bf16.xpose.msra.mxu0 0
        %1832 = vmatprep.subr.bf16.mxu0 0
        %1833 = vmatpush1.bf16.xpose.msra.mxu0 0
        %1834 = vmatprep.subr.bf16.mxu0 0
        %1835 = vmatpush1.bf16.xpose.msra.mxu0 0
        %1836 = vmatprep.subr.bf16.mxu0 0
        %1837 = vmatpush1.bf16.xpose.msra.mxu0 0
        %1838 = vmatprep.subr.bf16.mxu0 0
        %1839 = vmatpush1.bf16.xpose.msra.mxu0 0
        %1840 = vmatprep.subr.bf16.mxu0 0
        %1841 = vmatpush1.bf16.xpose.msra.mxu0 0
        %1842 = vmatprep.mubr.bf16.mxu0 0
        %1843 = vmatmul.mubr.bf16.gmra.mrb[0].mxu0 %v1805
        %v1844 = vpop.f32.mrb[0].mxu0
        %v1845 = vadd.f32 0.0, %v1844
        %v1846 = vpop.f32.mrb[0].mxu0
        %v1847 = vpop.f32.mrb[0].mxu0
        %v1848 = vadd.f32 0.0, %v1847
        %v1849 = vpop.f32.mrb[0].mxu0
        %1850 = vdwg.mxu0
        %v1852 = vsel %vm1709, %v1244, 0
        %v1855 = vsel %vm1709, %v1476, 0
        %1857 = vmatprep.subr.bf16.mxu0 0
        %1858 = vmatpush1.bf16.xpose.msra.mxu0 %v1855
        %1859 = vmatprep.subr.bf16.mxu0 0
        %1860 = vmatpush1.bf16.xpose.msra.mxu0 0
        %1861 = vmatprep.subr.bf16.mxu0 0
        %1862 = vmatpush1.bf16.xpose.msra.mxu0 0
        %1863 = vmatprep.subr.bf16.mxu0 0
        %1864 = vmatpush1.bf16.xpose.msra.mxu0 0
        %1865 = vmatprep.subr.bf16.mxu0 0
        %1866 = vmatpush1.bf16.xpose.msra.mxu0 0
        %1867 = vmatprep.subr.bf16.mxu0 0
        %1868 = vmatpush1.bf16.xpose.msra.mxu0 0
        %1869 = vmatprep.subr.bf16.mxu0 0
        %1870 = vmatpush1.bf16.xpose.msra.mxu0 0
        %1871 = vmatprep.subr.bf16.mxu0 0
        %1872 = vmatpush1.bf16.xpose.msra.mxu0 0
        %1873 = vmatprep.subr.bf16.mxu0 0
        %1874 = vmatpush1.bf16.xpose.msra.mxu0 0
        %1875 = vmatprep.subr.bf16.mxu0 0
        %1876 = vmatpush1.bf16.xpose.msra.mxu0 0
        %1877 = vmatprep.subr.bf16.mxu0 0
        %1878 = vmatpush1.bf16.xpose.msra.mxu0 0
        %1879 = vmatprep.subr.bf16.mxu0 0
        %1880 = vmatpush1.bf16.xpose.msra.mxu0 0
        %1881 = vmatprep.subr.bf16.mxu0 0
        %1882 = vmatpush1.bf16.xpose.msra.mxu0 0
        %1883 = vmatprep.subr.bf16.mxu0 0
        %1884 = vmatpush1.bf16.xpose.msra.mxu0 0
        %1885 = vmatprep.subr.bf16.mxu0 0
        %1886 = vmatpush1.bf16.xpose.msra.mxu0 0
        %1887 = vmatprep.subr.bf16.mxu0 0
        %1888 = vmatpush1.bf16.xpose.msra.mxu0 0
        %1889 = vmatprep.mubr.bf16.mxu0 0
        %1890 = vmatmul.mubr.bf16.gmra.mrb[0].mxu0 %v1852
        %v1891 = vpop.f32.mrb[0].mxu0
        %v1892 = vadd.f32 0.0, %v1891
        %v1893 = vpop.f32.mrb[0].mxu0
        %v1894 = vpop.f32.mrb[0].mxu0
        %v1895 = vadd.f32 0.0, %v1894
        %v1896 = vpop.f32.mrb[0].mxu0
        %1897 = vdwg.mxu0
        %v1898 = vmul.f32 %v1751, 0.35355338
        %v1899 = vmul.f32 %v1754, 0.35355338
        %v1900 = vmul.f32 %v1798, 0.35355338
        %v1901 = vmul.f32 %v1801, 0.35355338
        %v1902 = vmul.f32 %v1845, 0.35355338
        %v1903 = vmul.f32 %v1848, 0.35355338
        %v1904 = vmul.f32 %v1892, 0.35355338
        %v1905 = vmul.f32 %v1895, 0.35355338
        %vm1906 = vcmask 97280
        %v1907 = vsel %vm1906, %v1898, -inf
        %1908 = vmax.xlane.f32.xlu0 %v1907
        %v1909 = vpop.xlane.xlu0 %1908
        %vm1910 = vcmask 93184
        %v1911 = vsel %vm1910, %v1899, -inf
        %1912 = vmax.xlane.f32.xlu0 %v1911
        %v1913 = vpop.xlane.xlu0 %1912
        %v1914 = vsel %vm1906, %v1900, -inf
        %1915 = vmax.xlane.f32.xlu0 %v1914
        %v1916 = vpop.xlane.xlu0 %1915
        %v1917 = vsel %vm1910, %v1901, -inf
        %1918 = vmax.xlane.f32.xlu0 %v1917
        %v1919 = vpop.xlane.xlu0 %1918
        %v1920 = vsel %vm1906, %v1902, -inf
        %1921 = vmax.xlane.f32.xlu0 %v1920
        %v1922 = vpop.xlane.xlu0 %1921
        %v1923 = vsel %vm1910, %v1903, -inf
        %1924 = vmax.xlane.f32.xlu0 %v1923
        %v1925 = vpop.xlane.xlu0 %1924
        %v1926 = vsel %vm1906, %v1904, -inf
        %1927 = vmax.xlane.f32.xlu0 %v1926
        %v1928 = vpop.xlane.xlu0 %1927
        %v1929 = vsel %vm1910, %v1905, -inf
        %1930 = vmax.xlane.f32.xlu0 %v1929
        %v1931 = vpop.xlane.xlu0 %1930
        %v1932 = vsub.f32 %v1898, %v1909
        %v1933 = vsub.f32 %v1899, %v1913
        %v1934 = vsub.f32 %v1900, %v1916
        %v1935 = vsub.f32 %v1901, %v1919
        %v1936 = vsub.f32 %v1902, %v1922
        %v1937 = vsub.f32 %v1903, %v1925
        %v1938 = vsub.f32 %v1904, %v1928
        %v1939 = vsub.f32 %v1905, %v1931
        %v1940 = vmul.f32 %v1932, 1.442695
        %v1941 = vpow.pop %v1940
        %v1942 = vmul.f32 %v1933, 1.442695
        %v1943 = vpow.pop %v1942
        %v1944 = vmul.f32 %v1934, 1.442695
        %v1945 = vpow.pop %v1944
        %v1946 = vmul.f32 %v1935, 1.442695
        %v1947 = vpow.pop %v1946
        %v1948 = vmul.f32 %v1936, 1.442695
        %v1949 = vpow.pop %v1948
        %v1950 = vmul.f32 %v1937, 1.442695
        %v1951 = vpow.pop %v1950
        %v1952 = vmul.f32 %v1938, 1.442695
        %v1953 = vpow.pop %v1952
        %v1954 = vmul.f32 %v1939, 1.442695
        %v1955 = vpow.pop %v1954
        %v1956 = vsel %vm1906, %v1941, 0.0
        %1957 = vadd.xlane.f32.xlu0 %v1956
        %v1958 = vpop.xlane.xlu0 %1957
        %v1959 = vsel %vm1910, %v1943, 0.0
        %1960 = vadd.xlane.f32.xlu0 %v1959
        %v1961 = vpop.xlane.xlu0 %1960
        %v1962 = vsel %vm1906, %v1945, 0.0
        %1963 = vadd.xlane.f32.xlu0 %v1962
        %v1964 = vpop.xlane.xlu0 %1963
        %v1965 = vsel %vm1910, %v1947, 0.0
        %1966 = vadd.xlane.f32.xlu0 %v1965
        %v1967 = vpop.xlane.xlu0 %1966
        %v1968 = vsel %vm1906, %v1949, 0.0
        %1969 = vadd.xlane.f32.xlu0 %v1968
        %v1970 = vpop.xlane.xlu0 %1969
        %v1971 = vsel %vm1910, %v1951, 0.0
        %1972 = vadd.xlane.f32.xlu0 %v1971
        %v1973 = vpop.xlane.xlu0 %1972
        %v1974 = vsel %vm1906, %v1953, 0.0
        %1975 = vadd.xlane.f32.xlu0 %v1974
        %v1976 = vpop.xlane.xlu0 %1975
        %v1977 = vsel %vm1910, %v1955, 0.0
        %1978 = vadd.xlane.f32.xlu0 %v1977
        %v1979 = vpop.xlane.xlu0 %1978
        %v1980 = vrcp.pop %v1958
        %v1981 = vrcp.pop %v1961
        %v1982 = vrcp.pop %v1964
        %v1983 = vrcp.pop %v1967
        %v1984 = vrcp.pop %v1970
        %v1985 = vrcp.pop %v1973
        %v1986 = vrcp.pop %v1976
        %v1987 = vrcp.pop %v1979
        %v1988 = vmul.f32 %v1941, %v1980
        %v1989 = vmul.f32 %v1943, %v1981
        %v1990 = vmul.f32 %v1945, %v1982
        %v1991 = vmul.f32 %v1947, %v1983
        %v1992 = vmul.f32 %v1949, %v1984
        %v1993 = vmul.f32 %v1951, %v1985
        %v1994 = vmul.f32 %v1953, %v1986
        %v1995 = vmul.f32 %v1955, %v1987
        %v1996 = vpack.c.bf16 %v1989, %v1988
        %v1997 = vpack.c.bf16 %v1991, %v1990
        %v1998 = vpack.c.bf16 %v1993, %v1992
        %v1999 = vpack.c.bf16 %v1995, %v1994
        %v2001 = vsel %vm1906, %v1996, 0
        %vm2003 = vcmask 1045504
        %v2005 = vsel %vm2003, %v1705, 0
        %2007 = vmatprep.subr.bf16.mxu0 0
        %2008 = vmatpush1.bf16.msra.mxu0 %v2005
        %2009 = vmatprep.subr.bf16.mxu0 0
        %2010 = vmatpush1.bf16.msra.mxu0 0
        %2011 = vmatprep.subr.bf16.mxu0 0
        %2012 = vmatpush1.bf16.msra.mxu0 0
        %2013 = vmatprep.subr.bf16.mxu0 0
        %2014 = vmatpush1.bf16.msra.mxu0 0
        %2015 = vmatprep.subr.bf16.mxu0 0
        %2016 = vmatpush1.bf16.msra.mxu0 0
        %2017 = vmatprep.subr.bf16.mxu0 0
        %2018 = vmatpush1.bf16.msra.mxu0 0
        %2019 = vmatprep.subr.bf16.mxu0 0
        %2020 = vmatpush1.bf16.msra.mxu0 0
        %2021 = vmatprep.subr.bf16.mxu0 0
        %2022 = vmatpush1.bf16.msra.mxu0 0
        %2023 = vmatprep.subr.bf16.mxu0 0
        %2024 = vmatpush1.bf16.msra.mxu0 0
        %2025 = vmatprep.subr.bf16.mxu0 0
        %2026 = vmatpush1.bf16.msra.mxu0 0
        %2027 = vmatprep.subr.bf16.mxu0 0
        %2028 = vmatpush1.bf16.msra.mxu0 0
        %2029 = vmatprep.subr.bf16.mxu0 0
        %2030 = vmatpush1.bf16.msra.mxu0 0
        %2031 = vmatprep.subr.bf16.mxu0 0
        %2032 = vmatpush1.bf16.msra.mxu0 0
        %2033 = vmatprep.subr.bf16.mxu0 0
        %2034 = vmatpush1.bf16.msra.mxu0 0
        %2035 = vmatprep.subr.bf16.mxu0 0
        %2036 = vmatpush1.bf16.msra.mxu0 0
        %2037 = vmatprep.subr.bf16.mxu0 0
        %2038 = vmatpush1.bf16.msra.mxu0 0
        %2039 = vmatprep.mubr.bf16.mxu0 0
        %2040 = vmatmul.mubr.bf16.gmra.mrb[0].mxu0 %v2001
        %v2041 = vpop.f32.mrb[0].mxu0
        %v2042 = vadd.f32 0.0, %v2041
        %v2043 = vpop.f32.mrb[0].mxu0
        %v2044 = vpop.f32.mrb[0].mxu0
        %v2045 = vadd.f32 0.0, %v2044
        %v2046 = vpop.f32.mrb[0].mxu0
        %2047 = vdwg.mxu0
        %v2049 = vsel %vm1906, %v1997, 0
        %v2052 = vsel %vm2003, %v1706, 0
        %2054 = vmatprep.subr.bf16.mxu0 0
        %2055 = vmatpush1.bf16.msra.mxu0 %v2052
        %2056 = vmatprep.subr.bf16.mxu0 0
        %2057 = vmatpush1.bf16.msra.mxu0 0
        %2058 = vmatprep.subr.bf16.mxu0 0
        %2059 = vmatpush1.bf16.msra.mxu0 0
        %2060 = vmatprep.subr.bf16.mxu0 0
        %2061 = vmatpush1.bf16.msra.mxu0 0
        %2062 = vmatprep.subr.bf16.mxu0 0
        %2063 = vmatpush1.bf16.msra.mxu0 0
        %2064 = vmatprep.subr.bf16.mxu0 0
        %2065 = vmatpush1.bf16.msra.mxu0 0
        %2066 = vmatprep.subr.bf16.mxu0 0
        %2067 = vmatpush1.bf16.msra.mxu0 0
        %2068 = vmatprep.subr.bf16.mxu0 0
        %2069 = vmatpush1.bf16.msra.mxu0 0
        %2070 = vmatprep.subr.bf16.mxu0 0
        %2071 = vmatpush1.bf16.msra.mxu0 0
        %2072 = vmatprep.subr.bf16.mxu0 0
        %2073 = vmatpush1.bf16.msra.mxu0 0
        %2074 = vmatprep.subr.bf16.mxu0 0
        %2075 = vmatpush1.bf16.msra.mxu0 0
        %2076 = vmatprep.subr.bf16.mxu0 0
        %2077 = vmatpush1.bf16.msra.mxu0 0
        %2078 = vmatprep.subr.bf16.mxu0 0
        %2079 = vmatpush1.bf16.msra.mxu0 0
        %2080 = vmatprep.subr.bf16.mxu0 0
        %2081 = vmatpush1.bf16.msra.mxu0 0
        %2082 = vmatprep.subr.bf16.mxu0 0
        %2083 = vmatpush1.bf16.msra.mxu0 0
        %2084 = vmatprep.subr.bf16.mxu0 0
        %2085 = vmatpush1.bf16.msra.mxu0 0
        %2086 = vmatprep.mubr.bf16.mxu0 0
        %2087 = vmatmul.mubr.bf16.gmra.mrb[0].mxu0 %v2049
        %v2088 = vpop.f32.mrb[0].mxu0
        %v2089 = vadd.f32 0.0, %v2088
        %v2090 = vpop.f32.mrb[0].mxu0
        %v2091 = vpop.f32.mrb[0].mxu0
        %v2092 = vadd.f32 0.0, %v2091
        %v2093 = vpop.f32.mrb[0].mxu0
        %2094 = vdwg.mxu0
        %v2096 = vsel %vm1906, %v1998, 0
        %v2099 = vsel %vm2003, %v1707, 0
        %2101 = vmatprep.subr.bf16.mxu0 0
        %2102 = vmatpush1.bf16.msra.mxu0 %v2099
        %2103 = vmatprep.subr.bf16.mxu0 0
        %2104 = vmatpush1.bf16.msra.mxu0 0
        %2105 = vmatprep.subr.bf16.mxu0 0
        %2106 = vmatpush1.bf16.msra.mxu0 0
        %2107 = vmatprep.subr.bf16.mxu0 0
        %2108 = vmatpush1.bf16.msra.mxu0 0
        %2109 = vmatprep.subr.bf16.mxu0 0
        %2110 = vmatpush1.bf16.msra.mxu0 0
        %2111 = vmatprep.subr.bf16.mxu0 0
        %2112 = vmatpush1.bf16.msra.mxu0 0
        %2113 = vmatprep.subr.bf16.mxu0 0
        %2114 = vmatpush1.bf16.msra.mxu0 0
        %2115 = vmatprep.subr.bf16.mxu0 0
        %2116 = vmatpush1.bf16.msra.mxu0 0
        %2117 = vmatprep.subr.bf16.mxu0 0
        %2118 = vmatpush1.bf16.msra.mxu0 0
        %2119 = vmatprep.subr.bf16.mxu0 0
        %2120 = vmatpush1.bf16.msra.mxu0 0
        %2121 = vmatprep.subr.bf16.mxu0 0
        %2122 = vmatpush1.bf16.msra.mxu0 0
        %2123 = vmatprep.subr.bf16.mxu0 0
        %2124 = vmatpush1.bf16.msra.mxu0 0
        %2125 = vmatprep.subr.bf16.mxu0 0
        %2126 = vmatpush1.bf16.msra.mxu0 0
        %2127 = vmatprep.subr.bf16.mxu0 0
        %2128 = vmatpush1.bf16.msra.mxu0 0
        %2129 = vmatprep.subr.bf16.mxu0 0
        %2130 = vmatpush1.bf16.msra.mxu0 0
        %2131 = vmatprep.subr.bf16.mxu0 0
        %2132 = vmatpush1.bf16.msra.mxu0 0
        %2133 = vmatprep.mubr.bf16.mxu0 0
        %2134 = vmatmul.mubr.bf16.gmra.mrb[0].mxu0 %v2096
        %v2135 = vpop.f32.mrb[0].mxu0
        %v2136 = vadd.f32 0.0, %v2135
        %v2137 = vpop.f32.mrb[0].mxu0
        %v2138 = vpop.f32.mrb[0].mxu0
        %v2139 = vadd.f32 0.0, %v2138
        %v2140 = vpop.f32.mrb[0].mxu0
        %2141 = vdwg.mxu0
        %v2143 = vsel %vm1906, %v1999, 0
        %v2146 = vsel %vm2003, %v1708, 0
        %2148 = vmatprep.subr.bf16.mxu0 0
        %2149 = vmatpush1.bf16.msra.mxu0 %v2146
        %2150 = vmatprep.subr.bf16.mxu0 0
        %2151 = vmatpush1.bf16.msra.mxu0 0
        %2152 = vmatprep.subr.bf16.mxu0 0
        %2153 = vmatpush1.bf16.msra.mxu0 0
        %2154 = vmatprep.subr.bf16.mxu0 0
        %2155 = vmatpush1.bf16.msra.mxu0 0
        %2156 = vmatprep.subr.bf16.mxu0 0
        %2157 = vmatpush1.bf16.msra.mxu0 0
        %2158 = vmatprep.subr.bf16.mxu0 0
        %2159 = vmatpush1.bf16.msra.mxu0 0
        %2160 = vmatprep.subr.bf16.mxu0 0
        %2161 = vmatpush1.bf16.msra.mxu0 0
        %2162 = vmatprep.subr.bf16.mxu0 0
        %2163 = vmatpush1.bf16.msra.mxu0 0
        %2164 = vmatprep.subr.bf16.mxu0 0
        %2165 = vmatpush1.bf16.msra.mxu0 0
        %2166 = vmatprep.subr.bf16.mxu0 0
        %2167 = vmatpush1.bf16.msra.mxu0 0
        %2168 = vmatprep.subr.bf16.mxu0 0
        %2169 = vmatpush1.bf16.msra.mxu0 0
        %2170 = vmatprep.subr.bf16.mxu0 0
        %2171 = vmatpush1.bf16.msra.mxu0 0
        %2172 = vmatprep.subr.bf16.mxu0 0
        %2173 = vmatpush1.bf16.msra.mxu0 0
        %2174 = vmatprep.subr.bf16.mxu0 0
        %2175 = vmatpush1.bf16.msra.mxu0 0
        %2176 = vmatprep.subr.bf16.mxu0 0
        %2177 = vmatpush1.bf16.msra.mxu0 0
        %2178 = vmatprep.subr.bf16.mxu0 0
        %2179 = vmatpush1.bf16.msra.mxu0 0
        %2180 = vmatprep.mubr.bf16.mxu0 0
        %2181 = vmatmul.mubr.bf16.gmra.mrb[0].mxu0 %v2143
        %v2182 = vpop.f32.mrb[0].mxu0
        %v2183 = vadd.f32 0.0, %v2182
        %v2184 = vpop.f32.mrb[0].mxu0
        %v2185 = vpop.f32.mrb[0].mxu0
        %v2186 = vadd.f32 0.0, %v2185
        %v2187 = vpop.f32.mrb[0].mxu0
        %2188 = vdwg.mxu0
        %v2189 = vld [vmem:[%s809] sm:$0xf]
        %v2190 = vld [vmem:[%s809 + $0x4] sm:$0xf]
        %v2191 = vld [vmem:[%s809 + $0x8] sm:$0xf]
        %v2192 = vld [vmem:[%s809 + $0xc] sm:$0xf]
        %v2193 = vpack.c.bf16 %v2045, %v2042
        %v2194 = vpack.c.bf16 %v2092, %v2089
        %v2195 = vpack.c.bf16 %v2139, %v2136
        %v2196 = vpack.c.bf16 %v2186, %v2183
        %v2198 = vsel %vm1709, %v2193, 0
        %vm2200 = vcmask 1043456
        %v2202 = vsel %vm2200, %v2189, 0
        %2204 = vmatprep.subr.bf16.mxu0 0
        %2205 = vmatpush1.bf16.msra.mxu0 %v2202
        %2206 = vmatprep.subr.bf16.mxu0 0
        %2207 = vmatpush1.bf16.msra.mxu0 0
        %2208 = vmatprep.subr.bf16.mxu0 0
        %2209 = vmatpush1.bf16.msra.mxu0 0
        %2210 = vmatprep.subr.bf16.mxu0 0
        %2211 = vmatpush1.bf16.msra.mxu0 0
        %2212 = vmatprep.subr.bf16.mxu0 0
        %2213 = vmatpush1.bf16.msra.mxu0 0
        %2214 = vmatprep.subr.bf16.mxu0 0
        %2215 = vmatpush1.bf16.msra.mxu0 0
        %2216 = vmatprep.subr.bf16.mxu0 0
        %2217 = vmatpush1.bf16.msra.mxu0 0
        %2218 = vmatprep.subr.bf16.mxu0 0
        %2219 = vmatpush1.bf16.msra.mxu0 0
        %2220 = vmatprep.subr.bf16.mxu0 0
        %2221 = vmatpush1.bf16.msra.mxu0 0
        %2222 = vmatprep.subr.bf16.mxu0 0
        %2223 = vmatpush1.bf16.msra.mxu0 0
        %2224 = vmatprep.subr.bf16.mxu0 0
        %2225 = vmatpush1.bf16.msra.mxu0 0
        %2226 = vmatprep.subr.bf16.mxu0 0
        %2227 = vmatpush1.bf16.msra.mxu0 0
        %2228 = vmatprep.subr.bf16.mxu0 0
        %2229 = vmatpush1.bf16.msra.mxu0 0
        %2230 = vmatprep.subr.bf16.mxu0 0
        %2231 = vmatpush1.bf16.msra.mxu0 0
        %2232 = vmatprep.subr.bf16.mxu0 0
        %2233 = vmatpush1.bf16.msra.mxu0 0
        %2234 = vmatprep.subr.bf16.mxu0 0
        %2235 = vmatpush1.bf16.msra.mxu0 0
        %2236 = vmatprep.mubr.bf16.mxu0 0
        %2237 = vmatmul.mubr.bf16.gmra.mrb[0].mxu0 %v2198
        %v2238 = vpop.f32.mrb[0].mxu0
        %v2239 = vadd.f32 0.0, %v2238
        %v2240 = vpop.f32.mrb[0].mxu0
        %v2241 = vpop.f32.mrb[0].mxu0
        %v2242 = vadd.f32 0.0, %v2241
        %v2243 = vpop.f32.mrb[0].mxu0
        %2244 = vdwg.mxu0
        %v2246 = vsel %vm1709, %v2194, 0
        %v2249 = vsel %vm2200, %v2190, 0
        %2251 = vmatprep.subr.bf16.mxu0 0
        %2252 = vmatpush1.bf16.msra.mxu0 %v2249
        %2253 = vmatprep.subr.bf16.mxu0 0
        %2254 = vmatpush1.bf16.msra.mxu0 0
        %2255 = vmatprep.subr.bf16.mxu0 0
        %2256 = vmatpush1.bf16.msra.mxu0 0
        %2257 = vmatprep.subr.bf16.mxu0 0
        %2258 = vmatpush1.bf16.msra.mxu0 0
        %2259 = vmatprep.subr.bf16.mxu0 0
        %2260 = vmatpush1.bf16.msra.mxu0 0
        %2261 = vmatprep.subr.bf16.mxu0 0
        %2262 = vmatpush1.bf16.msra.mxu0 0
        %2263 = vmatprep.subr.bf16.mxu0 0
        %2264 = vmatpush1.bf16.msra.mxu0 0
        %2265 = vmatprep.subr.bf16.mxu0 0
        %2266 = vmatpush1.bf16.msra.mxu0 0
        %2267 = vmatprep.subr.bf16.mxu0 0
        %2268 = vmatpush1.bf16.msra.mxu0 0
        %2269 = vmatprep.subr.bf16.mxu0 0
        %2270 = vmatpush1.bf16.msra.mxu0 0
        %2271 = vmatprep.subr.bf16.mxu0 0
        %2272 = vmatpush1.bf16.msra.mxu0 0
        %2273 = vmatprep.subr.bf16.mxu0 0
        %2274 = vmatpush1.bf16.msra.mxu0 0
        %2275 = vmatprep.subr.bf16.mxu0 0
        %2276 = vmatpush1.bf16.msra.mxu0 0
        %2277 = vmatprep.subr.bf16.mxu0 0
        %2278 = vmatpush1.bf16.msra.mxu0 0
        %2279 = vmatprep.subr.bf16.mxu0 0
        %2280 = vmatpush1.bf16.msra.mxu0 0
        %2281 = vmatprep.subr.bf16.mxu0 0
        %2282 = vmatpush1.bf16.msra.mxu0 0
        %2283 = vmatprep.mubr.bf16.mxu0 0
        %2284 = vmatmul.mubr.bf16.gmra.mrb[0].mxu0 %v2246
        %v2285 = vpop.f32.mrb[0].mxu0
        %v2286 = vadd.f32 0.0, %v2285
        %v2287 = vpop.f32.mrb[0].mxu0
        %v2288 = vpop.f32.mrb[0].mxu0
        %v2289 = vadd.f32 0.0, %v2288
        %v2290 = vpop.f32.mrb[0].mxu0
        %2291 = vdwg.mxu0
        %v2293 = vsel %vm1709, %v2195, 0
        %v2296 = vsel %vm2200, %v2191, 0
        %2298 = vmatprep.subr.bf16.mxu0 0
        %2299 = vmatpush1.bf16.msra.mxu0 %v2296
        %2300 = vmatprep.subr.bf16.mxu0 0
        %2301 = vmatpush1.bf16.msra.mxu0 0
        %2302 = vmatprep.subr.bf16.mxu0 0
        %2303 = vmatpush1.bf16.msra.mxu0 0
        %2304 = vmatprep.subr.bf16.mxu0 0
        %2305 = vmatpush1.bf16.msra.mxu0 0
        %2306 = vmatprep.subr.bf16.mxu0 0
        %2307 = vmatpush1.bf16.msra.mxu0 0
        %2308 = vmatprep.subr.bf16.mxu0 0
        %2309 = vmatpush1.bf16.msra.mxu0 0
        %2310 = vmatprep.subr.bf16.mxu0 0
        %2311 = vmatpush1.bf16.msra.mxu0 0
        %2312 = vmatprep.subr.bf16.mxu0 0
        %2313 = vmatpush1.bf16.msra.mxu0 0
        %2314 = vmatprep.subr.bf16.mxu0 0
        %2315 = vmatpush1.bf16.msra.mxu0 0
        %2316 = vmatprep.subr.bf16.mxu0 0
        %2317 = vmatpush1.bf16.msra.mxu0 0
        %2318 = vmatprep.subr.bf16.mxu0 0
        %2319 = vmatpush1.bf16.msra.mxu0 0
        %2320 = vmatprep.subr.bf16.mxu0 0
        %2321 = vmatpush1.bf16.msra.mxu0 0
        %2322 = vmatprep.subr.bf16.mxu0 0
        %2323 = vmatpush1.bf16.msra.mxu0 0
        %2324 = vmatprep.subr.bf16.mxu0 0
        %2325 = vmatpush1.bf16.msra.mxu0 0
        %2326 = vmatprep.subr.bf16.mxu0 0
        %2327 = vmatpush1.bf16.msra.mxu0 0
        %2328 = vmatprep.subr.bf16.mxu0 0
        %2329 = vmatpush1.bf16.msra.mxu0 0
        %2330 = vmatprep.mubr.bf16.mxu0 0
        %2331 = vmatmul.mubr.bf16.gmra.mrb[0].mxu0 %v2293
        %v2332 = vpop.f32.mrb[0].mxu0
        %v2333 = vadd.f32 0.0, %v2332
        %v2334 = vpop.f32.mrb[0].mxu0
        %v2335 = vpop.f32.mrb[0].mxu0
        %v2336 = vadd.f32 0.0, %v2335
        %v2337 = vpop.f32.mrb[0].mxu0
        %2338 = vdwg.mxu0
        %v2340 = vsel %vm1709, %v2196, 0
        %v2343 = vsel %vm2200, %v2192, 0
        %2345 = vmatprep.subr.bf16.mxu0 0
        %2346 = vmatpush1.bf16.msra.mxu0 %v2343
        %2347 = vmatprep.subr.bf16.mxu0 0
        %2348 = vmatpush1.bf16.msra.mxu0 0
        %2349 = vmatprep.subr.bf16.mxu0 0
        %2350 = vmatpush1.bf16.msra.mxu0 0
        %2351 = vmatprep.subr.bf16.mxu0 0
        %2352 = vmatpush1.bf16.msra.mxu0 0
        %2353 = vmatprep.subr.bf16.mxu0 0
        %2354 = vmatpush1.bf16.msra.mxu0 0
        %2355 = vmatprep.subr.bf16.mxu0 0
        %2356 = vmatpush1.bf16.msra.mxu0 0
        %2357 = vmatprep.subr.bf16.mxu0 0
        %2358 = vmatpush1.bf16.msra.mxu0 0
        %2359 = vmatprep.subr.bf16.mxu0 0
        %2360 = vmatpush1.bf16.msra.mxu0 0
        %2361 = vmatprep.subr.bf16.mxu0 0
        %2362 = vmatpush1.bf16.msra.mxu0 0
        %2363 = vmatprep.subr.bf16.mxu0 0
        %2364 = vmatpush1.bf16.msra.mxu0 0
        %2365 = vmatprep.subr.bf16.mxu0 0
        %2366 = vmatpush1.bf16.msra.mxu0 0
        %2367 = vmatprep.subr.bf16.mxu0 0
        %2368 = vmatpush1.bf16.msra.mxu0 0
        %2369 = vmatprep.subr.bf16.mxu0 0
        %2370 = vmatpush1.bf16.msra.mxu0 0
        %2371 = vmatprep.subr.bf16.mxu0 0
        %2372 = vmatpush1.bf16.msra.mxu0 0
        %2373 = vmatprep.subr.bf16.mxu0 0
        %2374 = vmatpush1.bf16.msra.mxu0 0
        %2375 = vmatprep.subr.bf16.mxu0 0
        %2376 = vmatpush1.bf16.msra.mxu0 0
        %2377 = vmatprep.mubr.bf16.mxu0 0
        %2378 = vmatmul.mubr.bf16.gmra.mrb[0].mxu0 %v2340
        %v2379 = vpop.f32.mrb[0].mxu0
        %v2380 = vadd.f32 0.0, %v2379
        %v2381 = vpop.f32.mrb[0].mxu0
        %v2382 = vpop.f32.mrb[0].mxu0
        %v2383 = vadd.f32 0.0, %v2382
        %v2384 = vpop.f32.mrb[0].mxu0
        %2385 = vdwg.mxu0
        %v2386 = vsel %vm904, %v2239, 0.0
        %v2387 = vsel %vm904, %v2286, 0.0
        %v2388 = vadd.f32 %v2386, %v2387
        %v2389 = vsel %vm904, %v2333, 0.0
        %v2390 = vadd.f32 %v2388, %v2389
        %v2391 = vsel %vm904, %v2380, 0.0
        %v2392 = vadd.f32 %v2390, %v2391
        %v2393 = vsel %vm908, %v2242, 0.0
        %v2394 = vsel %vm908, %v2289, 0.0
        %v2395 = vadd.f32 %v2393, %v2394
        %v2396 = vsel %vm908, %v2336, 0.0
        %v2397 = vadd.f32 %v2395, %v2396
        %v2398 = vsel %vm908, %v2383, 0.0
        %v2399 = vadd.f32 %v2397, %v2398
        %v2400 = vld [vmem:[%s812] sm:$0x1]
        %v2402 = vlaneseq
        %v2403 = vshrl.u32 %v2402, 7
        %v2404 = vsub.s32 0, %v2403
        %v2405 = vrot.slane %v2400, %v2404
        %v2407 = vadd.f32 %v2392, %v2405
        %v2408 = vadd.f32 %v2399, %v2405
        %v2409 = vadd.f32 %v900, %v2407
        %v2410 = vadd.f32 %v901, %v2408
        %v2411 = vld [vmem:[%s815] sm:$0x1]
        %v2412 = vld [vmem:[%s818] sm:$0x1]
        %v2413 = vsel %vm904, %v2409, 0.0
        %2414 = vadd.xlane.f32.xlu0 %v2413
        %v2415 = vpop.xlane.xlu0 %2414
        %v2416 = vsel %vm908, %v2410, 0.0
        %2417 = vadd.xlane.f32.xlu0 %v2416
        %v2418 = vpop.xlane.xlu0 %2417
        %v2419 = vmul.f32 %v2415, %v912
        %v2420 = vmul.f32 %v2418, %v912
        %v2421 = vsub.f32 %v2409, %v2419
        %v2422 = vsub.f32 %v2410, %v2420
        %v2423 = vmul.f32 %v2421, %v2421
        %v2424 = vmul.f32 %v2422, %v2422
        %v2425 = vsel %vm904, %v2423, 0.0
        %2426 = vadd.xlane.f32.xlu0 %v2425
        %v2427 = vpop.xlane.xlu0 %2426
        %v2428 = vsel %vm908, %v2424, 0.0
        %2429 = vadd.xlane.f32.xlu0 %v2428
        %v2430 = vpop.xlane.xlu0 %2429
        %v2431 = vmul.f32 %v2427, %v912
        %v2432 = vmul.f32 %v2430, %v912
        %v2433 = vadd.f32 %v2431, 1e-05
        %v2434 = vadd.f32 %v2432, 1e-05
        %v2435 = vrsqrt.pop %v2433
        %v2436 = vrsqrt.pop %v2434
        %v2437 = vmul.f32 %v2421, %v2435
        %v2438 = vmul.f32 %v2422, %v2436
        %v2440 = vlaneseq
        %v2441 = vshrl.u32 %v2440, 7
        %v2442 = vsub.s32 0, %v2441
        %v2443 = vrot.slane %v2411, %v2442
        %v2445 = vmul.f32 %v2437, %v2443
        %v2446 = vmul.f32 %v2438, %v2443
        %v2448 = vlaneseq
        %v2449 = vshrl.u32 %v2448, 7
        %v2450 = vsub.s32 0, %v2449
        %v2451 = vrot.slane %v2412, %v2450
        %v2453 = vadd.f32 %v2445, %v2451
        %v2454 = vadd.f32 %v2446, %v2451
        %v2455 = vpack.c.bf16 %v2454, %v2453
        %v2456 = vld [vmem:[%s823] sm:$0xf]
        %v2457 = vld [vmem:[%s823 + $0x4] sm:$0xf]
        %v2458 = vld [vmem:[%s823 + $0x8] sm:$0xf]
        %v2459 = vld [vmem:[%s823 + $0xc] sm:$0xf]
        %v2460 = vld [vmem:[%s826] sm:$0x1]
        %v2462 = vlaneseq
        %v2463 = vshrl.u32 %v2462, 7
        %v2464 = vsub.s32 0, %v2463
        %v2465 = vrot.slane %v2460, %v2464
        %v2471 = vunpack.c.l.b16 %v2456
        %v2472 = vunpack.c.l.b16 %v2457
        %v2473 = vunpack.c.l.b16 %v2458
        %v2474 = vunpack.c.l.b16 %v2459
        %v2475 = vpack.c.b16 %v2472, %v2471
        %v2476 = vpack.c.b16 %v2474, %v2473
        %v2480 = vsel %vm904, %v2455, 0
        %2482 = vmatprep.subr.bf16.mxu0 0
        %2483 = vmatpush1.bf16.msra.mxu0 %v2475
        %2484 = vmatprep.subr.bf16.mxu0 0
        %2485 = vmatpush1.bf16.msra.mxu0 %v2476
        %2486 = vmatprep.subr.bf16.mxu0 0
        %2487 = vmatpush1.bf16.msra.mxu0 0
        %2488 = vmatprep.subr.bf16.mxu0 0
        %2489 = vmatpush1.bf16.msra.mxu0 0
        %2490 = vmatprep.subr.bf16.mxu0 0
        %2491 = vmatpush1.bf16.msra.mxu0 0
        %2492 = vmatprep.subr.bf16.mxu0 0
        %2493 = vmatpush1.bf16.msra.mxu0 0
        %2494 = vmatprep.subr.bf16.mxu0 0
        %2495 = vmatpush1.bf16.msra.mxu0 0
        %2496 = vmatprep.subr.bf16.mxu0 0
        %2497 = vmatpush1.bf16.msra.mxu0 0
        %2498 = vmatprep.subr.bf16.mxu0 0
        %2499 = vmatpush1.bf16.msra.mxu0 0
        %2500 = vmatprep.subr.bf16.mxu0 0
        %2501 = vmatpush1.bf16.msra.mxu0 0
        %2502 = vmatprep.subr.bf16.mxu0 0
        %2503 = vmatpush1.bf16.msra.mxu0 0
        %2504 = vmatprep.subr.bf16.mxu0 0
        %2505 = vmatpush1.bf16.msra.mxu0 0
        %2506 = vmatprep.subr.bf16.mxu0 0
        %2507 = vmatpush1.bf16.msra.mxu0 0
        %2508 = vmatprep.subr.bf16.mxu0 0
        %2509 = vmatpush1.bf16.msra.mxu0 0
        %2510 = vmatprep.subr.bf16.mxu0 0
        %2511 = vmatpush1.bf16.msra.mxu0 0
        %2512 = vmatprep.subr.bf16.mxu0 0
        %2513 = vmatpush1.bf16.msra.mxu0 0
        %2514 = vmatprep.mubr.bf16.mxu0 0
        %2515 = vmatmul.mubr.bf16.gmra.mrb[0].mxu0 %v2480
        %v2516 = vpop.f32.mrb[0].mxu0
        %v2517 = vadd.f32 %v2465, %v2516
        %v2518 = vpop.f32.mrb[0].mxu0
        %v2519 = vpop.f32.mrb[0].mxu0
        %v2520 = vadd.f32 %v2465, %v2519
        %v2521 = vpop.f32.mrb[0].mxu0
        %2522 = vdwg.mxu0
        %v2523 = vmul.f32 %v2517, 1.702
        %v2524 = vmul.f32 %v2520, 1.702
        %v2525 = vxor.u32 %v2523, 2147483648
        %v2526 = vxor.u32 %v2524, 2147483648
        %v2527 = vmul.f32 %v2525, 1.442695
        %v2528 = vpow.pop %v2527
        %v2529 = vmul.f32 %v2526, 1.442695
        %v2530 = vpow.pop %v2529
        %v2531 = vadd.f32 %v2528, 1.0
        %v2532 = vadd.f32 %v2530, 1.0
        %v2533 = vrcp.pop %v2531
        %v2534 = vmul.f32 1.0, %v2533
        %v2535 = vrcp.pop %v2532
        %v2536 = vmul.f32 1.0, %v2535
        %v2537 = vmul.f32 %v2517, %v2534
        %v2538 = vmul.f32 %v2520, %v2536
        %v2539 = vpack.c.bf16 %v2538, %v2537
        %v2540 = vld [vmem:[%s831] sm:$0xf]
        %v2541 = vld [vmem:[%s831 + $0x4] sm:$0xf]
        %v2542 = vld [vmem:[%s831 + $0x8] sm:$0xf]
        %v2543 = vld [vmem:[%s831 + $0xc] sm:$0xf]
        %v2544 = vld [vmem:[%s831 + $0x10] sm:$0xf]
        %v2545 = vld [vmem:[%s831 + $0x14] sm:$0xf]
        %v2546 = vld [vmem:[%s831 + $0x18] sm:$0xf]
        %v2547 = vld [vmem:[%s831 + $0x1c] sm:$0xf]
        %v2548 = vld [vmem:[%s831 + $0x20] sm:$0xf]
        %v2549 = vld [vmem:[%s831 + $0x24] sm:$0xf]
        %v2550 = vld [vmem:[%s831 + $0x28] sm:$0xf]
        %v2551 = vld [vmem:[%s831 + $0x2c] sm:$0xf]
        %v2552 = vld [vmem:[%s831 + $0x30] sm:$0xf]
        %v2553 = vld [vmem:[%s831 + $0x34] sm:$0xf]
        %v2554 = vld [vmem:[%s831 + $0x38] sm:$0xf]
        %v2555 = vld [vmem:[%s831 + $0x3c] sm:$0xf]
        %v2556 = vld [vmem:[%s834] sm:$0x1]
        %v2558 = vlaneseq
        %v2559 = vshrl.u32 %v2558, 7
        %v2560 = vsub.s32 0, %v2559
        %v2561 = vrot.slane %v2556, %v2560
        %v2579 = vunpack.c.l.b16 %v2540
        %v2580 = vunpack.c.l.b16 %v2541
        %v2581 = vunpack.c.l.b16 %v2542
        %v2582 = vunpack.c.l.b16 %v2543
        %v2583 = vunpack.c.l.b16 %v2544
        %v2584 = vunpack.c.l.b16 %v2545
        %v2585 = vunpack.c.l.b16 %v2546
        %v2586 = vunpack.c.l.b16 %v2547
        %v2587 = vunpack.c.l.b16 %v2548
        %v2588 = vunpack.c.l.b16 %v2549
        %v2589 = vunpack.c.l.b16 %v2550
        %v2590 = vunpack.c.l.b16 %v2551
        %v2591 = vunpack.c.l.b16 %v2552
        %v2592 = vunpack.c.l.b16 %v2553
        %v2593 = vunpack.c.l.b16 %v2554
        %v2594 = vunpack.c.l.b16 %v2555
        %v2595 = vpack.c.b16 %v2580, %v2579
        %v2596 = vpack.c.b16 %v2582, %v2581
        %v2597 = vpack.c.b16 %v2584, %v2583
        %v2598 = vpack.c.b16 %v2586, %v2585
        %v2599 = vpack.c.b16 %v2588, %v2587
        %v2600 = vpack.c.b16 %v2590, %v2589
        %v2601 = vpack.c.b16 %v2592, %v2591
        %v2602 = vpack.c.b16 %v2594, %v2593
        %2611 = vmatprep.subr.bf16.mxu0 0
        %2612 = vmatpush1.bf16.msra.mxu0 %v2595
        %2613 = vmatprep.subr.bf16.mxu0 0
        %2614 = vmatpush1.bf16.msra.mxu0 %v2596
        %2615 = vmatprep.subr.bf16.mxu0 0
        %2616 = vmatpush1.bf16.msra.mxu0 %v2597
        %2617 = vmatprep.subr.bf16.mxu0 0
        %2618 = vmatpush1.bf16.msra.mxu0 %v2598
        %2619 = vmatprep.subr.bf16.mxu0 0
        %2620 = vmatpush1.bf16.msra.mxu0 %v2599
        %2621 = vmatprep.subr.bf16.mxu0 0
        %2622 = vmatpush1.bf16.msra.mxu0 %v2600
        %2623 = vmatprep.subr.bf16.mxu0 0
        %2624 = vmatpush1.bf16.msra.mxu0 %v2601
        %2625 = vmatprep.subr.bf16.mxu0 0
        %2626 = vmatpush1.bf16.msra.mxu0 %v2602
        %2627 = vmatprep.subr.bf16.mxu0 0
        %2628 = vmatpush1.bf16.msra.mxu0 0
        %2629 = vmatprep.subr.bf16.mxu0 0
        %2630 = vmatpush1.bf16.msra.mxu0 0
        %2631 = vmatprep.subr.bf16.mxu0 0
        %2632 = vmatpush1.bf16.msra.mxu0 0
        %2633 = vmatprep.subr.bf16.mxu0 0
        %2634 = vmatpush1.bf16.msra.mxu0 0
        %2635 = vmatprep.subr.bf16.mxu0 0
        %2636 = vmatpush1.bf16.msra.mxu0 0
        %2637 = vmatprep.subr.bf16.mxu0 0
        %2638 = vmatpush1.bf16.msra.mxu0 0
        %2639 = vmatprep.subr.bf16.mxu0 0
        %2640 = vmatpush1.bf16.msra.mxu0 0
        %2641 = vmatprep.subr.bf16.mxu0 0
        %2642 = vmatpush1.bf16.msra.mxu0 0
        %2643 = vmatprep.mubr.bf16.mxu0 0
        %2644 = vmatmul.mubr.bf16.gmra.mrb[0].mxu0 %v2539
        %v2645 = vpop.f32.mrb[0].mxu0
        %v2646 = vadd.f32 %v2561, %v2645
        %v2647 = vpop.f32.mrb[0].mxu0
        %v2648 = vpop.f32.mrb[0].mxu0
        %v2649 = vadd.f32 %v2561, %v2648
        %v2650 = vpop.f32.mrb[0].mxu0
        %2651 = vdwg.mxu0
        %v2652 = vadd.f32 %v2409, %v2646
        %v2653 = vadd.f32 %v2410, %v2649
        %2654 = vst.msk [vmem:[#allocation2] sm:$0xff] %vm904, %v2652
        %2655 = vst.msk [vmem:[#allocation2 + $0x8] sm:$0xf] %vm908, %v2653
        %p2656 = scmp.eq.s32.totalorder %s38, 2
        // Predicated region
        $region105: #{vision_encoder_forward.1} parent=95 // pred_check
          %p2657 = pneg %p2656
        $region106: #{vision_encoder_forward.1} parent=95 // pred_check_branch
          %2659 = sbr.rel (%p2657) target = $region108
        $region107: #{vision_encoder_forward.1} parent=95 // pred_region
          %v2660 = vld [vmem:[%s16] sm:$0x1]
          %v2661 = vld [vmem:[%s17] sm:$0x1]
          %vm2662 = vcmask 253952
          %v2663 = vsel %vm2662, %v2652, 0.0
          %2664 = vadd.xlane.f32.xlu0 %v2663
          %v2665 = vpop.xlane.xlu0 %2664
          %v2666 = vmul.f32 %v2665, %v912
          %v2667 = vsub.f32 %v2652, %v2666
          %v2668 = vmul.f32 %v2667, %v2667
          %v2669 = vsel %vm2662, %v2668, 0.0
          %2670 = vadd.xlane.f32.xlu0 %v2669
          %v2671 = vpop.xlane.xlu0 %2670
          %v2672 = vmul.f32 %v2671, %v912
          %v2673 = vadd.f32 %v2672, 1e-05
          %v2674 = vrsqrt.pop %v2673
          %v2675 = vmul.f32 %v2667, %v2674
          %v2676 = vmul.f32 %v2675, %v2660
          %v2677 = vadd.f32 %v2676, %v2661
          %v2678 = vpack.c.bf16 %v2677, %v2677
          %v2679 = vld [vmem:[%s18] sm:$0xf]
          %v2680 = vld [vmem:[%s18 + $0x4] sm:$0xf]
          %v2681 = vld [vmem:[%s18 + $0x8] sm:$0xf]
          %v2682 = vld [vmem:[%s18 + $0xc] sm:$0xf]
          %v2687 = vunpack.c.l.b16 %v2679
          %v2688 = vunpack.c.l.b16 %v2680
          %v2689 = vunpack.c.l.b16 %v2681
          %v2690 = vunpack.c.l.b16 %v2682
          %v2691 = vpack.c.b16 %v2688, %v2687
          %v2692 = vpack.c.b16 %v2690, %v2689
          %v2696 = vsel %vm904, %v2678, 0
          %2698 = vmatprep.subr.bf16.mxu0 0
          %2699 = vmatpush1.bf16.msra.mxu0 %v2691
          %2700 = vmatprep.subr.bf16.mxu0 0
          %2701 = vmatpush1.bf16.msra.mxu0 %v2692
          %2702 = vmatprep.subr.bf16.mxu0 0
          %2703 = vmatpush1.bf16.msra.mxu0 0
          %2704 = vmatprep.subr.bf16.mxu0 0
          %2705 = vmatpush1.bf16.msra.mxu0 0
          %2706 = vmatprep.subr.bf16.mxu0 0
          %2707 = vmatpush1.bf16.msra.mxu0 0
          %2708 = vmatprep.subr.bf16.mxu0 0
          %2709 = vmatpush1.bf16.msra.mxu0 0
          %2710 = vmatprep.subr.bf16.mxu0 0
          %2711 = vmatpush1.bf16.msra.mxu0 0
          %2712 = vmatprep.subr.bf16.mxu0 0
          %2713 = vmatpush1.bf16.msra.mxu0 0
          %2714 = vmatprep.subr.bf16.mxu0 0
          %2715 = vmatpush1.bf16.msra.mxu0 0
          %2716 = vmatprep.subr.bf16.mxu0 0
          %2717 = vmatpush1.bf16.msra.mxu0 0
          %2718 = vmatprep.subr.bf16.mxu0 0
          %2719 = vmatpush1.bf16.msra.mxu0 0
          %2720 = vmatprep.subr.bf16.mxu0 0
          %2721 = vmatpush1.bf16.msra.mxu0 0
          %2722 = vmatprep.subr.bf16.mxu0 0
          %2723 = vmatpush1.bf16.msra.mxu0 0
          %2724 = vmatprep.subr.bf16.mxu0 0
          %2725 = vmatpush1.bf16.msra.mxu0 0
          %2726 = vmatprep.subr.bf16.mxu0 0
          %2727 = vmatpush1.bf16.msra.mxu0 0
          %2728 = vmatprep.subr.bf16.mxu0 0
          %2729 = vmatpush1.bf16.msra.mxu0 0
          %2730 = vmatprep.mubr.bf16.mxu0 0
          %2731 = vmatmul.mubr.bf16.gmra.mrb[0].mxu0 %v2696
          %v2732 = vpop.f32.mrb[0].mxu0
          %v2733 = vadd.f32 0.0, %v2732
          %v2734 = vpop.f32.mrb[0].mxu0
          %v2735 = vpop.f32.mrb[0].mxu0
          %v2736 = vpop.f32.mrb[0].mxu0
          %2737 = vdwg.mxu0
          %vm2738 = vcmask 122880
          %2739 = vst.msk [vmem:[%s777] sm:$0x1] %vm2738, %v2733
        $region108: #{vision_encoder_forward.1} parent=95 // pred_fallthru
          _
        %s2740 = sand.u32 %s524, 1
        %s2741 = scalar_lea.sflag [#allocation4], %s2740
        %s2742 = sand.u32 %s524, 1
        %s2743 = scalar_lea.vmem [#allocation3], %s2742
        // Predicated region
        $region109: #{vision_encoder_forward.1} parent=95 // pred_check
          %p2744 = pneg %p534
        $region110: #{vision_encoder_forward.1} parent=95 // pred_check_branch
          %2746 = sbr.rel (%p2744) target = $region112
        $region111: #{vision_encoder_forward.1} parent=95 // pred_region
          %s2748 = ssub.s32 16, 16
          %2749 = vsyncadd %s2741, %s2748
          %s2750 = smul.addr %s37, 16
          %s2751 = scalar_lea.hbm %s19, %s2750
          %s2753 = sshll.u32 %s2743, 4
          %s2754 = int_to_ptr.vmem [resolvable:$true] %s2753
          %2756 = dma.vmem_to_hbm [thread:$0]  %s2754, 16, %s2751, %s2741
        $region112: #{vision_encoder_forward.1} parent=95 // pred_fallthru
          _
      $region96: #{vision_encoder_forward.1} parent=5 // pred_fallthru
        _
      %p2757 = scmp.le.s32.totalorder 2, %s28
      // Predicated region
      $region113: #{vision_encoder_forward.1} parent=5 // pred_check
        %p2758 = pneg %p2757
      $region114: #{vision_encoder_forward.1} parent=5 // pred_check_branch
        %2760 = sbr.rel (%p2758) target = $region116
      $region115: #{vision_encoder_forward.1} parent=5 // pred_region
        %s2761 = ssub.s32 %s28, 2
        // Predicated region
        $region117: #{vision_encoder_forward.1} parent=115 // pred_check
          %p2762 = pneg %p540
        $region118: #{vision_encoder_forward.1} parent=115 // pred_check_branch
          %2764 = sbr.rel (%p2762) target = $region120
        $region119: #{vision_encoder_forward.1} parent=115 // pred_region
          %s2765 = sand.u32 %s525, 1
          %s2766 = scalar_lea.sflag [#allocation4], %s2765
          %s2767 = sand.u32 %s525, 1
          %s2768 = scalar_lea.vmem [#allocation3], %s2767
          %2769 = dma.done %s2766, 16
        $region120: #{vision_encoder_forward.1} parent=115 // pred_fallthru
          _
      $region116: #{vision_encoder_forward.1} parent=5 // pred_fallthru
        _
    $region6: #{vision_encoder_forward.1} parent=1 // loop_footer
      %s32 = sadd.s32 1, %s28
    $region7: #{vision_encoder_forward.1} parent=1 // loop_footer_branch
      %27 = sbr.rel target = $region3
    $region8: #{vision_encoder_forward.1} parent=1 // loop_exit
      _
    %2770 = vsyncpa [#allocation4], 1
    %s2771 = scalar_lea.sflag [#allocation4], 1
    %2772 = vsyncpa %s2771, 1

</llo_original>
